<compile_context>
chip_gen: v5e
topology: v5e:2x2
jax: 0.10.0
libtpu: 0.0.40
codegen_flags: <defaults>
</compile_context>

<pallas_src>
import jax
import jax.numpy as jnp
from jax.experimental import pallas as pl
from jax.experimental.pallas import tpu as pltpu


def _round_up(v, m):
    return ((v + m - 1) // m) * m


# ----------------------------------------------------------------------------
# Fused Pallas kernel: stacked GRU layers + Linear head in a single invocation
# ----------------------------------------------------------------------------
def make_fused_gru_kernel(num_layers, seq_len, batch_p, hidden_p):
    """Build the fused kernel.

    Kernel refs, in order:
      x2d            : (S*Bp, I)        layer-0 input, flattened time-major
      per layer l    : wih (in_l, 3Hp), whh (Hp, 3Hp), bi (1, 3Hp), bhn (1, Hp)
      wfc            : (Hp, Cp)
      bfc            : (1, Cp)
      out            : (Bp, Cp)
      seq_scratch    : (S*Bp, Hp)       VMEM scratch holding a layer's hidden sequence
    """
    n_in = 1 + 4 * num_layers + 2
    S, Bp, Hp = seq_len, batch_p, hidden_p

    def kernel(*refs):
        out_ref = refs[n_in]
        seq_scr = refs[n_in + 1]

        inp = refs[0][...]                                     # (S*Bp, in_dim)
        h = None
        for layer in range(num_layers):
            base = 1 + 4 * layer
            wih = refs[base][...]                              # (in_dim, 3*Hp)
            whh = refs[base + 1][...]                          # (Hp, 3*Hp)
            bi = refs[base + 2][...]                           # (1, 3*Hp)
            bhn = refs[base + 3][...]                          # (1, Hp)

            # Hoisted, time-independent input projection: one big MXU matmul.
            # (b_ih + b_hr/b_hz already folded into `bi`.)
            gi = jnp.dot(inp, wih, preferred_element_type=jnp.float32) + bi   # (S*Bp, 3*Hp)

            is_last = layer == num_layers - 1
            h = jnp.zeros((Bp, Hp), jnp.float32)
            # Serial recurrence. S is a small static constant -> fully unrolled, so every
            # slice below is static, 8-sublane aligned (Bp % 8 == 0) and 128-lane aligned
            # (Hp % 128 == 0).
            for t in range(S):
                gi_t = gi[t * Bp:(t + 1) * Bp, :]                              # (Bp, 3*Hp)
                gh = jnp.dot(h, whh, preferred_element_type=jnp.float32)       # (Bp, 3*Hp)
                r = jax.nn.sigmoid(gi_t[:, :Hp] + gh[:, :Hp])
                z = jax.nn.sigmoid(gi_t[:, Hp:2 * Hp] + gh[:, Hp:2 * Hp])
                n = jnp.tanh(gi_t[:, 2 * Hp:] + r * (gh[:, 2 * Hp:] + bhn))
                h = n + z * (h - n)                            # == (1-z)*n + z*h
                if not is_last:
                    seq_scr[t * Bp:(t + 1) * Bp, :] = h        # lane-dense aligned store
            if not is_last:
                inp = seq_scr[...]                             # next layer's input sequence

        # Fused FC head on the last time step of the last layer.
        wfc = refs[1 + 4 * num_layers][...]                    # (Hp, Cp)
        bfc = refs[2 + 4 * num_layers][...]                    # (1, Cp)
        out_ref[...] = (jnp.dot(h, wfc, preferred_element_type=jnp.float32)
                        + bfc).astype(out_ref.dtype)           # full-vreg, unmasked store

    return kernel


# ----------------------------------------------------------------------------
# Parameter re-layout (padding / transposition / bias folding) — plain JAX
# ----------------------------------------------------------------------------
def _pad_gru_layer(w_ih, w_hh, b_ih, b_hh, hidden, hidden_p, in_rows):
    """Re-lay out one PyTorch GRU layer's parameters for the kernel.

    PyTorch layout (gate order r|z|n):
      w_ih: (3H, in), w_hh: (3H, H), b_ih/b_hh: (3H,)
    Kernel layout: pre-transposed, each gate block padded to `hidden_p` lanes, the
    contraction dim padded to `in_rows` rows with zeros. b_ih and the r/z parts of b_hh
    are folded into one bias applied with the hoisted input projection; b_hn is kept
    separate because it sits inside r * (h W_hn^T + b_hn).
    Zero padding keeps the padded hidden lanes exactly 0 for all t.
    """
    H, Hp = hidden, hidden_p
    in_dim = w_ih.shape[1]
    w_ih = jnp.asarray(w_ih, jnp.float32)
    w_hh = jnp.asarray(w_hh, jnp.float32)
    b_ih = jnp.asarray(b_ih, jnp.float32)
    b_hh = jnp.asarray(b_hh, jnp.float32)

    wih = jnp.zeros((in_rows, 3, Hp), jnp.float32)
    wih = wih.at[:in_dim, :, :H].set(w_ih.T.reshape(in_dim, 3, H))
    whh = jnp.zeros((Hp, 3, Hp), jnp.float32)
    whh = whh.at[:H, :, :H].set(w_hh.T.reshape(H, 3, H))

    rz_mask = jnp.array([1.0, 1.0, 0.0], jnp.float32).reshape(3, 1)
    b_fold = b_ih.reshape(3, H) + b_hh.reshape(3, H) * rz_mask        # fold b_hr, b_hz
    bi = jnp.zeros((3, Hp), jnp.float32).at[:, :H].set(b_fold).reshape(1, 3 * Hp)
    bhn = jnp.zeros((1, Hp), jnp.float32).at[0, :H].set(b_hh[2 * H:])
    return wih.reshape(in_rows, 3 * Hp), whh.reshape(Hp, 3 * Hp), bi, bhn


def rnn_gru_forward(x, params):
    """Full RNN_GRU.forward: stacked GRU -> take last time step -> Linear.

    x: (seq_len, batch, input_size), PyTorch seq-first. Returns (batch, num_classes).
    """
    S, B, I = x.shape
    gru_layers = params["gru_layers"]
    num_layers = len(gru_layers)
    H = gru_layers[0][1].shape[1]                 # w_hh: (3H, H)
    fc_w, fc_b = params["fc_w"], params["fc_b"]
    C = fc_w.shape[0]

    Hp = _round_up(H, 128)                        # lane-align every gate slice
    Bp = _round_up(B, 8)                          # sublane-align every per-step slice
    Cp = _round_up(C, 128)                        # lane-dense final store

    # TODO(synk): bidirectional=True branch of the PyTorch module is not implemented
    # (the module default and this usage is bidirectional=False).

    x_pad = jnp.zeros((S, Bp, I), jnp.float32).at[:, :B, :].set(x.astype(jnp.float32))
    args = [x_pad.reshape(S * Bp, I)]
    for layer, (w_ih, w_hh, b_ih, b_hh) in enumerate(gru_layers):
        in_rows = I if layer == 0 else Hp
        args.extend(_pad_gru_layer(w_ih, w_hh, b_ih, b_hh, H, Hp, in_rows))
    wfc = jnp.zeros((Hp, Cp), jnp.float32).at[:H, :C].set(jnp.asarray(fc_w, jnp.float32).T)
    bfc = jnp.zeros((1, Cp), jnp.float32).at[0, :C].set(jnp.asarray(fc_b, jnp.float32))
    args.append(wfc)
    args.append(bfc)

    kernel = make_fused_gru_kernel(num_layers, S, Bp, Hp)
    vmem_spec = pl.BlockSpec(memory_space=pltpu.MemorySpace.VMEM)
    out = pl.pallas_call(
        kernel,
        out_shape=jax.ShapeDtypeStruct((Bp, Cp), jnp.float32),
        in_specs=[vmem_spec] * len(args),
        out_specs=vmem_spec,
        scratch_shapes=[pltpu.VMEM((S * Bp, Hp), jnp.float32)],
    )(*args)
    return out[:B, :C]


# ----------------------------------------------------------------------------
# Deterministic parameter init (PyTorch-style uniform(-1/sqrt(H), 1/sqrt(H)))
# ----------------------------------------------------------------------------
def init_params(key, input_size, hidden_size, num_layers, num_classes):
    k_gru = 1.0 / jnp.sqrt(hidden_size)
    layers = []
    for l in range(num_layers):
        in_sz = input_size if l == 0 else hidden_size
        key, k1, k2, k3, k4 = jax.random.split(key, 5)
        w_ih = jax.random.uniform(k1, (3 * hidden_size, in_sz), jnp.float32, -k_gru, k_gru)
        w_hh = jax.random.uniform(k2, (3 * hidden_size, hidden_size), jnp.float32, -k_gru, k_gru)
        b_ih = jax.random.uniform(k3, (3 * hidden_size,), jnp.float32, -k_gru, k_gru)
        b_hh = jax.random.uniform(k4, (3 * hidden_size,), jnp.float32, -k_gru, k_gru)
        layers.append((w_ih, w_hh, b_ih, b_hh))
    k_fc = 1.0 / jnp.sqrt(hidden_size)
    key, k1, k2 = jax.random.split(key, 3)
    fc_w = jax.random.uniform(k1, (num_classes, hidden_size), jnp.float32, -k_fc, k_fc)
    fc_b = jax.random.uniform(k2, (num_classes,), jnp.float32, -k_fc, k_fc)
    return {"gru_layers": layers, "fc_w": fc_w, "fc_b": fc_b}


# ----------------------------------------------------------------------------
# Pure-JAX reference for correctness check
# ----------------------------------------------------------------------------
def gru_layer_ref(x, w_ih, w_hh, b_ih, b_hh):
    H = w_hh.shape[1]

    def step(h, x_t):
        gi = x_t @ w_ih.T + b_ih
        gh = h @ w_hh.T + b_hh
        i_r, i_z, i_n = gi[:, :H], gi[:, H:2 * H], gi[:, 2 * H:]
        h_r, h_z, h_n = gh[:, :H], gh[:, H:2 * H], gh[:, 2 * H:]
        r = jax.nn.sigmoid(i_r + h_r)
        z = jax.nn.sigmoid(i_z + h_z)
        n = jnp.tanh(i_n + r * h_n)
        h_new = (1.0 - z) * n + z * h
        return h_new, h_new

    h0 = jnp.zeros((x.shape[1], H), jnp.float32)
    _, ys = jax.lax.scan(step, h0, x)
    return ys


def rnn_gru_ref(x, params):
    h = x
    for layer_params in params["gru_layers"]:
        h = gru_layer_ref(h, *layer_params)
    return h[-1] @ params["fc_w"].T + params["fc_b"]


# ----------------------------------------------------------------------------
if __name__ == "__main__":
    # Small shapes consistent with the module's forward:
    #   input: (seq_len, batch, input_size=512)  [resnet18/34 default branch]
    SEQ, BATCH, INPUT_SIZE = 8, 2, 512
    NUM_LAYERS, HIDDEN, NUM_CLASSES = 2, 32, 2

    key = jax.random.PRNGKey(0)
    key, kx, kp = jax.random.split(key, 3)
    x = jax.random.normal(kx, (SEQ, BATCH, INPUT_SIZE), jnp.float32)
    params = init_params(kp, INPUT_SIZE, HIDDEN, NUM_LAYERS, NUM_CLASSES)

    forward = jax.jit(rnn_gru_forward)
    out = jax.block_until_ready(forward(x, params))
    assert out.shape == (BATCH, NUM_CLASSES), out.shape

    ref = jax.block_until_ready(rnn_gru_ref(x, params))
    assert jnp.allclose(out, ref, atol=2e-4, rtol=2e-4), (out, ref)

    print("KERNEL_OK")
</pallas_src>

<mosaic_0001>
module attributes {stable_mosaic.version = 11 : i64} {
  func.func @kernel(%arg0: memref<64x512xf32, #tpu.memory_space<vmem>>, %arg1: memref<512x384xf32, #tpu.memory_space<vmem>>, %arg2: memref<128x384xf32, #tpu.memory_space<vmem>>, %arg3: memref<1x384xf32, #tpu.memory_space<vmem>>, %arg4: memref<1x128xf32, #tpu.memory_space<vmem>>, %arg5: memref<128x384xf32, #tpu.memory_space<vmem>>, %arg6: memref<128x384xf32, #tpu.memory_space<vmem>>, %arg7: memref<1x384xf32, #tpu.memory_space<vmem>>, %arg8: memref<1x128xf32, #tpu.memory_space<vmem>>, %arg9: memref<128x128xf32, #tpu.memory_space<vmem>>, %arg10: memref<1x128xf32, #tpu.memory_space<vmem>>, %arg11: memref<8x128xf32, #tpu.memory_space<vmem>>, %arg12: memref<64x128xf32, #tpu.memory_space<vmem>>) attributes {dimension_semantics = [], scalar_prefetch = 0 : i64, scratch_operands = 1 : i64, tpu.core_type = #tpu.core_type<tc>} {
    %c0 = arith.constant 0 : index
    %c0_0 = arith.constant 0 : index
    %0 = vector.load %arg0[%c0, %c0_0] : memref<64x512xf32, #tpu.memory_space<vmem>>, vector<64x512xf32>
    %c0_1 = arith.constant 0 : index
    %c0_2 = arith.constant 0 : index
    %1 = vector.load %arg1[%c0_1, %c0_2] : memref<512x384xf32, #tpu.memory_space<vmem>>, vector<512x384xf32>
    %c0_3 = arith.constant 0 : index
    %c0_4 = arith.constant 0 : index
    %2 = vector.load %arg2[%c0_3, %c0_4] : memref<128x384xf32, #tpu.memory_space<vmem>>, vector<128x384xf32>
    %c0_5 = arith.constant 0 : index
    %c0_6 = arith.constant 0 : index
    %3 = vector.load %arg3[%c0_5, %c0_6] : memref<1x384xf32, #tpu.memory_space<vmem>>, vector<1x384xf32>
    %c0_7 = arith.constant 0 : index
    %c0_8 = arith.constant 0 : index
    %4 = vector.load %arg4[%c0_7, %c0_8] : memref<1x128xf32, #tpu.memory_space<vmem>>, vector<1x128xf32>
    %cst = arith.constant dense<0.000000e+00> : vector<64x384xf32>
    %5 = tpu.matmul %0, %1, %cst {dimension_numbers = #tpu.dot_dimension_numbers<[1], [0], [0], [1], [0, 0, 1, 1], [], []>} : vector<64x512xf32>, vector<512x384xf32>, vector<64x384xf32> -> vector<64x384xf32>
    %6 = vector.broadcast %3 : vector<1x384xf32> to vector<64x384xf32>
    %7 = arith.addf %5, %6 : vector<64x384xf32>
    %cst_9 = arith.constant 0.000000e+00 : f32
    %8 = vector.broadcast %cst_9 : f32 to vector<8x128xf32>
    %9 = vector.extract_strided_slice %7 {offsets = [0, 0], sizes = [8, 384], strides = [1, 1]} : vector<64x384xf32> to vector<8x384xf32>
    %cst_10 = arith.constant dense<0.000000e+00> : vector<8x384xf32>
    %10 = tpu.matmul %8, %2, %cst_10 {dimension_numbers = #tpu.dot_dimension_numbers<[1], [0], [0], [1], [0, 0, 1, 1], [], []>} : vector<8x128xf32>, vector<128x384xf32>, vector<8x384xf32> -> vector<8x384xf32>
    %11 = vector.extract_strided_slice %9 {offsets = [0, 0], sizes = [8, 128], strides = [1, 1]} : vector<8x384xf32> to vector<8x128xf32>
    %12 = vector.extract_strided_slice %10 {offsets = [0, 0], sizes = [8, 128], strides = [1, 1]} : vector<8x384xf32> to vector<8x128xf32>
    %13 = arith.addf %11, %12 : vector<8x128xf32>
    %14 = arith.negf %13 : vector<8x128xf32>
    %15 = math.exp %14 : vector<8x128xf32>
    %cst_11 = arith.constant 1.000000e+00 : f32
    %16 = vector.broadcast %cst_11 : f32 to vector<8x128xf32>
    %17 = arith.addf %16, %15 : vector<8x128xf32>
    %18 = arith.divf %16, %17 : vector<8x128xf32>
    %19 = vector.extract_strided_slice %9 {offsets = [0, 128], sizes = [8, 128], strides = [1, 1]} : vector<8x384xf32> to vector<8x128xf32>
    %20 = vector.extract_strided_slice %10 {offsets = [0, 128], sizes = [8, 128], strides = [1, 1]} : vector<8x384xf32> to vector<8x128xf32>
    %21 = arith.addf %19, %20 : vector<8x128xf32>
    %22 = arith.negf %21 : vector<8x128xf32>
    %23 = math.exp %22 : vector<8x128xf32>
    %cst_12 = arith.constant 1.000000e+00 : f32
    %24 = vector.broadcast %cst_12 : f32 to vector<8x128xf32>
    %25 = arith.addf %24, %23 : vector<8x128xf32>
    %26 = arith.divf %24, %25 : vector<8x128xf32>
    %27 = vector.extract_strided_slice %9 {offsets = [0, 256], sizes = [8, 128], strides = [1, 1]} : vector<8x384xf32> to vector<8x128xf32>
    %28 = vector.extract_strided_slice %10 {offsets = [0, 256], sizes = [8, 128], strides = [1, 1]} : vector<8x384xf32> to vector<8x128xf32>
    %29 = vector.broadcast %4 : vector<1x128xf32> to vector<8x128xf32>
    %30 = arith.addf %28, %29 : vector<8x128xf32>
    %31 = arith.mulf %18, %30 : vector<8x128xf32>
    %32 = arith.addf %27, %31 : vector<8x128xf32>
    %33 = math.tanh %32 : vector<8x128xf32>
    %34 = arith.subf %8, %33 : vector<8x128xf32>
    %35 = arith.mulf %26, %34 : vector<8x128xf32>
    %36 = arith.addf %33, %35 : vector<8x128xf32>
    %c0_13 = arith.constant 0 : index
    %c0_14 = arith.constant 0 : index
    %37 = vector.load %arg12[%c0_13, %c0_14] : memref<64x128xf32, #tpu.memory_space<vmem>>, vector<8x128xf32>
    tpu.vector_store %arg12[%c0_13, %c0_14], %36 {strides = array<i32>} : memref<64x128xf32, #tpu.memory_space<vmem>>, vector<8x128xf32>,
    %38 = vector.extract_strided_slice %7 {offsets = [8, 0], sizes = [8, 384], strides = [1, 1]} : vector<64x384xf32> to vector<8x384xf32>
    %cst_15 = arith.constant dense<0.000000e+00> : vector<8x384xf32>
    %39 = tpu.matmul %36, %2, %cst_15 {dimension_numbers = #tpu.dot_dimension_numbers<[1], [0], [0], [1], [0, 0, 1, 1], [], []>} : vector<8x128xf32>, vector<128x384xf32>, vector<8x384xf32> -> vector<8x384xf32>
    %40 = vector.extract_strided_slice %38 {offsets = [0, 0], sizes = [8, 128], strides = [1, 1]} : vector<8x384xf32> to vector<8x128xf32>
    %41 = vector.extract_strided_slice %39 {offsets = [0, 0], sizes = [8, 128], strides = [1, 1]} : vector<8x384xf32> to vector<8x128xf32>
    %42 = arith.addf %40, %41 : vector<8x128xf32>
    %43 = arith.negf %42 : vector<8x128xf32>
    %44 = math.exp %43 : vector<8x128xf32>
    %cst_16 = arith.constant 1.000000e+00 : f32
    %45 = vector.broadcast %cst_16 : f32 to vector<8x128xf32>
    %46 = arith.addf %45, %44 : vector<8x128xf32>
    %47 = arith.divf %45, %46 : vector<8x128xf32>
    %48 = vector.extract_strided_slice %38 {offsets = [0, 128], sizes = [8, 128], strides = [1, 1]} : vector<8x384xf32> to vector<8x128xf32>
    %49 = vector.extract_strided_slice %39 {offsets = [0, 128], sizes = [8, 128], strides = [1, 1]} : vector<8x384xf32> to vector<8x128xf32>
    %50 = arith.addf %48, %49 : vector<8x128xf32>
    %51 = arith.negf %50 : vector<8x128xf32>
    %52 = math.exp %51 : vector<8x128xf32>
    %cst_17 = arith.constant 1.000000e+00 : f32
    %53 = vector.broadcast %cst_17 : f32 to vector<8x128xf32>
    %54 = arith.addf %53, %52 : vector<8x128xf32>
    %55 = arith.divf %53, %54 : vector<8x128xf32>
    %56 = vector.extract_strided_slice %38 {offsets = [0, 256], sizes = [8, 128], strides = [1, 1]} : vector<8x384xf32> to vector<8x128xf32>
    %57 = vector.extract_strided_slice %39 {offsets = [0, 256], sizes = [8, 128], strides = [1, 1]} : vector<8x384xf32> to vector<8x128xf32>
    %58 = vector.broadcast %4 : vector<1x128xf32> to vector<8x128xf32>
    %59 = arith.addf %57, %58 : vector<8x128xf32>
    %60 = arith.mulf %47, %59 : vector<8x128xf32>
    %61 = arith.addf %56, %60 : vector<8x128xf32>
    %62 = math.tanh %61 : vector<8x128xf32>
    %63 = arith.subf %36, %62 : vector<8x128xf32>
    %64 = arith.mulf %55, %63 : vector<8x128xf32>
    %65 = arith.addf %62, %64 : vector<8x128xf32>
    %c8 = arith.constant 8 : index
    %c0_18 = arith.constant 0 : index
    %66 = vector.load %arg12[%c8, %c0_18] : memref<64x128xf32, #tpu.memory_space<vmem>>, vector<8x128xf32>
    tpu.vector_store %arg12[%c8, %c0_18], %65 {strides = array<i32>} : memref<64x128xf32, #tpu.memory_space<vmem>>, vector<8x128xf32>,
    %67 = vector.extract_strided_slice %7 {offsets = [16, 0], sizes = [8, 384], strides = [1, 1]} : vector<64x384xf32> to vector<8x384xf32>
    %cst_19 = arith.constant dense<0.000000e+00> : vector<8x384xf32>
    %68 = tpu.matmul %65, %2, %cst_19 {dimension_numbers = #tpu.dot_dimension_numbers<[1], [0], [0], [1], [0, 0, 1, 1], [], []>} : vector<8x128xf32>, vector<128x384xf32>, vector<8x384xf32> -> vector<8x384xf32>
    %69 = vector.extract_strided_slice %67 {offsets = [0, 0], sizes = [8, 128], strides = [1, 1]} : vector<8x384xf32> to vector<8x128xf32>
    %70 = vector.extract_strided_slice %68 {offsets = [0, 0], sizes = [8, 128], strides = [1, 1]} : vector<8x384xf32> to vector<8x128xf32>
    %71 = arith.addf %69, %70 : vector<8x128xf32>
    %72 = arith.negf %71 : vector<8x128xf32>
    %73 = math.exp %72 : vector<8x128xf32>
    %cst_20 = arith.constant 1.000000e+00 : f32
    %74 = vector.broadcast %cst_20 : f32 to vector<8x128xf32>
    %75 = arith.addf %74, %73 : vector<8x128xf32>
    %76 = arith.divf %74, %75 : vector<8x128xf32>
    %77 = vector.extract_strided_slice %67 {offsets = [0, 128], sizes = [8, 128], strides = [1, 1]} : vector<8x384xf32> to vector<8x128xf32>
    %78 = vector.extract_strided_slice %68 {offsets = [0, 128], sizes = [8, 128], strides = [1, 1]} : vector<8x384xf32> to vector<8x128xf32>
    %79 = arith.addf %77, %78 : vector<8x128xf32>
    %80 = arith.negf %79 : vector<8x128xf32>
    %81 = math.exp %80 : vector<8x128xf32>
    %cst_21 = arith.constant 1.000000e+00 : f32
    %82 = vector.broadcast %cst_21 : f32 to vector<8x128xf32>
    %83 = arith.addf %82, %81 : vector<8x128xf32>
    %84 = arith.divf %82, %83 : vector<8x128xf32>
    %85 = vector.extract_strided_slice %67 {offsets = [0, 256], sizes = [8, 128], strides = [1, 1]} : vector<8x384xf32> to vector<8x128xf32>
    %86 = vector.extract_strided_slice %68 {offsets = [0, 256], sizes = [8, 128], strides = [1, 1]} : vector<8x384xf32> to vector<8x128xf32>
    %87 = vector.broadcast %4 : vector<1x128xf32> to vector<8x128xf32>
    %88 = arith.addf %86, %87 : vector<8x128xf32>
    %89 = arith.mulf %76, %88 : vector<8x128xf32>
    %90 = arith.addf %85, %89 : vector<8x128xf32>
    %91 = math.tanh %90 : vector<8x128xf32>
    %92 = arith.subf %65, %91 : vector<8x128xf32>
    %93 = arith.mulf %84, %92 : vector<8x128xf32>
    %94 = arith.addf %91, %93 : vector<8x128xf32>
    %c16 = arith.constant 16 : index
    %c0_22 = arith.constant 0 : index
    %95 = vector.load %arg12[%c16, %c0_22] : memref<64x128xf32, #tpu.memory_space<vmem>>, vector<8x128xf32>
    tpu.vector_store %arg12[%c16, %c0_22], %94 {strides = array<i32>} : memref<64x128xf32, #tpu.memory_space<vmem>>, vector<8x128xf32>,
    %96 = vector.extract_strided_slice %7 {offsets = [24, 0], sizes = [8, 384], strides = [1, 1]} : vector<64x384xf32> to vector<8x384xf32>
    %cst_23 = arith.constant dense<0.000000e+00> : vector<8x384xf32>
    %97 = tpu.matmul %94, %2, %cst_23 {dimension_numbers = #tpu.dot_dimension_numbers<[1], [0], [0], [1], [0, 0, 1, 1], [], []>} : vector<8x128xf32>, vector<128x384xf32>, vector<8x384xf32> -> vector<8x384xf32>
    %98 = vector.extract_strided_slice %96 {offsets = [0, 0], sizes = [8, 128], strides = [1, 1]} : vector<8x384xf32> to vector<8x128xf32>
    %99 = vector.extract_strided_slice %97 {offsets = [0, 0], sizes = [8, 128], strides = [1, 1]} : vector<8x384xf32> to vector<8x128xf32>
    %100 = arith.addf %98, %99 : vector<8x128xf32>
    %101 = arith.negf %100 : vector<8x128xf32>
    %102 = math.exp %101 : vector<8x128xf32>
    %cst_24 = arith.constant 1.000000e+00 : f32
    %103 = vector.broadcast %cst_24 : f32 to vector<8x128xf32>
    %104 = arith.addf %103, %102 : vector<8x128xf32>
    %105 = arith.divf %103, %104 : vector<8x128xf32>
    %106 = vector.extract_strided_slice %96 {offsets = [0, 128], sizes = [8, 128], strides = [1, 1]} : vector<8x384xf32> to vector<8x128xf32>
    %107 = vector.extract_strided_slice %97 {offsets = [0, 128], sizes = [8, 128], strides = [1, 1]} : vector<8x384xf32> to vector<8x128xf32>
    %108 = arith.addf %106, %107 : vector<8x128xf32>
    %109 = arith.negf %108 : vector<8x128xf32>
    %110 = math.exp %109 : vector<8x128xf32>
    %cst_25 = arith.constant 1.000000e+00 : f32
    %111 = vector.broadcast %cst_25 : f32 to vector<8x128xf32>
    %112 = arith.addf %111, %110 : vector<8x128xf32>
    %113 = arith.divf %111, %112 : vector<8x128xf32>
    %114 = vector.extract_strided_slice %96 {offsets = [0, 256], sizes = [8, 128], strides = [1, 1]} : vector<8x384xf32> to vector<8x128xf32>
    %115 = vector.extract_strided_slice %97 {offsets = [0, 256], sizes = [8, 128], strides = [1, 1]} : vector<8x384xf32> to vector<8x128xf32>
    %116 = vector.broadcast %4 : vector<1x128xf32> to vector<8x128xf32>
    %117 = arith.addf %115, %116 : vector<8x128xf32>
    %118 = arith.mulf %105, %117 : vector<8x128xf32>
    %119 = arith.addf %114, %118 : vector<8x128xf32>
    %120 = math.tanh %119 : vector<8x128xf32>
    %121 = arith.subf %94, %120 : vector<8x128xf32>
    %122 = arith.mulf %113, %121 : vector<8x128xf32>
    %123 = arith.addf %120, %122 : vector<8x128xf32>
    %c24 = arith.constant 24 : index
    %c0_26 = arith.constant 0 : index
    %124 = vector.load %arg12[%c24, %c0_26] : memref<64x128xf32, #tpu.memory_space<vmem>>, vector<8x128xf32>
    tpu.vector_store %arg12[%c24, %c0_26], %123 {strides = array<i32>} : memref<64x128xf32, #tpu.memory_space<vmem>>, vector<8x128xf32>,
    %125 = vector.extract_strided_slice %7 {offsets = [32, 0], sizes = [8, 384], strides = [1, 1]} : vector<64x384xf32> to vector<8x384xf32>
    %cst_27 = arith.constant dense<0.000000e+00> : vector<8x384xf32>
    %126 = tpu.matmul %123, %2, %cst_27 {dimension_numbers = #tpu.dot_dimension_numbers<[1], [0], [0], [1], [0, 0, 1, 1], [], []>} : vector<8x128xf32>, vector<128x384xf32>, vector<8x384xf32> -> vector<8x384xf32>
    %127 = vector.extract_strided_slice %125 {offsets = [0, 0], sizes = [8, 128], strides = [1, 1]} : vector<8x384xf32> to vector<8x128xf32>
    %128 = vector.extract_strided_slice %126 {offsets = [0, 0], sizes = [8, 128], strides = [1, 1]} : vector<8x384xf32> to vector<8x128xf32>
    %129 = arith.addf %127, %128 : vector<8x128xf32>
    %130 = arith.negf %129 : vector<8x128xf32>
    %131 = math.exp %130 : vector<8x128xf32>
    %cst_28 = arith.constant 1.000000e+00 : f32
    %132 = vector.broadcast %cst_28 : f32 to vector<8x128xf32>
    %133 = arith.addf %132, %131 : vector<8x128xf32>
    %134 = arith.divf %132, %133 : vector<8x128xf32>
    %135 = vector.extract_strided_slice %125 {offsets = [0, 128], sizes = [8, 128], strides = [1, 1]} : vector<8x384xf32> to vector<8x128xf32>
    %136 = vector.extract_strided_slice %126 {offsets = [0, 128], sizes = [8, 128], strides = [1, 1]} : vector<8x384xf32> to vector<8x128xf32>
    %137 = arith.addf %135, %136 : vector<8x128xf32>
    %138 = arith.negf %137 : vector<8x128xf32>
    %139 = math.exp %138 : vector<8x128xf32>
    %cst_29 = arith.constant 1.000000e+00 : f32
    %140 = vector.broadcast %cst_29 : f32 to vector<8x128xf32>
    %141 = arith.addf %140, %139 : vector<8x128xf32>
    %142 = arith.divf %140, %141 : vector<8x128xf32>
    %143 = vector.extract_strided_slice %125 {offsets = [0, 256], sizes = [8, 128], strides = [1, 1]} : vector<8x384xf32> to vector<8x128xf32>
    %144 = vector.extract_strided_slice %126 {offsets = [0, 256], sizes = [8, 128], strides = [1, 1]} : vector<8x384xf32> to vector<8x128xf32>
    %145 = vector.broadcast %4 : vector<1x128xf32> to vector<8x128xf32>
    %146 = arith.addf %144, %145 : vector<8x128xf32>
    %147 = arith.mulf %134, %146 : vector<8x128xf32>
    %148 = arith.addf %143, %147 : vector<8x128xf32>
    %149 = math.tanh %148 : vector<8x128xf32>
    %150 = arith.subf %123, %149 : vector<8x128xf32>
    %151 = arith.mulf %142, %150 : vector<8x128xf32>
    %152 = arith.addf %149, %151 : vector<8x128xf32>
    %c32 = arith.constant 32 : index
    %c0_30 = arith.constant 0 : index
    %153 = vector.load %arg12[%c32, %c0_30] : memref<64x128xf32, #tpu.memory_space<vmem>>, vector<8x128xf32>
    tpu.vector_store %arg12[%c32, %c0_30], %152 {strides = array<i32>} : memref<64x128xf32, #tpu.memory_space<vmem>>, vector<8x128xf32>,
    %154 = vector.extract_strided_slice %7 {offsets = [40, 0], sizes = [8, 384], strides = [1, 1]} : vector<64x384xf32> to vector<8x384xf32>
    %cst_31 = arith.constant dense<0.000000e+00> : vector<8x384xf32>
    %155 = tpu.matmul %152, %2, %cst_31 {dimension_numbers = #tpu.dot_dimension_numbers<[1], [0], [0], [1], [0, 0, 1, 1], [], []>} : vector<8x128xf32>, vector<128x384xf32>, vector<8x384xf32> -> vector<8x384xf32>
    %156 = vector.extract_strided_slice %154 {offsets = [0, 0], sizes = [8, 128], strides = [1, 1]} : vector<8x384xf32> to vector<8x128xf32>
    %157 = vector.extract_strided_slice %155 {offsets = [0, 0], sizes = [8, 128], strides = [1, 1]} : vector<8x384xf32> to vector<8x128xf32>
    %158 = arith.addf %156, %157 : vector<8x128xf32>
    %159 = arith.negf %158 : vector<8x128xf32>
    %160 = math.exp %159 : vector<8x128xf32>
    %cst_32 = arith.constant 1.000000e+00 : f32
    %161 = vector.broadcast %cst_32 : f32 to vector<8x128xf32>
    %162 = arith.addf %161, %160 : vector<8x128xf32>
    %163 = arith.divf %161, %162 : vector<8x128xf32>
    %164 = vector.extract_strided_slice %154 {offsets = [0, 128], sizes = [8, 128], strides = [1, 1]} : vector<8x384xf32> to vector<8x128xf32>
    %165 = vector.extract_strided_slice %155 {offsets = [0, 128], sizes = [8, 128], strides = [1, 1]} : vector<8x384xf32> to vector<8x128xf32>
    %166 = arith.addf %164, %165 : vector<8x128xf32>
    %167 = arith.negf %166 : vector<8x128xf32>
    %168 = math.exp %167 : vector<8x128xf32>
    %cst_33 = arith.constant 1.000000e+00 : f32
    %169 = vector.broadcast %cst_33 : f32 to vector<8x128xf32>
    %170 = arith.addf %169, %168 : vector<8x128xf32>
    %171 = arith.divf %169, %170 : vector<8x128xf32>
    %172 = vector.extract_strided_slice %154 {offsets = [0, 256], sizes = [8, 128], strides = [1, 1]} : vector<8x384xf32> to vector<8x128xf32>
    %173 = vector.extract_strided_slice %155 {offsets = [0, 256], sizes = [8, 128], strides = [1, 1]} : vector<8x384xf32> to vector<8x128xf32>
    %174 = vector.broadcast %4 : vector<1x128xf32> to vector<8x128xf32>
    %175 = arith.addf %173, %174 : vector<8x128xf32>
    %176 = arith.mulf %163, %175 : vector<8x128xf32>
    %177 = arith.addf %172, %176 : vector<8x128xf32>
    %178 = math.tanh %177 : vector<8x128xf32>
    %179 = arith.subf %152, %178 : vector<8x128xf32>
    %180 = arith.mulf %171, %179 : vector<8x128xf32>
    %181 = arith.addf %178, %180 : vector<8x128xf32>
    %c40 = arith.constant 40 : index
    %c0_34 = arith.constant 0 : index
    %182 = vector.load %arg12[%c40, %c0_34] : memref<64x128xf32, #tpu.memory_space<vmem>>, vector<8x128xf32>
    tpu.vector_store %arg12[%c40, %c0_34], %181 {strides = array<i32>} : memref<64x128xf32, #tpu.memory_space<vmem>>, vector<8x128xf32>,
    %183 = vector.extract_strided_slice %7 {offsets = [48, 0], sizes = [8, 384], strides = [1, 1]} : vector<64x384xf32> to vector<8x384xf32>
    %cst_35 = arith.constant dense<0.000000e+00> : vector<8x384xf32>
    %184 = tpu.matmul %181, %2, %cst_35 {dimension_numbers = #tpu.dot_dimension_numbers<[1], [0], [0], [1], [0, 0, 1, 1], [], []>} : vector<8x128xf32>, vector<128x384xf32>, vector<8x384xf32> -> vector<8x384xf32>
    %185 = vector.extract_strided_slice %183 {offsets = [0, 0], sizes = [8, 128], strides = [1, 1]} : vector<8x384xf32> to vector<8x128xf32>
    %186 = vector.extract_strided_slice %184 {offsets = [0, 0], sizes = [8, 128], strides = [1, 1]} : vector<8x384xf32> to vector<8x128xf32>
    %187 = arith.addf %185, %186 : vector<8x128xf32>
    %188 = arith.negf %187 : vector<8x128xf32>
    %189 = math.exp %188 : vector<8x128xf32>
    %cst_36 = arith.constant 1.000000e+00 : f32
    %190 = vector.broadcast %cst_36 : f32 to vector<8x128xf32>
    %191 = arith.addf %190, %189 : vector<8x128xf32>
    %192 = arith.divf %190, %191 : vector<8x128xf32>
    %193 = vector.extract_strided_slice %183 {offsets = [0, 128], sizes = [8, 128], strides = [1, 1]} : vector<8x384xf32> to vector<8x128xf32>
    %194 = vector.extract_strided_slice %184 {offsets = [0, 128], sizes = [8, 128], strides = [1, 1]} : vector<8x384xf32> to vector<8x128xf32>
    %195 = arith.addf %193, %194 : vector<8x128xf32>
    %196 = arith.negf %195 : vector<8x128xf32>
    %197 = math.exp %196 : vector<8x128xf32>
    %cst_37 = arith.constant 1.000000e+00 : f32
    %198 = vector.broadcast %cst_37 : f32 to vector<8x128xf32>
    %199 = arith.addf %198, %197 : vector<8x128xf32>
    %200 = arith.divf %198, %199 : vector<8x128xf32>
    %201 = vector.extract_strided_slice %183 {offsets = [0, 256], sizes = [8, 128], strides = [1, 1]} : vector<8x384xf32> to vector<8x128xf32>
    %202 = vector.extract_strided_slice %184 {offsets = [0, 256], sizes = [8, 128], strides = [1, 1]} : vector<8x384xf32> to vector<8x128xf32>
    %203 = vector.broadcast %4 : vector<1x128xf32> to vector<8x128xf32>
    %204 = arith.addf %202, %203 : vector<8x128xf32>
    %205 = arith.mulf %192, %204 : vector<8x128xf32>
    %206 = arith.addf %201, %205 : vector<8x128xf32>
    %207 = math.tanh %206 : vector<8x128xf32>
    %208 = arith.subf %181, %207 : vector<8x128xf32>
    %209 = arith.mulf %200, %208 : vector<8x128xf32>
    %210 = arith.addf %207, %209 : vector<8x128xf32>
    %c48 = arith.constant 48 : index
    %c0_38 = arith.constant 0 : index
    %211 = vector.load %arg12[%c48, %c0_38] : memref<64x128xf32, #tpu.memory_space<vmem>>, vector<8x128xf32>
    tpu.vector_store %arg12[%c48, %c0_38], %210 {strides = array<i32>} : memref<64x128xf32, #tpu.memory_space<vmem>>, vector<8x128xf32>,
    %212 = vector.extract_strided_slice %7 {offsets = [56, 0], sizes = [8, 384], strides = [1, 1]} : vector<64x384xf32> to vector<8x384xf32>
    %cst_39 = arith.constant dense<0.000000e+00> : vector<8x384xf32>
    %213 = tpu.matmul %210, %2, %cst_39 {dimension_numbers = #tpu.dot_dimension_numbers<[1], [0], [0], [1], [0, 0, 1, 1], [], []>} : vector<8x128xf32>, vector<128x384xf32>, vector<8x384xf32> -> vector<8x384xf32>
    %214 = vector.extract_strided_slice %212 {offsets = [0, 0], sizes = [8, 128], strides = [1, 1]} : vector<8x384xf32> to vector<8x128xf32>
    %215 = vector.extract_strided_slice %213 {offsets = [0, 0], sizes = [8, 128], strides = [1, 1]} : vector<8x384xf32> to vector<8x128xf32>
    %216 = arith.addf %214, %215 : vector<8x128xf32>
    %217 = arith.negf %216 : vector<8x128xf32>
    %218 = math.exp %217 : vector<8x128xf32>
    %cst_40 = arith.constant 1.000000e+00 : f32
    %219 = vector.broadcast %cst_40 : f32 to vector<8x128xf32>
    %220 = arith.addf %219, %218 : vector<8x128xf32>
    %221 = arith.divf %219, %220 : vector<8x128xf32>
    %222 = vector.extract_strided_slice %212 {offsets = [0, 128], sizes = [8, 128], strides = [1, 1]} : vector<8x384xf32> to vector<8x128xf32>
    %223 = vector.extract_strided_slice %213 {offsets = [0, 128], sizes = [8, 128], strides = [1, 1]} : vector<8x384xf32> to vector<8x128xf32>
    %224 = arith.addf %222, %223 : vector<8x128xf32>
    %225 = arith.negf %224 : vector<8x128xf32>
    %226 = math.exp %225 : vector<8x128xf32>
    %cst_41 = arith.constant 1.000000e+00 : f32
    %227 = vector.broadcast %cst_41 : f32 to vector<8x128xf32>
    %228 = arith.addf %227, %226 : vector<8x128xf32>
    %229 = arith.divf %227, %228 : vector<8x128xf32>
    %230 = vector.extract_strided_slice %212 {offsets = [0, 256], sizes = [8, 128], strides = [1, 1]} : vector<8x384xf32> to vector<8x128xf32>
    %231 = vector.extract_strided_slice %213 {offsets = [0, 256], sizes = [8, 128], strides = [1, 1]} : vector<8x384xf32> to vector<8x128xf32>
    %232 = vector.broadcast %4 : vector<1x128xf32> to vector<8x128xf32>
    %233 = arith.addf %231, %232 : vector<8x128xf32>
    %234 = arith.mulf %221, %233 : vector<8x128xf32>
    %235 = arith.addf %230, %234 : vector<8x128xf32>
    %236 = math.tanh %235 : vector<8x128xf32>
    %237 = arith.subf %210, %236 : vector<8x128xf32>
    %238 = arith.mulf %229, %237 : vector<8x128xf32>
    %239 = arith.addf %236, %238 : vector<8x128xf32>
    %c56 = arith.constant 56 : index
    %c0_42 = arith.constant 0 : index
    %240 = vector.load %arg12[%c56, %c0_42] : memref<64x128xf32, #tpu.memory_space<vmem>>, vector<8x128xf32>
    tpu.vector_store %arg12[%c56, %c0_42], %239 {strides = array<i32>} : memref<64x128xf32, #tpu.memory_space<vmem>>, vector<8x128xf32>,
    %c0_43 = arith.constant 0 : index
    %c0_44 = arith.constant 0 : index
    %241 = vector.load %arg12[%c0_43, %c0_44] : memref<64x128xf32, #tpu.memory_space<vmem>>, vector<64x128xf32>
    %c0_45 = arith.constant 0 : index
    %c0_46 = arith.constant 0 : index
    %242 = vector.load %arg5[%c0_45, %c0_46] : memref<128x384xf32, #tpu.memory_space<vmem>>, vector<128x384xf32>
    %c0_47 = arith.constant 0 : index
    %c0_48 = arith.constant 0 : index
    %243 = vector.load %arg6[%c0_47, %c0_48] : memref<128x384xf32, #tpu.memory_space<vmem>>, vector<128x384xf32>
    %c0_49 = arith.constant 0 : index
    %c0_50 = arith.constant 0 : index
    %244 = vector.load %arg7[%c0_49, %c0_50] : memref<1x384xf32, #tpu.memory_space<vmem>>, vector<1x384xf32>
    %c0_51 = arith.constant 0 : index
    %c0_52 = arith.constant 0 : index
    %245 = vector.load %arg8[%c0_51, %c0_52] : memref<1x128xf32, #tpu.memory_space<vmem>>, vector<1x128xf32>
    %cst_53 = arith.constant dense<0.000000e+00> : vector<64x384xf32>
    %246 = tpu.matmul %241, %242, %cst_53 {dimension_numbers = #tpu.dot_dimension_numbers<[1], [0], [0], [1], [0, 0, 1, 1], [], []>} : vector<64x128xf32>, vector<128x384xf32>, vector<64x384xf32> -> vector<64x384xf32>
    %247 = vector.broadcast %244 : vector<1x384xf32> to vector<64x384xf32>
    %248 = arith.addf %246, %247 : vector<64x384xf32>
    %cst_54 = arith.constant 0.000000e+00 : f32
    %249 = vector.broadcast %cst_54 : f32 to vector<8x128xf32>
    %250 = vector.extract_strided_slice %248 {offsets = [0, 0], sizes = [8, 384], strides = [1, 1]} : vector<64x384xf32> to vector<8x384xf32>
    %cst_55 = arith.constant dense<0.000000e+00> : vector<8x384xf32>
    %251 = tpu.matmul %249, %243, %cst_55 {dimension_numbers = #tpu.dot_dimension_numbers<[1], [0], [0], [1], [0, 0, 1, 1], [], []>} : vector<8x128xf32>, vector<128x384xf32>, vector<8x384xf32> -> vector<8x384xf32>
    %252 = vector.extract_strided_slice %250 {offsets = [0, 0], sizes = [8, 128], strides = [1, 1]} : vector<8x384xf32> to vector<8x128xf32>
    %253 = vector.extract_strided_slice %251 {offsets = [0, 0], sizes = [8, 128], strides = [1, 1]} : vector<8x384xf32> to vector<8x128xf32>
    %254 = arith.addf %252, %253 : vector<8x128xf32>
    %255 = arith.negf %254 : vector<8x128xf32>
    %256 = math.exp %255 : vector<8x128xf32>
    %cst_56 = arith.constant 1.000000e+00 : f32
    %257 = vector.broadcast %cst_56 : f32 to vector<8x128xf32>
    %258 = arith.addf %257, %256 : vector<8x128xf32>
    %259 = arith.divf %257, %258 : vector<8x128xf32>
    %260 = vector.extract_strided_slice %250 {offsets = [0, 128], sizes = [8, 128], strides = [1, 1]} : vector<8x384xf32> to vector<8x128xf32>
    %261 = vector.extract_strided_slice %251 {offsets = [0, 128], sizes = [8, 128], strides = [1, 1]} : vector<8x384xf32> to vector<8x128xf32>
    %262 = arith.addf %260, %261 : vector<8x128xf32>
    %263 = arith.negf %262 : vector<8x128xf32>
    %264 = math.exp %263 : vector<8x128xf32>
    %cst_57 = arith.constant 1.000000e+00 : f32
    %265 = vector.broadcast %cst_57 : f32 to vector<8x128xf32>
    %266 = arith.addf %265, %264 : vector<8x128xf32>
    %267 = arith.divf %265, %266 : vector<8x128xf32>
    %268 = vector.extract_strided_slice %250 {offsets = [0, 256], sizes = [8, 128], strides = [1, 1]} : vector<8x384xf32> to vector<8x128xf32>
    %269 = vector.extract_strided_slice %251 {offsets = [0, 256], sizes = [8, 128], strides = [1, 1]} : vector<8x384xf32> to vector<8x128xf32>
    %270 = vector.broadcast %245 : vector<1x128xf32> to vector<8x128xf32>
    %271 = arith.addf %269, %270 : vector<8x128xf32>
    %272 = arith.mulf %259, %271 : vector<8x128xf32>
    %273 = arith.addf %268, %272 : vector<8x128xf32>
    %274 = math.tanh %273 : vector<8x128xf32>
    %275 = arith.subf %249, %274 : vector<8x128xf32>
    %276 = arith.mulf %267, %275 : vector<8x128xf32>
    %277 = arith.addf %274, %276 : vector<8x128xf32>
    %278 = vector.extract_strided_slice %248 {offsets = [8, 0], sizes = [8, 384], strides = [1, 1]} : vector<64x384xf32> to vector<8x384xf32>
    %cst_58 = arith.constant dense<0.000000e+00> : vector<8x384xf32>
    %279 = tpu.matmul %277, %243, %cst_58 {dimension_numbers = #tpu.dot_dimension_numbers<[1], [0], [0], [1], [0, 0, 1, 1], [], []>} : vector<8x128xf32>, vector<128x384xf32>, vector<8x384xf32> -> vector<8x384xf32>
    %280 = vector.extract_strided_slice %278 {offsets = [0, 0], sizes = [8, 128], strides = [1, 1]} : vector<8x384xf32> to vector<8x128xf32>
    %281 = vector.extract_strided_slice %279 {offsets = [0, 0], sizes = [8, 128], strides = [1, 1]} : vector<8x384xf32> to vector<8x128xf32>
    %282 = arith.addf %280, %281 : vector<8x128xf32>
    %283 = arith.negf %282 : vector<8x128xf32>
    %284 = math.exp %283 : vector<8x128xf32>
    %cst_59 = arith.constant 1.000000e+00 : f32
    %285 = vector.broadcast %cst_59 : f32 to vector<8x128xf32>
    %286 = arith.addf %285, %284 : vector<8x128xf32>
    %287 = arith.divf %285, %286 : vector<8x128xf32>
    %288 = vector.extract_strided_slice %278 {offsets = [0, 128], sizes = [8, 128], strides = [1, 1]} : vector<8x384xf32> to vector<8x128xf32>
    %289 = vector.extract_strided_slice %279 {offsets = [0, 128], sizes = [8, 128], strides = [1, 1]} : vector<8x384xf32> to vector<8x128xf32>
    %290 = arith.addf %288, %289 : vector<8x128xf32>
    %291 = arith.negf %290 : vector<8x128xf32>
    %292 = math.exp %291 : vector<8x128xf32>
    %cst_60 = arith.constant 1.000000e+00 : f32
    %293 = vector.broadcast %cst_60 : f32 to vector<8x128xf32>
    %294 = arith.addf %293, %292 : vector<8x128xf32>
    %295 = arith.divf %293, %294 : vector<8x128xf32>
    %296 = vector.extract_strided_slice %278 {offsets = [0, 256], sizes = [8, 128], strides = [1, 1]} : vector<8x384xf32> to vector<8x128xf32>
    %297 = vector.extract_strided_slice %279 {offsets = [0, 256], sizes = [8, 128], strides = [1, 1]} : vector<8x384xf32> to vector<8x128xf32>
    %298 = vector.broadcast %245 : vector<1x128xf32> to vector<8x128xf32>
    %299 = arith.addf %297, %298 : vector<8x128xf32>
    %300 = arith.mulf %287, %299 : vector<8x128xf32>
    %301 = arith.addf %296, %300 : vector<8x128xf32>
    %302 = math.tanh %301 : vector<8x128xf32>
    %303 = arith.subf %277, %302 : vector<8x128xf32>
    %304 = arith.mulf %295, %303 : vector<8x128xf32>
    %305 = arith.addf %302, %304 : vector<8x128xf32>
    %306 = vector.extract_strided_slice %248 {offsets = [16, 0], sizes = [8, 384], strides = [1, 1]} : vector<64x384xf32> to vector<8x384xf32>
    %cst_61 = arith.constant dense<0.000000e+00> : vector<8x384xf32>
    %307 = tpu.matmul %305, %243, %cst_61 {dimension_numbers = #tpu.dot_dimension_numbers<[1], [0], [0], [1], [0, 0, 1, 1], [], []>} : vector<8x128xf32>, vector<128x384xf32>, vector<8x384xf32> -> vector<8x384xf32>
    %308 = vector.extract_strided_slice %306 {offsets = [0, 0], sizes = [8, 128], strides = [1, 1]} : vector<8x384xf32> to vector<8x128xf32>
    %309 = vector.extract_strided_slice %307 {offsets = [0, 0], sizes = [8, 128], strides = [1, 1]} : vector<8x384xf32> to vector<8x128xf32>
    %310 = arith.addf %308, %309 : vector<8x128xf32>
    %311 = arith.negf %310 : vector<8x128xf32>
    %312 = math.exp %311 : vector<8x128xf32>
    %cst_62 = arith.constant 1.000000e+00 : f32
    %313 = vector.broadcast %cst_62 : f32 to vector<8x128xf32>
    %314 = arith.addf %313, %312 : vector<8x128xf32>
    %315 = arith.divf %313, %314 : vector<8x128xf32>
    %316 = vector.extract_strided_slice %306 {offsets = [0, 128], sizes = [8, 128], strides = [1, 1]} : vector<8x384xf32> to vector<8x128xf32>
    %317 = vector.extract_strided_slice %307 {offsets = [0, 128], sizes = [8, 128], strides = [1, 1]} : vector<8x384xf32> to vector<8x128xf32>
    %318 = arith.addf %316, %317 : vector<8x128xf32>
    %319 = arith.negf %318 : vector<8x128xf32>
    %320 = math.exp %319 : vector<8x128xf32>
    %cst_63 = arith.constant 1.000000e+00 : f32
    %321 = vector.broadcast %cst_63 : f32 to vector<8x128xf32>
    %322 = arith.addf %321, %320 : vector<8x128xf32>
    %323 = arith.divf %321, %322 : vector<8x128xf32>
    %324 = vector.extract_strided_slice %306 {offsets = [0, 256], sizes = [8, 128], strides = [1, 1]} : vector<8x384xf32> to vector<8x128xf32>
    %325 = vector.extract_strided_slice %307 {offsets = [0, 256], sizes = [8, 128], strides = [1, 1]} : vector<8x384xf32> to vector<8x128xf32>
    %326 = vector.broadcast %245 : vector<1x128xf32> to vector<8x128xf32>
    %327 = arith.addf %325, %326 : vector<8x128xf32>
    %328 = arith.mulf %315, %327 : vector<8x128xf32>
    %329 = arith.addf %324, %328 : vector<8x128xf32>
    %330 = math.tanh %329 : vector<8x128xf32>
    %331 = arith.subf %305, %330 : vector<8x128xf32>
    %332 = arith.mulf %323, %331 : vector<8x128xf32>
    %333 = arith.addf %330, %332 : vector<8x128xf32>
    %334 = vector.extract_strided_slice %248 {offsets = [24, 0], sizes = [8, 384], strides = [1, 1]} : vector<64x384xf32> to vector<8x384xf32>
    %cst_64 = arith.constant dense<0.000000e+00> : vector<8x384xf32>
    %335 = tpu.matmul %333, %243, %cst_64 {dimension_numbers = #tpu.dot_dimension_numbers<[1], [0], [0], [1], [0, 0, 1, 1], [], []>} : vector<8x128xf32>, vector<128x384xf32>, vector<8x384xf32> -> vector<8x384xf32>
    %336 = vector.extract_strided_slice %334 {offsets = [0, 0], sizes = [8, 128], strides = [1, 1]} : vector<8x384xf32> to vector<8x128xf32>
    %337 = vector.extract_strided_slice %335 {offsets = [0, 0], sizes = [8, 128], strides = [1, 1]} : vector<8x384xf32> to vector<8x128xf32>
    %338 = arith.addf %336, %337 : vector<8x128xf32>
    %339 = arith.negf %338 : vector<8x128xf32>
    %340 = math.exp %339 : vector<8x128xf32>
    %cst_65 = arith.constant 1.000000e+00 : f32
    %341 = vector.broadcast %cst_65 : f32 to vector<8x128xf32>
    %342 = arith.addf %341, %340 : vector<8x128xf32>
    %343 = arith.divf %341, %342 : vector<8x128xf32>
    %344 = vector.extract_strided_slice %334 {offsets = [0, 128], sizes = [8, 128], strides = [1, 1]} : vector<8x384xf32> to vector<8x128xf32>
    %345 = vector.extract_strided_slice %335 {offsets = [0, 128], sizes = [8, 128], strides = [1, 1]} : vector<8x384xf32> to vector<8x128xf32>
    %346 = arith.addf %344, %345 : vector<8x128xf32>
    %347 = arith.negf %346 : vector<8x128xf32>
    %348 = math.exp %347 : vector<8x128xf32>
    %cst_66 = arith.constant 1.000000e+00 : f32
    %349 = vector.broadcast %cst_66 : f32 to vector<8x128xf32>
    %350 = arith.addf %349, %348 : vector<8x128xf32>
    %351 = arith.divf %349, %350 : vector<8x128xf32>
    %352 = vector.extract_strided_slice %334 {offsets = [0, 256], sizes = [8, 128], strides = [1, 1]} : vector<8x384xf32> to vector<8x128xf32>
    %353 = vector.extract_strided_slice %335 {offsets = [0, 256], sizes = [8, 128], strides = [1, 1]} : vector<8x384xf32> to vector<8x128xf32>
    %354 = vector.broadcast %245 : vector<1x128xf32> to vector<8x128xf32>
    %355 = arith.addf %353, %354 : vector<8x128xf32>
    %356 = arith.mulf %343, %355 : vector<8x128xf32>
    %357 = arith.addf %352, %356 : vector<8x128xf32>
    %358 = math.tanh %357 : vector<8x128xf32>
    %359 = arith.subf %333, %358 : vector<8x128xf32>
    %360 = arith.mulf %351, %359 : vector<8x128xf32>
    %361 = arith.addf %358, %360 : vector<8x128xf32>
    %362 = vector.extract_strided_slice %248 {offsets = [32, 0], sizes = [8, 384], strides = [1, 1]} : vector<64x384xf32> to vector<8x384xf32>
    %cst_67 = arith.constant dense<0.000000e+00> : vector<8x384xf32>
    %363 = tpu.matmul %361, %243, %cst_67 {dimension_numbers = #tpu.dot_dimension_numbers<[1], [0], [0], [1], [0, 0, 1, 1], [], []>} : vector<8x128xf32>, vector<128x384xf32>, vector<8x384xf32> -> vector<8x384xf32>
    %364 = vector.extract_strided_slice %362 {offsets = [0, 0], sizes = [8, 128], strides = [1, 1]} : vector<8x384xf32> to vector<8x128xf32>
    %365 = vector.extract_strided_slice %363 {offsets = [0, 0], sizes = [8, 128], strides = [1, 1]} : vector<8x384xf32> to vector<8x128xf32>
    %366 = arith.addf %364, %365 : vector<8x128xf32>
    %367 = arith.negf %366 : vector<8x128xf32>
    %368 = math.exp %367 : vector<8x128xf32>
    %cst_68 = arith.constant 1.000000e+00 : f32
    %369 = vector.broadcast %cst_68 : f32 to vector<8x128xf32>
    %370 = arith.addf %369, %368 : vector<8x128xf32>
    %371 = arith.divf %369, %370 : vector<8x128xf32>
    %372 = vector.extract_strided_slice %362 {offsets = [0, 128], sizes = [8, 128], strides = [1, 1]} : vector<8x384xf32> to vector<8x128xf32>
    %373 = vector.extract_strided_slice %363 {offsets = [0, 128], sizes = [8, 128], strides = [1, 1]} : vector<8x384xf32> to vector<8x128xf32>
    %374 = arith.addf %372, %373 : vector<8x128xf32>
    %375 = arith.negf %374 : vector<8x128xf32>
    %376 = math.exp %375 : vector<8x128xf32>
    %cst_69 = arith.constant 1.000000e+00 : f32
    %377 = vector.broadcast %cst_69 : f32 to vector<8x128xf32>
    %378 = arith.addf %377, %376 : vector<8x128xf32>
    %379 = arith.divf %377, %378 : vector<8x128xf32>
    %380 = vector.extract_strided_slice %362 {offsets = [0, 256], sizes = [8, 128], strides = [1, 1]} : vector<8x384xf32> to vector<8x128xf32>
    %381 = vector.extract_strided_slice %363 {offsets = [0, 256], sizes = [8, 128], strides = [1, 1]} : vector<8x384xf32> to vector<8x128xf32>
    %382 = vector.broadcast %245 : vector<1x128xf32> to vector<8x128xf32>
    %383 = arith.addf %381, %382 : vector<8x128xf32>
    %384 = arith.mulf %371, %383 : vector<8x128xf32>
    %385 = arith.addf %380, %384 : vector<8x128xf32>
    %386 = math.tanh %385 : vector<8x128xf32>
    %387 = arith.subf %361, %386 : vector<8x128xf32>
    %388 = arith.mulf %379, %387 : vector<8x128xf32>
    %389 = arith.addf %386, %388 : vector<8x128xf32>
    %390 = vector.extract_strided_slice %248 {offsets = [40, 0], sizes = [8, 384], strides = [1, 1]} : vector<64x384xf32> to vector<8x384xf32>
    %cst_70 = arith.constant dense<0.000000e+00> : vector<8x384xf32>
    %391 = tpu.matmul %389, %243, %cst_70 {dimension_numbers = #tpu.dot_dimension_numbers<[1], [0], [0], [1], [0, 0, 1, 1], [], []>} : vector<8x128xf32>, vector<128x384xf32>, vector<8x384xf32> -> vector<8x384xf32>
    %392 = vector.extract_strided_slice %390 {offsets = [0, 0], sizes = [8, 128], strides = [1, 1]} : vector<8x384xf32> to vector<8x128xf32>
    %393 = vector.extract_strided_slice %391 {offsets = [0, 0], sizes = [8, 128], strides = [1, 1]} : vector<8x384xf32> to vector<8x128xf32>
    %394 = arith.addf %392, %393 : vector<8x128xf32>
    %395 = arith.negf %394 : vector<8x128xf32>
    %396 = math.exp %395 : vector<8x128xf32>
    %cst_71 = arith.constant 1.000000e+00 : f32
    %397 = vector.broadcast %cst_71 : f32 to vector<8x128xf32>
    %398 = arith.addf %397, %396 : vector<8x128xf32>
    %399 = arith.divf %397, %398 : vector<8x128xf32>
    %400 = vector.extract_strided_slice %390 {offsets = [0, 128], sizes = [8, 128], strides = [1, 1]} : vector<8x384xf32> to vector<8x128xf32>
    %401 = vector.extract_strided_slice %391 {offsets = [0, 128], sizes = [8, 128], strides = [1, 1]} : vector<8x384xf32> to vector<8x128xf32>
    %402 = arith.addf %400, %401 : vector<8x128xf32>
    %403 = arith.negf %402 : vector<8x128xf32>
    %404 = math.exp %403 : vector<8x128xf32>
    %cst_72 = arith.constant 1.000000e+00 : f32
    %405 = vector.broadcast %cst_72 : f32 to vector<8x128xf32>
    %406 = arith.addf %405, %404 : vector<8x128xf32>
    %407 = arith.divf %405, %406 : vector<8x128xf32>
    %408 = vector.extract_strided_slice %390 {offsets = [0, 256], sizes = [8, 128], strides = [1, 1]} : vector<8x384xf32> to vector<8x128xf32>
    %409 = vector.extract_strided_slice %391 {offsets = [0, 256], sizes = [8, 128], strides = [1, 1]} : vector<8x384xf32> to vector<8x128xf32>
    %410 = vector.broadcast %245 : vector<1x128xf32> to vector<8x128xf32>
    %411 = arith.addf %409, %410 : vector<8x128xf32>
    %412 = arith.mulf %399, %411 : vector<8x128xf32>
    %413 = arith.addf %408, %412 : vector<8x128xf32>
    %414 = math.tanh %413 : vector<8x128xf32>
    %415 = arith.subf %389, %414 : vector<8x128xf32>
    %416 = arith.mulf %407, %415 : vector<8x128xf32>
    %417 = arith.addf %414, %416 : vector<8x128xf32>
    %418 = vector.extract_strided_slice %248 {offsets = [48, 0], sizes = [8, 384], strides = [1, 1]} : vector<64x384xf32> to vector<8x384xf32>
    %cst_73 = arith.constant dense<0.000000e+00> : vector<8x384xf32>
    %419 = tpu.matmul %417, %243, %cst_73 {dimension_numbers = #tpu.dot_dimension_numbers<[1], [0], [0], [1], [0, 0, 1, 1], [], []>} : vector<8x128xf32>, vector<128x384xf32>, vector<8x384xf32> -> vector<8x384xf32>
    %420 = vector.extract_strided_slice %418 {offsets = [0, 0], sizes = [8, 128], strides = [1, 1]} : vector<8x384xf32> to vector<8x128xf32>
    %421 = vector.extract_strided_slice %419 {offsets = [0, 0], sizes = [8, 128], strides = [1, 1]} : vector<8x384xf32> to vector<8x128xf32>
    %422 = arith.addf %420, %421 : vector<8x128xf32>
    %423 = arith.negf %422 : vector<8x128xf32>
    %424 = math.exp %423 : vector<8x128xf32>
    %cst_74 = arith.constant 1.000000e+00 : f32
    %425 = vector.broadcast %cst_74 : f32 to vector<8x128xf32>
    %426 = arith.addf %425, %424 : vector<8x128xf32>
    %427 = arith.divf %425, %426 : vector<8x128xf32>
    %428 = vector.extract_strided_slice %418 {offsets = [0, 128], sizes = [8, 128], strides = [1, 1]} : vector<8x384xf32> to vector<8x128xf32>
    %429 = vector.extract_strided_slice %419 {offsets = [0, 128], sizes = [8, 128], strides = [1, 1]} : vector<8x384xf32> to vector<8x128xf32>
    %430 = arith.addf %428, %429 : vector<8x128xf32>
    %431 = arith.negf %430 : vector<8x128xf32>
    %432 = math.exp %431 : vector<8x128xf32>
    %cst_75 = arith.constant 1.000000e+00 : f32
    %433 = vector.broadcast %cst_75 : f32 to vector<8x128xf32>
    %434 = arith.addf %433, %432 : vector<8x128xf32>
    %435 = arith.divf %433, %434 : vector<8x128xf32>
    %436 = vector.extract_strided_slice %418 {offsets = [0, 256], sizes = [8, 128], strides = [1, 1]} : vector<8x384xf32> to vector<8x128xf32>
    %437 = vector.extract_strided_slice %419 {offsets = [0, 256], sizes = [8, 128], strides = [1, 1]} : vector<8x384xf32> to vector<8x128xf32>
    %438 = vector.broadcast %245 : vector<1x128xf32> to vector<8x128xf32>
    %439 = arith.addf %437, %438 : vector<8x128xf32>
    %440 = arith.mulf %427, %439 : vector<8x128xf32>
    %441 = arith.addf %436, %440 : vector<8x128xf32>
    %442 = math.tanh %441 : vector<8x128xf32>
    %443 = arith.subf %417, %442 : vector<8x128xf32>
    %444 = arith.mulf %435, %443 : vector<8x128xf32>
    %445 = arith.addf %442, %444 : vector<8x128xf32>
    %446 = vector.extract_strided_slice %248 {offsets = [56, 0], sizes = [8, 384], strides = [1, 1]} : vector<64x384xf32> to vector<8x384xf32>
    %cst_76 = arith.constant dense<0.000000e+00> : vector<8x384xf32>
    %447 = tpu.matmul %445, %243, %cst_76 {dimension_numbers = #tpu.dot_dimension_numbers<[1], [0], [0], [1], [0, 0, 1, 1], [], []>} : vector<8x128xf32>, vector<128x384xf32>, vector<8x384xf32> -> vector<8x384xf32>
    %448 = vector.extract_strided_slice %446 {offsets = [0, 0], sizes = [8, 128], strides = [1, 1]} : vector<8x384xf32> to vector<8x128xf32>
    %449 = vector.extract_strided_slice %447 {offsets = [0, 0], sizes = [8, 128], strides = [1, 1]} : vector<8x384xf32> to vector<8x128xf32>
    %450 = arith.addf %448, %449 : vector<8x128xf32>
    %451 = arith.negf %450 : vector<8x128xf32>
    %452 = math.exp %451 : vector<8x128xf32>
    %cst_77 = arith.constant 1.000000e+00 : f32
    %453 = vector.broadcast %cst_77 : f32 to vector<8x128xf32>
    %454 = arith.addf %453, %452 : vector<8x128xf32>
    %455 = arith.divf %453, %454 : vector<8x128xf32>
    %456 = vector.extract_strided_slice %446 {offsets = [0, 128], sizes = [8, 128], strides = [1, 1]} : vector<8x384xf32> to vector<8x128xf32>
    %457 = vector.extract_strided_slice %447 {offsets = [0, 128], sizes = [8, 128], strides = [1, 1]} : vector<8x384xf32> to vector<8x128xf32>
    %458 = arith.addf %456, %457 : vector<8x128xf32>
    %459 = arith.negf %458 : vector<8x128xf32>
    %460 = math.exp %459 : vector<8x128xf32>
    %cst_78 = arith.constant 1.000000e+00 : f32
    %461 = vector.broadcast %cst_78 : f32 to vector<8x128xf32>
    %462 = arith.addf %461, %460 : vector<8x128xf32>
    %463 = arith.divf %461, %462 : vector<8x128xf32>
    %464 = vector.extract_strided_slice %446 {offsets = [0, 256], sizes = [8, 128], strides = [1, 1]} : vector<8x384xf32> to vector<8x128xf32>
    %465 = vector.extract_strided_slice %447 {offsets = [0, 256], sizes = [8, 128], strides = [1, 1]} : vector<8x384xf32> to vector<8x128xf32>
    %466 = vector.broadcast %245 : vector<1x128xf32> to vector<8x128xf32>
    %467 = arith.addf %465, %466 : vector<8x128xf32>
    %468 = arith.mulf %455, %467 : vector<8x128xf32>
    %469 = arith.addf %464, %468 : vector<8x128xf32>
    %470 = math.tanh %469 : vector<8x128xf32>
    %471 = arith.subf %445, %470 : vector<8x128xf32>
    %472 = arith.mulf %463, %471 : vector<8x128xf32>
    %473 = arith.addf %470, %472 : vector<8x128xf32>
    %c0_79 = arith.constant 0 : index
    %c0_80 = arith.constant 0 : index
    %474 = vector.load %arg9[%c0_79, %c0_80] : memref<128x128xf32, #tpu.memory_space<vmem>>, vector<128x128xf32>
    %c0_81 = arith.constant 0 : index
    %c0_82 = arith.constant 0 : index
    %475 = vector.load %arg10[%c0_81, %c0_82] : memref<1x128xf32, #tpu.memory_space<vmem>>, vector<1x128xf32>
    %cst_83 = arith.constant dense<0.000000e+00> : vector<8x128xf32>
    %476 = tpu.matmul %473, %474, %cst_83 {dimension_numbers = #tpu.dot_dimension_numbers<[1], [0], [0], [1], [0, 0, 1, 1], [], []>} : vector<8x128xf32>, vector<128x128xf32>, vector<8x128xf32> -> vector<8x128xf32>
    %477 = vector.broadcast %475 : vector<1x128xf32> to vector<8x128xf32>
    %478 = arith.addf %476, %477 : vector<8x128xf32>
    %c0_84 = arith.constant 0 : index
    %c0_85 = arith.constant 0 : index
    %479 = vector.load %arg11[%c0_84, %c0_85] : memref<8x128xf32, #tpu.memory_space<vmem>>, vector<8x128xf32>
    tpu.vector_store %arg11[%c0_84, %c0_85], %478 {strides = array<i32>} : memref<8x128xf32, #tpu.memory_space<vmem>>, vector<8x128xf32>,
    return
  }
}

</mosaic_0001>

<llo_original>
// kernel: rnn_gru_forward.1
$region0: #{rnn_gru_forward.1}
  #allocation0 [shape = 'u32[]', space=smem, size = 0x4, offset = 0x4, fixed_abs, tag = 'smem constant byte address 0x4 - core index']
  #allocation1 [shape = 'u32[72,128]{1,0:T(1,128)}', space=vmem, size = 0x9000, scoped, tag = 'internal scratch']
  #allocation2 [shape = 'f32[64,128]{1,0:T(8,128)}', space=vmem, size = 0x8000, scoped, tag = 'scratch operand']
  %s0 = inlined_call_operand.vmem [shape: f32[64,512], index: 0, kind: input, shape index: {}]
  %s1 = inlined_call_operand.vmem [shape: f32[512,384], index: 1, kind: input, shape index: {}]
  %s2 = inlined_call_operand.vmem [shape: f32[128,384], index: 2, kind: input, shape index: {}]
  %s3 = inlined_call_operand.vmem [shape: f32[1,384], index: 3, kind: input, shape index: {}]
  %s4 = inlined_call_operand.vmem [shape: f32[1,128], index: 4, kind: input, shape index: {}]
  %s5 = inlined_call_operand.vmem [shape: f32[128,384], index: 5, kind: input, shape index: {}]
  %s6 = inlined_call_operand.vmem [shape: f32[128,384], index: 6, kind: input, shape index: {}]
  %s7 = inlined_call_operand.vmem [shape: f32[1,384], index: 7, kind: input, shape index: {}]
  %s8 = inlined_call_operand.vmem [shape: f32[1,128], index: 8, kind: input, shape index: {}]
  %s9 = inlined_call_operand.vmem [shape: f32[128,128], index: 9, kind: input, shape index: {}]
  %s10 = inlined_call_operand.vmem [shape: f32[1,128], index: 10, kind: input, shape index: {}]
  %s11 = inlined_call_operand.vmem [shape: f32[8,128], index: 11, kind: output, shape index: {}]
  %s12 = sld [smem:[#allocation0]]
  $region54: #{rnn_gru_forward.1} parent=0
    _
  %s14 = ssub.s32 1, %s12
  %s15 = scalar_select 0, %s14, %s12
  // Predicated region
  $region2: #{rnn_gru_forward.1} parent=0 // pred_check
    _
  $region3: #{rnn_gru_forward.1} parent=0 // pred_check_branch
    %17 = sbr.rel (0) target = $region5
  $region4: #{rnn_gru_forward.1} parent=0 // pred_region
    _
  $region5: #{rnn_gru_forward.1} parent=0 // pred_fallthru
    _
  // Predicated region
  $region6: #{rnn_gru_forward.1} parent=0 // pred_check
    _
  $region7: #{rnn_gru_forward.1} parent=0 // pred_check_branch
    %19 = sbr.rel (0) target = $region9
  $region8: #{rnn_gru_forward.1} parent=0 // pred_region
    _
  $region9: #{rnn_gru_forward.1} parent=0 // pred_fallthru
    _
  // Predicated region
  $region10: #{rnn_gru_forward.1} parent=0 // pred_check
    _
  $region11: #{rnn_gru_forward.1} parent=0 // pred_check_branch
    %21 = sbr.rel (0) target = $region13
  $region12: #{rnn_gru_forward.1} parent=0 // pred_region
    _
  $region13: #{rnn_gru_forward.1} parent=0 // pred_fallthru
    _
  // Predicated region
  $region14: #{rnn_gru_forward.1} parent=0 // pred_check
    _
  $region15: #{rnn_gru_forward.1} parent=0 // pred_check_branch
    %23 = sbr.rel (0) target = $region17
  $region16: #{rnn_gru_forward.1} parent=0 // pred_region
    _
  $region17: #{rnn_gru_forward.1} parent=0 // pred_fallthru
    _
  // Predicated region
  $region18: #{rnn_gru_forward.1} parent=0 // pred_check
    _
  $region19: #{rnn_gru_forward.1} parent=0 // pred_check_branch
    %25 = sbr.rel (0) target = $region21
  $region20: #{rnn_gru_forward.1} parent=0 // pred_region
    _
  $region21: #{rnn_gru_forward.1} parent=0 // pred_fallthru
    _
  // Predicated region
  $region22: #{rnn_gru_forward.1} parent=0 // pred_check
    _
  $region23: #{rnn_gru_forward.1} parent=0 // pred_check_branch
    %27 = sbr.rel (0) target = $region25
  $region24: #{rnn_gru_forward.1} parent=0 // pred_region
    _
  $region25: #{rnn_gru_forward.1} parent=0 // pred_fallthru
    _
  // Predicated region
  $region26: #{rnn_gru_forward.1} parent=0 // pred_check
    _
  $region27: #{rnn_gru_forward.1} parent=0 // pred_check_branch
    %29 = sbr.rel (0) target = $region29
  $region28: #{rnn_gru_forward.1} parent=0 // pred_region
    _
  $region29: #{rnn_gru_forward.1} parent=0 // pred_fallthru
    _
  // Predicated region
  $region30: #{rnn_gru_forward.1} parent=0 // pred_check
    _
  $region31: #{rnn_gru_forward.1} parent=0 // pred_check_branch
    %31 = sbr.rel (0) target = $region33
  $region32: #{rnn_gru_forward.1} parent=0 // pred_region
    _
  $region33: #{rnn_gru_forward.1} parent=0 // pred_fallthru
    _
  // Predicated region
  $region34: #{rnn_gru_forward.1} parent=0 // pred_check
    _
  $region35: #{rnn_gru_forward.1} parent=0 // pred_check_branch
    %33 = sbr.rel (0) target = $region37
  $region36: #{rnn_gru_forward.1} parent=0 // pred_region
    _
  $region37: #{rnn_gru_forward.1} parent=0 // pred_fallthru
    _
  // Predicated region
  $region38: #{rnn_gru_forward.1} parent=0 // pred_check
    _
  $region39: #{rnn_gru_forward.1} parent=0 // pred_check_branch
    %35 = sbr.rel (0) target = $region41
  $region40: #{rnn_gru_forward.1} parent=0 // pred_region
    _
  $region41: #{rnn_gru_forward.1} parent=0 // pred_fallthru
    _
  // Predicated region
  $region42: #{rnn_gru_forward.1} parent=0 // pred_check
    _
  $region43: #{rnn_gru_forward.1} parent=0 // pred_check_branch
    %37 = sbr.rel (0) target = $region45
  $region44: #{rnn_gru_forward.1} parent=0 // pred_region
    _
  $region45: #{rnn_gru_forward.1} parent=0 // pred_fallthru
    _
  %v38 = vld [vmem:[%s0] sm:$0xff]
  %v39 = vld [vmem:[%s0 + $0x8] sm:$0xff]
  %v40 = vld [vmem:[%s0 + $0x10] sm:$0xff]
  %v41 = vld [vmem:[%s0 + $0x18] sm:$0xff]
  %v42 = vld [vmem:[%s0 + $0x20] sm:$0xff]
  %v43 = vld [vmem:[%s0 + $0x28] sm:$0xff]
  %v44 = vld [vmem:[%s0 + $0x30] sm:$0xff]
  %v45 = vld [vmem:[%s0 + $0x38] sm:$0xff]
  %v46 = vld [vmem:[%s0 + $0x40] sm:$0xff]
  %v47 = vld [vmem:[%s0 + $0x48] sm:$0xff]
  %v48 = vld [vmem:[%s0 + $0x50] sm:$0xff]
  %v49 = vld [vmem:[%s0 + $0x58] sm:$0xff]
  %v50 = vld [vmem:[%s0 + $0x60] sm:$0xff]
  %v51 = vld [vmem:[%s0 + $0x68] sm:$0xff]
  %v52 = vld [vmem:[%s0 + $0x70] sm:$0xff]
  %v53 = vld [vmem:[%s0 + $0x78] sm:$0xff]
  %v54 = vld [vmem:[%s0 + $0x80] sm:$0xff]
  %v55 = vld [vmem:[%s0 + $0x88] sm:$0xff]
  %v56 = vld [vmem:[%s0 + $0x90] sm:$0xff]
  %v57 = vld [vmem:[%s0 + $0x98] sm:$0xff]
  %v58 = vld [vmem:[%s0 + $0xa0] sm:$0xff]
  %v59 = vld [vmem:[%s0 + $0xa8] sm:$0xff]
  %v60 = vld [vmem:[%s0 + $0xb0] sm:$0xff]
  %v61 = vld [vmem:[%s0 + $0xb8] sm:$0xff]
  %v62 = vld [vmem:[%s0 + $0xc0] sm:$0xff]
  %v63 = vld [vmem:[%s0 + $0xc8] sm:$0xff]
  %v64 = vld [vmem:[%s0 + $0xd0] sm:$0xff]
  %v65 = vld [vmem:[%s0 + $0xd8] sm:$0xff]
  %v66 = vld [vmem:[%s0 + $0xe0] sm:$0xff]
  %v67 = vld [vmem:[%s0 + $0xe8] sm:$0xff]
  %v68 = vld [vmem:[%s0 + $0xf0] sm:$0xff]
  %v69 = vld [vmem:[%s0 + $0xf8] sm:$0xff]
  %v70 = vld [vmem:[%s1] sm:$0xff]
  %v71 = vld [vmem:[%s1 + $0x8] sm:$0xff]
  %v72 = vld [vmem:[%s1 + $0x10] sm:$0xff]
  %v73 = vld [vmem:[%s1 + $0x18] sm:$0xff]
  %v74 = vld [vmem:[%s1 + $0x20] sm:$0xff]
  %v75 = vld [vmem:[%s1 + $0x28] sm:$0xff]
  %v76 = vld [vmem:[%s1 + $0x30] sm:$0xff]
  %v77 = vld [vmem:[%s1 + $0x38] sm:$0xff]
  %v78 = vld [vmem:[%s1 + $0x40] sm:$0xff]
  %v79 = vld [vmem:[%s1 + $0x48] sm:$0xff]
  %v80 = vld [vmem:[%s1 + $0x50] sm:$0xff]
  %v81 = vld [vmem:[%s1 + $0x58] sm:$0xff]
  %v82 = vld [vmem:[%s1 + $0x60] sm:$0xff]
  %v83 = vld [vmem:[%s1 + $0x68] sm:$0xff]
  %v84 = vld [vmem:[%s1 + $0x70] sm:$0xff]
  %v85 = vld [vmem:[%s1 + $0x78] sm:$0xff]
  %v86 = vld [vmem:[%s1 + $0x80] sm:$0xff]
  %v87 = vld [vmem:[%s1 + $0x88] sm:$0xff]
  %v88 = vld [vmem:[%s1 + $0x90] sm:$0xff]
  %v89 = vld [vmem:[%s1 + $0x98] sm:$0xff]
  %v90 = vld [vmem:[%s1 + $0xa0] sm:$0xff]
  %v91 = vld [vmem:[%s1 + $0xa8] sm:$0xff]
  %v92 = vld [vmem:[%s1 + $0xb0] sm:$0xff]
  %v93 = vld [vmem:[%s1 + $0xb8] sm:$0xff]
  %v94 = vld [vmem:[%s1 + $0xc0] sm:$0xff]
  %v95 = vld [vmem:[%s1 + $0xc8] sm:$0xff]
  %v96 = vld [vmem:[%s1 + $0xd0] sm:$0xff]
  %v97 = vld [vmem:[%s1 + $0xd8] sm:$0xff]
  %v98 = vld [vmem:[%s1 + $0xe0] sm:$0xff]
  %v99 = vld [vmem:[%s1 + $0xe8] sm:$0xff]
  %v100 = vld [vmem:[%s1 + $0xf0] sm:$0xff]
  %v101 = vld [vmem:[%s1 + $0xf8] sm:$0xff]
  %v102 = vld [vmem:[%s1 + $0x100] sm:$0xff]
  %v103 = vld [vmem:[%s1 + $0x108] sm:$0xff]
  %v104 = vld [vmem:[%s1 + $0x110] sm:$0xff]
  %v105 = vld [vmem:[%s1 + $0x118] sm:$0xff]
  %v106 = vld [vmem:[%s1 + $0x120] sm:$0xff]
  %v107 = vld [vmem:[%s1 + $0x128] sm:$0xff]
  %v108 = vld [vmem:[%s1 + $0x130] sm:$0xff]
  %v109 = vld [vmem:[%s1 + $0x138] sm:$0xff]
  %v110 = vld [vmem:[%s1 + $0x140] sm:$0xff]
  %v111 = vld [vmem:[%s1 + $0x148] sm:$0xff]
  %v112 = vld [vmem:[%s1 + $0x150] sm:$0xff]
  %v113 = vld [vmem:[%s1 + $0x158] sm:$0xff]
  %v114 = vld [vmem:[%s1 + $0x160] sm:$0xff]
  %v115 = vld [vmem:[%s1 + $0x168] sm:$0xff]
  %v116 = vld [vmem:[%s1 + $0x170] sm:$0xff]
  %v117 = vld [vmem:[%s1 + $0x178] sm:$0xff]
  %v118 = vld [vmem:[%s1 + $0x180] sm:$0xff]
  %v119 = vld [vmem:[%s1 + $0x188] sm:$0xff]
  %v120 = vld [vmem:[%s1 + $0x190] sm:$0xff]
  %v121 = vld [vmem:[%s1 + $0x198] sm:$0xff]
  %v122 = vld [vmem:[%s1 + $0x1a0] sm:$0xff]
  %v123 = vld [vmem:[%s1 + $0x1a8] sm:$0xff]
  %v124 = vld [vmem:[%s1 + $0x1b0] sm:$0xff]
  %v125 = vld [vmem:[%s1 + $0x1b8] sm:$0xff]
  %v126 = vld [vmem:[%s1 + $0x1c0] sm:$0xff]
  %v127 = vld [vmem:[%s1 + $0x1c8] sm:$0xff]
  %v128 = vld [vmem:[%s1 + $0x1d0] sm:$0xff]
  %v129 = vld [vmem:[%s1 + $0x1d8] sm:$0xff]
  %v130 = vld [vmem:[%s1 + $0x1e0] sm:$0xff]
  %v131 = vld [vmem:[%s1 + $0x1e8] sm:$0xff]
  %v132 = vld [vmem:[%s1 + $0x1f0] sm:$0xff]
  %v133 = vld [vmem:[%s1 + $0x1f8] sm:$0xff]
  %v134 = vld [vmem:[%s1 + $0x200] sm:$0xff]
  %v135 = vld [vmem:[%s1 + $0x208] sm:$0xff]
  %v136 = vld [vmem:[%s1 + $0x210] sm:$0xff]
  %v137 = vld [vmem:[%s1 + $0x218] sm:$0xff]
  %v138 = vld [vmem:[%s1 + $0x220] sm:$0xff]
  %v139 = vld [vmem:[%s1 + $0x228] sm:$0xff]
  %v140 = vld [vmem:[%s1 + $0x230] sm:$0xff]
  %v141 = vld [vmem:[%s1 + $0x238] sm:$0xff]
  %v142 = vld [vmem:[%s1 + $0x240] sm:$0xff]
  %v143 = vld [vmem:[%s1 + $0x248] sm:$0xff]
  %v144 = vld [vmem:[%s1 + $0x250] sm:$0xff]
  %v145 = vld [vmem:[%s1 + $0x258] sm:$0xff]
  %v146 = vld [vmem:[%s1 + $0x260] sm:$0xff]
  %v147 = vld [vmem:[%s1 + $0x268] sm:$0xff]
  %v148 = vld [vmem:[%s1 + $0x270] sm:$0xff]
  %v149 = vld [vmem:[%s1 + $0x278] sm:$0xff]
  %v150 = vld [vmem:[%s1 + $0x280] sm:$0xff]
  %v151 = vld [vmem:[%s1 + $0x288] sm:$0xff]
  %v152 = vld [vmem:[%s1 + $0x290] sm:$0xff]
  %v153 = vld [vmem:[%s1 + $0x298] sm:$0xff]
  %v154 = vld [vmem:[%s1 + $0x2a0] sm:$0xff]
  %v155 = vld [vmem:[%s1 + $0x2a8] sm:$0xff]
  %v156 = vld [vmem:[%s1 + $0x2b0] sm:$0xff]
  %v157 = vld [vmem:[%s1 + $0x2b8] sm:$0xff]
  %v158 = vld [vmem:[%s1 + $0x2c0] sm:$0xff]
  %v159 = vld [vmem:[%s1 + $0x2c8] sm:$0xff]
  %v160 = vld [vmem:[%s1 + $0x2d0] sm:$0xff]
  %v161 = vld [vmem:[%s1 + $0x2d8] sm:$0xff]
  %v162 = vld [vmem:[%s1 + $0x2e0] sm:$0xff]
  %v163 = vld [vmem:[%s1 + $0x2e8] sm:$0xff]
  %v164 = vld [vmem:[%s1 + $0x2f0] sm:$0xff]
  %v165 = vld [vmem:[%s1 + $0x2f8] sm:$0xff]
  %v166 = vld [vmem:[%s1 + $0x300] sm:$0xff]
  %v167 = vld [vmem:[%s1 + $0x308] sm:$0xff]
  %v168 = vld [vmem:[%s1 + $0x310] sm:$0xff]
  %v169 = vld [vmem:[%s1 + $0x318] sm:$0xff]
  %v170 = vld [vmem:[%s1 + $0x320] sm:$0xff]
  %v171 = vld [vmem:[%s1 + $0x328] sm:$0xff]
  %v172 = vld [vmem:[%s1 + $0x330] sm:$0xff]
  %v173 = vld [vmem:[%s1 + $0x338] sm:$0xff]
  %v174 = vld [vmem:[%s1 + $0x340] sm:$0xff]
  %v175 = vld [vmem:[%s1 + $0x348] sm:$0xff]
  %v176 = vld [vmem:[%s1 + $0x350] sm:$0xff]
  %v177 = vld [vmem:[%s1 + $0x358] sm:$0xff]
  %v178 = vld [vmem:[%s1 + $0x360] sm:$0xff]
  %v179 = vld [vmem:[%s1 + $0x368] sm:$0xff]
  %v180 = vld [vmem:[%s1 + $0x370] sm:$0xff]
  %v181 = vld [vmem:[%s1 + $0x378] sm:$0xff]
  %v182 = vld [vmem:[%s1 + $0x380] sm:$0xff]
  %v183 = vld [vmem:[%s1 + $0x388] sm:$0xff]
  %v184 = vld [vmem:[%s1 + $0x390] sm:$0xff]
  %v185 = vld [vmem:[%s1 + $0x398] sm:$0xff]
  %v186 = vld [vmem:[%s1 + $0x3a0] sm:$0xff]
  %v187 = vld [vmem:[%s1 + $0x3a8] sm:$0xff]
  %v188 = vld [vmem:[%s1 + $0x3b0] sm:$0xff]
  %v189 = vld [vmem:[%s1 + $0x3b8] sm:$0xff]
  %v190 = vld [vmem:[%s1 + $0x3c0] sm:$0xff]
  %v191 = vld [vmem:[%s1 + $0x3c8] sm:$0xff]
  %v192 = vld [vmem:[%s1 + $0x3d0] sm:$0xff]
  %v193 = vld [vmem:[%s1 + $0x3d8] sm:$0xff]
  %v194 = vld [vmem:[%s1 + $0x3e0] sm:$0xff]
  %v195 = vld [vmem:[%s1 + $0x3e8] sm:$0xff]
  %v196 = vld [vmem:[%s1 + $0x3f0] sm:$0xff]
  %v197 = vld [vmem:[%s1 + $0x3f8] sm:$0xff]
  %v198 = vld [vmem:[%s1 + $0x400] sm:$0xff]
  %v199 = vld [vmem:[%s1 + $0x408] sm:$0xff]
  %v200 = vld [vmem:[%s1 + $0x410] sm:$0xff]
  %v201 = vld [vmem:[%s1 + $0x418] sm:$0xff]
  %v202 = vld [vmem:[%s1 + $0x420] sm:$0xff]
  %v203 = vld [vmem:[%s1 + $0x428] sm:$0xff]
  %v204 = vld [vmem:[%s1 + $0x430] sm:$0xff]
  %v205 = vld [vmem:[%s1 + $0x438] sm:$0xff]
  %v206 = vld [vmem:[%s1 + $0x440] sm:$0xff]
  %v207 = vld [vmem:[%s1 + $0x448] sm:$0xff]
  %v208 = vld [vmem:[%s1 + $0x450] sm:$0xff]
  %v209 = vld [vmem:[%s1 + $0x458] sm:$0xff]
  %v210 = vld [vmem:[%s1 + $0x460] sm:$0xff]
  %v211 = vld [vmem:[%s1 + $0x468] sm:$0xff]
  %v212 = vld [vmem:[%s1 + $0x470] sm:$0xff]
  %v213 = vld [vmem:[%s1 + $0x478] sm:$0xff]
  %v214 = vld [vmem:[%s1 + $0x480] sm:$0xff]
  %v215 = vld [vmem:[%s1 + $0x488] sm:$0xff]
  %v216 = vld [vmem:[%s1 + $0x490] sm:$0xff]
  %v217 = vld [vmem:[%s1 + $0x498] sm:$0xff]
  %v218 = vld [vmem:[%s1 + $0x4a0] sm:$0xff]
  %v219 = vld [vmem:[%s1 + $0x4a8] sm:$0xff]
  %v220 = vld [vmem:[%s1 + $0x4b0] sm:$0xff]
  %v221 = vld [vmem:[%s1 + $0x4b8] sm:$0xff]
  %v222 = vld [vmem:[%s1 + $0x4c0] sm:$0xff]
  %v223 = vld [vmem:[%s1 + $0x4c8] sm:$0xff]
  %v224 = vld [vmem:[%s1 + $0x4d0] sm:$0xff]
  %v225 = vld [vmem:[%s1 + $0x4d8] sm:$0xff]
  %v226 = vld [vmem:[%s1 + $0x4e0] sm:$0xff]
  %v227 = vld [vmem:[%s1 + $0x4e8] sm:$0xff]
  %v228 = vld [vmem:[%s1 + $0x4f0] sm:$0xff]
  %v229 = vld [vmem:[%s1 + $0x4f8] sm:$0xff]
  %v230 = vld [vmem:[%s1 + $0x500] sm:$0xff]
  %v231 = vld [vmem:[%s1 + $0x508] sm:$0xff]
  %v232 = vld [vmem:[%s1 + $0x510] sm:$0xff]
  %v233 = vld [vmem:[%s1 + $0x518] sm:$0xff]
  %v234 = vld [vmem:[%s1 + $0x520] sm:$0xff]
  %v235 = vld [vmem:[%s1 + $0x528] sm:$0xff]
  %v236 = vld [vmem:[%s1 + $0x530] sm:$0xff]
  %v237 = vld [vmem:[%s1 + $0x538] sm:$0xff]
  %v238 = vld [vmem:[%s1 + $0x540] sm:$0xff]
  %v239 = vld [vmem:[%s1 + $0x548] sm:$0xff]
  %v240 = vld [vmem:[%s1 + $0x550] sm:$0xff]
  %v241 = vld [vmem:[%s1 + $0x558] sm:$0xff]
  %v242 = vld [vmem:[%s1 + $0x560] sm:$0xff]
  %v243 = vld [vmem:[%s1 + $0x568] sm:$0xff]
  %v244 = vld [vmem:[%s1 + $0x570] sm:$0xff]
  %v245 = vld [vmem:[%s1 + $0x578] sm:$0xff]
  %v246 = vld [vmem:[%s1 + $0x580] sm:$0xff]
  %v247 = vld [vmem:[%s1 + $0x588] sm:$0xff]
  %v248 = vld [vmem:[%s1 + $0x590] sm:$0xff]
  %v249 = vld [vmem:[%s1 + $0x598] sm:$0xff]
  %v250 = vld [vmem:[%s1 + $0x5a0] sm:$0xff]
  %v251 = vld [vmem:[%s1 + $0x5a8] sm:$0xff]
  %v252 = vld [vmem:[%s1 + $0x5b0] sm:$0xff]
  %v253 = vld [vmem:[%s1 + $0x5b8] sm:$0xff]
  %v254 = vld [vmem:[%s1 + $0x5c0] sm:$0xff]
  %v255 = vld [vmem:[%s1 + $0x5c8] sm:$0xff]
  %v256 = vld [vmem:[%s1 + $0x5d0] sm:$0xff]
  %v257 = vld [vmem:[%s1 + $0x5d8] sm:$0xff]
  %v258 = vld [vmem:[%s1 + $0x5e0] sm:$0xff]
  %v259 = vld [vmem:[%s1 + $0x5e8] sm:$0xff]
  %v260 = vld [vmem:[%s1 + $0x5f0] sm:$0xff]
  %v261 = vld [vmem:[%s1 + $0x5f8] sm:$0xff]
  %v262 = vld [vmem:[%s2] sm:$0xff]
  %v263 = vld [vmem:[%s2 + $0x8] sm:$0xff]
  %v264 = vld [vmem:[%s2 + $0x10] sm:$0xff]
  %v265 = vld [vmem:[%s2 + $0x18] sm:$0xff]
  %v266 = vld [vmem:[%s2 + $0x20] sm:$0xff]
  %v267 = vld [vmem:[%s2 + $0x28] sm:$0xff]
  %v268 = vld [vmem:[%s2 + $0x30] sm:$0xff]
  %v269 = vld [vmem:[%s2 + $0x38] sm:$0xff]
  %v270 = vld [vmem:[%s2 + $0x40] sm:$0xff]
  %v271 = vld [vmem:[%s2 + $0x48] sm:$0xff]
  %v272 = vld [vmem:[%s2 + $0x50] sm:$0xff]
  %v273 = vld [vmem:[%s2 + $0x58] sm:$0xff]
  %v274 = vld [vmem:[%s2 + $0x60] sm:$0xff]
  %v275 = vld [vmem:[%s2 + $0x68] sm:$0xff]
  %v276 = vld [vmem:[%s2 + $0x70] sm:$0xff]
  %v277 = vld [vmem:[%s2 + $0x78] sm:$0xff]
  %v278 = vld [vmem:[%s2 + $0x80] sm:$0xff]
  %v279 = vld [vmem:[%s2 + $0x88] sm:$0xff]
  %v280 = vld [vmem:[%s2 + $0x90] sm:$0xff]
  %v281 = vld [vmem:[%s2 + $0x98] sm:$0xff]
  %v282 = vld [vmem:[%s2 + $0xa0] sm:$0xff]
  %v283 = vld [vmem:[%s2 + $0xa8] sm:$0xff]
  %v284 = vld [vmem:[%s2 + $0xb0] sm:$0xff]
  %v285 = vld [vmem:[%s2 + $0xb8] sm:$0xff]
  %v286 = vld [vmem:[%s2 + $0xc0] sm:$0xff]
  %v287 = vld [vmem:[%s2 + $0xc8] sm:$0xff]
  %v288 = vld [vmem:[%s2 + $0xd0] sm:$0xff]
  %v289 = vld [vmem:[%s2 + $0xd8] sm:$0xff]
  %v290 = vld [vmem:[%s2 + $0xe0] sm:$0xff]
  %v291 = vld [vmem:[%s2 + $0xe8] sm:$0xff]
  %v292 = vld [vmem:[%s2 + $0xf0] sm:$0xff]
  %v293 = vld [vmem:[%s2 + $0xf8] sm:$0xff]
  %v294 = vld [vmem:[%s2 + $0x100] sm:$0xff]
  %v295 = vld [vmem:[%s2 + $0x108] sm:$0xff]
  %v296 = vld [vmem:[%s2 + $0x110] sm:$0xff]
  %v297 = vld [vmem:[%s2 + $0x118] sm:$0xff]
  %v298 = vld [vmem:[%s2 + $0x120] sm:$0xff]
  %v299 = vld [vmem:[%s2 + $0x128] sm:$0xff]
  %v300 = vld [vmem:[%s2 + $0x130] sm:$0xff]
  %v301 = vld [vmem:[%s2 + $0x138] sm:$0xff]
  %v302 = vld [vmem:[%s2 + $0x140] sm:$0xff]
  %v303 = vld [vmem:[%s2 + $0x148] sm:$0xff]
  %v304 = vld [vmem:[%s2 + $0x150] sm:$0xff]
  %v305 = vld [vmem:[%s2 + $0x158] sm:$0xff]
  %v306 = vld [vmem:[%s2 + $0x160] sm:$0xff]
  %v307 = vld [vmem:[%s2 + $0x168] sm:$0xff]
  %v308 = vld [vmem:[%s2 + $0x170] sm:$0xff]
  %v309 = vld [vmem:[%s2 + $0x178] sm:$0xff]
  %v310 = vld [vmem:[%s3] sm:$0x7]
  %v311 = vld [vmem:[%s4] sm:$0x1]
  %v313 = vperm.slane %v310, 0
  %v314 = vperm.slane %v310, 1
  %v315 = vperm.slane %v310, 2
  %319 = vmatpush.msra.mxu0 %v115
  %320 = vmatpush.msra.mxu0 %v112
  %321 = vmatpush.msra.mxu0 %v109
  %322 = vmatpush.msra.mxu0 %v106
  %323 = vmatpush.msra.mxu0 %v103
  %324 = vmatpush.msra.mxu0 %v100
  %325 = vmatpush.msra.mxu0 %v97
  %326 = vmatpush.msra.mxu0 %v94
  %327 = vmatpush.msra.mxu0 %v91
  %328 = vmatpush.msra.mxu0 %v88
  %329 = vmatpush.msra.mxu0 %v85
  %330 = vmatpush.msra.mxu0 %v82
  %331 = vmatpush.msra.mxu0 %v79
  %332 = vmatpush.msra.mxu0 %v76
  %333 = vmatpush.msra.mxu0 %v73
  %334 = vmatpush.msra.mxu0 %v70
  %335 = vmatmul.f32.gmra.mxu0 %v38
  %v336 = vpop.f32.mrf.mxu0
  %v337 = vadd.f32 %v313, %v336
  %338 = vmatmul.f32.gmra.mxu0 %v42
  %v339 = vpop.f32.mrf.mxu0
  %v340 = vadd.f32 %v313, %v339
  %341 = vmatmul.f32.gmra.mxu0 %v46
  %v342 = vpop.f32.mrf.mxu0
  %v343 = vadd.f32 %v313, %v342
  %344 = vmatmul.f32.gmra.mxu0 %v50
  %v345 = vpop.f32.mrf.mxu0
  %v346 = vadd.f32 %v313, %v345
  %347 = vmatmul.f32.gmra.mxu0 %v54
  %v348 = vpop.f32.mrf.mxu0
  %v349 = vadd.f32 %v313, %v348
  %350 = vmatmul.f32.gmra.mxu0 %v58
  %v351 = vpop.f32.mrf.mxu0
  %v352 = vadd.f32 %v313, %v351
  %353 = vmatmul.f32.gmra.mxu0 %v62
  %v354 = vpop.f32.mrf.mxu0
  %v355 = vadd.f32 %v313, %v354
  %356 = vmatmul.f32.gmra.mxu0 %v66
  %v357 = vpop.f32.mrf.mxu0
  %v358 = vadd.f32 %v313, %v357
  %359 = vdwg.mxu0
  %360 = vmatpush.msra.mxu0 %v163
  %361 = vmatpush.msra.mxu0 %v160
  %362 = vmatpush.msra.mxu0 %v157
  %363 = vmatpush.msra.mxu0 %v154
  %364 = vmatpush.msra.mxu0 %v151
  %365 = vmatpush.msra.mxu0 %v148
  %366 = vmatpush.msra.mxu0 %v145
  %367 = vmatpush.msra.mxu0 %v142
  %368 = vmatpush.msra.mxu0 %v139
  %369 = vmatpush.msra.mxu0 %v136
  %370 = vmatpush.msra.mxu0 %v133
  %371 = vmatpush.msra.mxu0 %v130
  %372 = vmatpush.msra.mxu0 %v127
  %373 = vmatpush.msra.mxu0 %v124
  %374 = vmatpush.msra.mxu0 %v121
  %375 = vmatpush.msra.mxu0 %v118
  %376 = vmatmul.f32.gmra.mxu0 %v39
  %v377 = vpop.f32.mrf.mxu0
  %v378 = vadd.f32 %v337, %v377
  %379 = vmatmul.f32.gmra.mxu0 %v43
  %v380 = vpop.f32.mrf.mxu0
  %v381 = vadd.f32 %v340, %v380
  %382 = vmatmul.f32.gmra.mxu0 %v47
  %v383 = vpop.f32.mrf.mxu0
  %v384 = vadd.f32 %v343, %v383
  %385 = vmatmul.f32.gmra.mxu0 %v51
  %v386 = vpop.f32.mrf.mxu0
  %v387 = vadd.f32 %v346, %v386
  %388 = vmatmul.f32.gmra.mxu0 %v55
  %v389 = vpop.f32.mrf.mxu0
  %v390 = vadd.f32 %v349, %v389
  %391 = vmatmul.f32.gmra.mxu0 %v59
  %v392 = vpop.f32.mrf.mxu0
  %v393 = vadd.f32 %v352, %v392
  %394 = vmatmul.f32.gmra.mxu0 %v63
  %v395 = vpop.f32.mrf.mxu0
  %v396 = vadd.f32 %v355, %v395
  %397 = vmatmul.f32.gmra.mxu0 %v67
  %v398 = vpop.f32.mrf.mxu0
  %v399 = vadd.f32 %v358, %v398
  %400 = vdwg.mxu0
  %401 = vmatpush.msra.mxu0 %v211
  %402 = vmatpush.msra.mxu0 %v208
  %403 = vmatpush.msra.mxu0 %v205
  %404 = vmatpush.msra.mxu0 %v202
  %405 = vmatpush.msra.mxu0 %v199
  %406 = vmatpush.msra.mxu0 %v196
  %407 = vmatpush.msra.mxu0 %v193
  %408 = vmatpush.msra.mxu0 %v190
  %409 = vmatpush.msra.mxu0 %v187
  %410 = vmatpush.msra.mxu0 %v184
  %411 = vmatpush.msra.mxu0 %v181
  %412 = vmatpush.msra.mxu0 %v178
  %413 = vmatpush.msra.mxu0 %v175
  %414 = vmatpush.msra.mxu0 %v172
  %415 = vmatpush.msra.mxu0 %v169
  %416 = vmatpush.msra.mxu0 %v166
  %417 = vmatmul.f32.gmra.mxu0 %v40
  %v418 = vpop.f32.mrf.mxu0
  %v419 = vadd.f32 %v378, %v418
  %420 = vmatmul.f32.gmra.mxu0 %v44
  %v421 = vpop.f32.mrf.mxu0
  %v422 = vadd.f32 %v381, %v421
  %423 = vmatmul.f32.gmra.mxu0 %v48
  %v424 = vpop.f32.mrf.mxu0
  %v425 = vadd.f32 %v384, %v424
  %426 = vmatmul.f32.gmra.mxu0 %v52
  %v427 = vpop.f32.mrf.mxu0
  %v428 = vadd.f32 %v387, %v427
  %429 = vmatmul.f32.gmra.mxu0 %v56
  %v430 = vpop.f32.mrf.mxu0
  %v431 = vadd.f32 %v390, %v430
  %432 = vmatmul.f32.gmra.mxu0 %v60
  %v433 = vpop.f32.mrf.mxu0
  %v434 = vadd.f32 %v393, %v433
  %435 = vmatmul.f32.gmra.mxu0 %v64
  %v436 = vpop.f32.mrf.mxu0
  %v437 = vadd.f32 %v396, %v436
  %438 = vmatmul.f32.gmra.mxu0 %v68
  %v439 = vpop.f32.mrf.mxu0
  %v440 = vadd.f32 %v399, %v439
  %441 = vdwg.mxu0
  %442 = vmatpush.msra.mxu0 %v259
  %443 = vmatpush.msra.mxu0 %v256
  %444 = vmatpush.msra.mxu0 %v253
  %445 = vmatpush.msra.mxu0 %v250
  %446 = vmatpush.msra.mxu0 %v247
  %447 = vmatpush.msra.mxu0 %v244
  %448 = vmatpush.msra.mxu0 %v241
  %449 = vmatpush.msra.mxu0 %v238
  %450 = vmatpush.msra.mxu0 %v235
  %451 = vmatpush.msra.mxu0 %v232
  %452 = vmatpush.msra.mxu0 %v229
  %453 = vmatpush.msra.mxu0 %v226
  %454 = vmatpush.msra.mxu0 %v223
  %455 = vmatpush.msra.mxu0 %v220
  %456 = vmatpush.msra.mxu0 %v217
  %457 = vmatpush.msra.mxu0 %v214
  %458 = vmatmul.f32.gmra.mxu0 %v41
  %v459 = vpop.f32.mrf.mxu0
  %v460 = vadd.f32 %v419, %v459
  %461 = vmatmul.f32.gmra.mxu0 %v45
  %v462 = vpop.f32.mrf.mxu0
  %v463 = vadd.f32 %v422, %v462
  %464 = vmatmul.f32.gmra.mxu0 %v49
  %v465 = vpop.f32.mrf.mxu0
  %v466 = vadd.f32 %v425, %v465
  %467 = vmatmul.f32.gmra.mxu0 %v53
  %v468 = vpop.f32.mrf.mxu0
  %v469 = vadd.f32 %v428, %v468
  %470 = vmatmul.f32.gmra.mxu0 %v57
  %v471 = vpop.f32.mrf.mxu0
  %v472 = vadd.f32 %v431, %v471
  %473 = vmatmul.f32.gmra.mxu0 %v61
  %v474 = vpop.f32.mrf.mxu0
  %v475 = vadd.f32 %v434, %v474
  %476 = vmatmul.f32.gmra.mxu0 %v65
  %v477 = vpop.f32.mrf.mxu0
  %v478 = vadd.f32 %v437, %v477
  %479 = vmatmul.f32.gmra.mxu0 %v69
  %v480 = vpop.f32.mrf.mxu0
  %v481 = vadd.f32 %v440, %v480
  %482 = vdwg.mxu0
  %483 = vmatpush.msra.mxu0 %v116
  %484 = vmatpush.msra.mxu0 %v113
  %485 = vmatpush.msra.mxu0 %v110
  %486 = vmatpush.msra.mxu0 %v107
  %487 = vmatpush.msra.mxu0 %v104
  %488 = vmatpush.msra.mxu0 %v101
  %489 = vmatpush.msra.mxu0 %v98
  %490 = vmatpush.msra.mxu0 %v95
  %491 = vmatpush.msra.mxu0 %v92
  %492 = vmatpush.msra.mxu0 %v89
  %493 = vmatpush.msra.mxu0 %v86
  %494 = vmatpush.msra.mxu0 %v83
  %495 = vmatpush.msra.mxu0 %v80
  %496 = vmatpush.msra.mxu0 %v77
  %497 = vmatpush.msra.mxu0 %v74
  %498 = vmatpush.msra.mxu0 %v71
  %499 = vmatmul.f32.gmra.mxu0 %v38
  %v500 = vpop.f32.mrf.mxu0
  %v501 = vadd.f32 %v314, %v500
  %502 = vmatmul.f32.gmra.mxu0 %v42
  %v503 = vpop.f32.mrf.mxu0
  %v504 = vadd.f32 %v314, %v503
  %505 = vmatmul.f32.gmra.mxu0 %v46
  %v506 = vpop.f32.mrf.mxu0
  %v507 = vadd.f32 %v314, %v506
  %508 = vmatmul.f32.gmra.mxu0 %v50
  %v509 = vpop.f32.mrf.mxu0
  %v510 = vadd.f32 %v314, %v509
  %511 = vmatmul.f32.gmra.mxu0 %v54
  %v512 = vpop.f32.mrf.mxu0
  %v513 = vadd.f32 %v314, %v512
  %514 = vmatmul.f32.gmra.mxu0 %v58
  %v515 = vpop.f32.mrf.mxu0
  %v516 = vadd.f32 %v314, %v515
  %517 = vmatmul.f32.gmra.mxu0 %v62
  %v518 = vpop.f32.mrf.mxu0
  %v519 = vadd.f32 %v314, %v518
  %520 = vmatmul.f32.gmra.mxu0 %v66
  %v521 = vpop.f32.mrf.mxu0
  %v522 = vadd.f32 %v314, %v521
  %523 = vdwg.mxu0
  %524 = vmatpush.msra.mxu0 %v164
  %525 = vmatpush.msra.mxu0 %v161
  %526 = vmatpush.msra.mxu0 %v158
  %527 = vmatpush.msra.mxu0 %v155
  %528 = vmatpush.msra.mxu0 %v152
  %529 = vmatpush.msra.mxu0 %v149
  %530 = vmatpush.msra.mxu0 %v146
  %531 = vmatpush.msra.mxu0 %v143
  %532 = vmatpush.msra.mxu0 %v140
  %533 = vmatpush.msra.mxu0 %v137
  %534 = vmatpush.msra.mxu0 %v134
  %535 = vmatpush.msra.mxu0 %v131
  %536 = vmatpush.msra.mxu0 %v128
  %537 = vmatpush.msra.mxu0 %v125
  %538 = vmatpush.msra.mxu0 %v122
  %539 = vmatpush.msra.mxu0 %v119
  %540 = vmatmul.f32.gmra.mxu0 %v39
  %v541 = vpop.f32.mrf.mxu0
  %v542 = vadd.f32 %v501, %v541
  %543 = vmatmul.f32.gmra.mxu0 %v43
  %v544 = vpop.f32.mrf.mxu0
  %v545 = vadd.f32 %v504, %v544
  %546 = vmatmul.f32.gmra.mxu0 %v47
  %v547 = vpop.f32.mrf.mxu0
  %v548 = vadd.f32 %v507, %v547
  %549 = vmatmul.f32.gmra.mxu0 %v51
  %v550 = vpop.f32.mrf.mxu0
  %v551 = vadd.f32 %v510, %v550
  %552 = vmatmul.f32.gmra.mxu0 %v55
  %v553 = vpop.f32.mrf.mxu0
  %v554 = vadd.f32 %v513, %v553
  %555 = vmatmul.f32.gmra.mxu0 %v59
  %v556 = vpop.f32.mrf.mxu0
  %v557 = vadd.f32 %v516, %v556
  %558 = vmatmul.f32.gmra.mxu0 %v63
  %v559 = vpop.f32.mrf.mxu0
  %v560 = vadd.f32 %v519, %v559
  %561 = vmatmul.f32.gmra.mxu0 %v67
  %v562 = vpop.f32.mrf.mxu0
  %v563 = vadd.f32 %v522, %v562
  %564 = vdwg.mxu0
  %565 = vmatpush.msra.mxu0 %v212
  %566 = vmatpush.msra.mxu0 %v209
  %567 = vmatpush.msra.mxu0 %v206
  %568 = vmatpush.msra.mxu0 %v203
  %569 = vmatpush.msra.mxu0 %v200
  %570 = vmatpush.msra.mxu0 %v197
  %571 = vmatpush.msra.mxu0 %v194
  %572 = vmatpush.msra.mxu0 %v191
  %573 = vmatpush.msra.mxu0 %v188
  %574 = vmatpush.msra.mxu0 %v185
  %575 = vmatpush.msra.mxu0 %v182
  %576 = vmatpush.msra.mxu0 %v179
  %577 = vmatpush.msra.mxu0 %v176
  %578 = vmatpush.msra.mxu0 %v173
  %579 = vmatpush.msra.mxu0 %v170
  %580 = vmatpush.msra.mxu0 %v167
  %581 = vmatmul.f32.gmra.mxu0 %v40
  %v582 = vpop.f32.mrf.mxu0
  %v583 = vadd.f32 %v542, %v582
  %584 = vmatmul.f32.gmra.mxu0 %v44
  %v585 = vpop.f32.mrf.mxu0
  %v586 = vadd.f32 %v545, %v585
  %587 = vmatmul.f32.gmra.mxu0 %v48
  %v588 = vpop.f32.mrf.mxu0
  %v589 = vadd.f32 %v548, %v588
  %590 = vmatmul.f32.gmra.mxu0 %v52
  %v591 = vpop.f32.mrf.mxu0
  %v592 = vadd.f32 %v551, %v591
  %593 = vmatmul.f32.gmra.mxu0 %v56
  %v594 = vpop.f32.mrf.mxu0
  %v595 = vadd.f32 %v554, %v594
  %596 = vmatmul.f32.gmra.mxu0 %v60
  %v597 = vpop.f32.mrf.mxu0
  %v598 = vadd.f32 %v557, %v597
  %599 = vmatmul.f32.gmra.mxu0 %v64
  %v600 = vpop.f32.mrf.mxu0
  %v601 = vadd.f32 %v560, %v600
  %602 = vmatmul.f32.gmra.mxu0 %v68
  %v603 = vpop.f32.mrf.mxu0
  %v604 = vadd.f32 %v563, %v603
  %605 = vdwg.mxu0
  %606 = vmatpush.msra.mxu0 %v260
  %607 = vmatpush.msra.mxu0 %v257
  %608 = vmatpush.msra.mxu0 %v254
  %609 = vmatpush.msra.mxu0 %v251
  %610 = vmatpush.msra.mxu0 %v248
  %611 = vmatpush.msra.mxu0 %v245
  %612 = vmatpush.msra.mxu0 %v242
  %613 = vmatpush.msra.mxu0 %v239
  %614 = vmatpush.msra.mxu0 %v236
  %615 = vmatpush.msra.mxu0 %v233
  %616 = vmatpush.msra.mxu0 %v230
  %617 = vmatpush.msra.mxu0 %v227
  %618 = vmatpush.msra.mxu0 %v224
  %619 = vmatpush.msra.mxu0 %v221
  %620 = vmatpush.msra.mxu0 %v218
  %621 = vmatpush.msra.mxu0 %v215
  %622 = vmatmul.f32.gmra.mxu0 %v41
  %v623 = vpop.f32.mrf.mxu0
  %v624 = vadd.f32 %v583, %v623
  %625 = vmatmul.f32.gmra.mxu0 %v45
  %v626 = vpop.f32.mrf.mxu0
  %v627 = vadd.f32 %v586, %v626
  %628 = vmatmul.f32.gmra.mxu0 %v49
  %v629 = vpop.f32.mrf.mxu0
  %v630 = vadd.f32 %v589, %v629
  %631 = vmatmul.f32.gmra.mxu0 %v53
  %v632 = vpop.f32.mrf.mxu0
  %v633 = vadd.f32 %v592, %v632
  %634 = vmatmul.f32.gmra.mxu0 %v57
  %v635 = vpop.f32.mrf.mxu0
  %v636 = vadd.f32 %v595, %v635
  %637 = vmatmul.f32.gmra.mxu0 %v61
  %v638 = vpop.f32.mrf.mxu0
  %v639 = vadd.f32 %v598, %v638
  %640 = vmatmul.f32.gmra.mxu0 %v65
  %v641 = vpop.f32.mrf.mxu0
  %v642 = vadd.f32 %v601, %v641
  %643 = vmatmul.f32.gmra.mxu0 %v69
  %v644 = vpop.f32.mrf.mxu0
  %v645 = vadd.f32 %v604, %v644
  %646 = vdwg.mxu0
  %647 = vmatpush.msra.mxu0 %v117
  %648 = vmatpush.msra.mxu0 %v114
  %649 = vmatpush.msra.mxu0 %v111
  %650 = vmatpush.msra.mxu0 %v108
  %651 = vmatpush.msra.mxu0 %v105
  %652 = vmatpush.msra.mxu0 %v102
  %653 = vmatpush.msra.mxu0 %v99
  %654 = vmatpush.msra.mxu0 %v96
  %655 = vmatpush.msra.mxu0 %v93
  %656 = vmatpush.msra.mxu0 %v90
  %657 = vmatpush.msra.mxu0 %v87
  %658 = vmatpush.msra.mxu0 %v84
  %659 = vmatpush.msra.mxu0 %v81
  %660 = vmatpush.msra.mxu0 %v78
  %661 = vmatpush.msra.mxu0 %v75
  %662 = vmatpush.msra.mxu0 %v72
  %663 = vmatmul.f32.gmra.mxu0 %v38
  %v664 = vpop.f32.mrf.mxu0
  %v665 = vadd.f32 %v315, %v664
  %666 = vmatmul.f32.gmra.mxu0 %v42
  %v667 = vpop.f32.mrf.mxu0
  %v668 = vadd.f32 %v315, %v667
  %669 = vmatmul.f32.gmra.mxu0 %v46
  %v670 = vpop.f32.mrf.mxu0
  %v671 = vadd.f32 %v315, %v670
  %672 = vmatmul.f32.gmra.mxu0 %v50
  %v673 = vpop.f32.mrf.mxu0
  %v674 = vadd.f32 %v315, %v673
  %675 = vmatmul.f32.gmra.mxu0 %v54
  %v676 = vpop.f32.mrf.mxu0
  %v677 = vadd.f32 %v315, %v676
  %678 = vmatmul.f32.gmra.mxu0 %v58
  %v679 = vpop.f32.mrf.mxu0
  %v680 = vadd.f32 %v315, %v679
  %681 = vmatmul.f32.gmra.mxu0 %v62
  %v682 = vpop.f32.mrf.mxu0
  %v683 = vadd.f32 %v315, %v682
  %684 = vmatmul.f32.gmra.mxu0 %v66
  %v685 = vpop.f32.mrf.mxu0
  %v686 = vadd.f32 %v315, %v685
  %687 = vdwg.mxu0
  %688 = vmatpush.msra.mxu0 %v165
  %689 = vmatpush.msra.mxu0 %v162
  %690 = vmatpush.msra.mxu0 %v159
  %691 = vmatpush.msra.mxu0 %v156
  %692 = vmatpush.msra.mxu0 %v153
  %693 = vmatpush.msra.mxu0 %v150
  %694 = vmatpush.msra.mxu0 %v147
  %695 = vmatpush.msra.mxu0 %v144
  %696 = vmatpush.msra.mxu0 %v141
  %697 = vmatpush.msra.mxu0 %v138
  %698 = vmatpush.msra.mxu0 %v135
  %699 = vmatpush.msra.mxu0 %v132
  %700 = vmatpush.msra.mxu0 %v129
  %701 = vmatpush.msra.mxu0 %v126
  %702 = vmatpush.msra.mxu0 %v123
  %703 = vmatpush.msra.mxu0 %v120
  %704 = vmatmul.f32.gmra.mxu0 %v39
  %v705 = vpop.f32.mrf.mxu0
  %v706 = vadd.f32 %v665, %v705
  %707 = vmatmul.f32.gmra.mxu0 %v43
  %v708 = vpop.f32.mrf.mxu0
  %v709 = vadd.f32 %v668, %v708
  %710 = vmatmul.f32.gmra.mxu0 %v47
  %v711 = vpop.f32.mrf.mxu0
  %v712 = vadd.f32 %v671, %v711
  %713 = vmatmul.f32.gmra.mxu0 %v51
  %v714 = vpop.f32.mrf.mxu0
  %v715 = vadd.f32 %v674, %v714
  %716 = vmatmul.f32.gmra.mxu0 %v55
  %v717 = vpop.f32.mrf.mxu0
  %v718 = vadd.f32 %v677, %v717
  %719 = vmatmul.f32.gmra.mxu0 %v59
  %v720 = vpop.f32.mrf.mxu0
  %v721 = vadd.f32 %v680, %v720
  %722 = vmatmul.f32.gmra.mxu0 %v63
  %v723 = vpop.f32.mrf.mxu0
  %v724 = vadd.f32 %v683, %v723
  %725 = vmatmul.f32.gmra.mxu0 %v67
  %v726 = vpop.f32.mrf.mxu0
  %v727 = vadd.f32 %v686, %v726
  %728 = vdwg.mxu0
  %729 = vmatpush.msra.mxu0 %v213
  %730 = vmatpush.msra.mxu0 %v210
  %731 = vmatpush.msra.mxu0 %v207
  %732 = vmatpush.msra.mxu0 %v204
  %733 = vmatpush.msra.mxu0 %v201
  %734 = vmatpush.msra.mxu0 %v198
  %735 = vmatpush.msra.mxu0 %v195
  %736 = vmatpush.msra.mxu0 %v192
  %737 = vmatpush.msra.mxu0 %v189
  %738 = vmatpush.msra.mxu0 %v186
  %739 = vmatpush.msra.mxu0 %v183
  %740 = vmatpush.msra.mxu0 %v180
  %741 = vmatpush.msra.mxu0 %v177
  %742 = vmatpush.msra.mxu0 %v174
  %743 = vmatpush.msra.mxu0 %v171
  %744 = vmatpush.msra.mxu0 %v168
  %745 = vmatmul.f32.gmra.mxu0 %v40
  %v746 = vpop.f32.mrf.mxu0
  %v747 = vadd.f32 %v706, %v746
  %748 = vmatmul.f32.gmra.mxu0 %v44
  %v749 = vpop.f32.mrf.mxu0
  %v750 = vadd.f32 %v709, %v749
  %751 = vmatmul.f32.gmra.mxu0 %v48
  %v752 = vpop.f32.mrf.mxu0
  %v753 = vadd.f32 %v712, %v752
  %754 = vmatmul.f32.gmra.mxu0 %v52
  %v755 = vpop.f32.mrf.mxu0
  %v756 = vadd.f32 %v715, %v755
  %757 = vmatmul.f32.gmra.mxu0 %v56
  %v758 = vpop.f32.mrf.mxu0
  %v759 = vadd.f32 %v718, %v758
  %760 = vmatmul.f32.gmra.mxu0 %v60
  %v761 = vpop.f32.mrf.mxu0
  %v762 = vadd.f32 %v721, %v761
  %763 = vmatmul.f32.gmra.mxu0 %v64
  %v764 = vpop.f32.mrf.mxu0
  %v765 = vadd.f32 %v724, %v764
  %766 = vmatmul.f32.gmra.mxu0 %v68
  %v767 = vpop.f32.mrf.mxu0
  %v768 = vadd.f32 %v727, %v767
  %769 = vdwg.mxu0
  %770 = vmatpush.msra.mxu0 %v261
  %771 = vmatpush.msra.mxu0 %v258
  %772 = vmatpush.msra.mxu0 %v255
  %773 = vmatpush.msra.mxu0 %v252
  %774 = vmatpush.msra.mxu0 %v249
  %775 = vmatpush.msra.mxu0 %v246
  %776 = vmatpush.msra.mxu0 %v243
  %777 = vmatpush.msra.mxu0 %v240
  %778 = vmatpush.msra.mxu0 %v237
  %779 = vmatpush.msra.mxu0 %v234
  %780 = vmatpush.msra.mxu0 %v231
  %781 = vmatpush.msra.mxu0 %v228
  %782 = vmatpush.msra.mxu0 %v225
  %783 = vmatpush.msra.mxu0 %v222
  %784 = vmatpush.msra.mxu0 %v219
  %785 = vmatpush.msra.mxu0 %v216
  %786 = vmatmul.f32.gmra.mxu0 %v41
  %v787 = vpop.f32.mrf.mxu0
  %v788 = vadd.f32 %v747, %v787
  %789 = vmatmul.f32.gmra.mxu0 %v45
  %v790 = vpop.f32.mrf.mxu0
  %v791 = vadd.f32 %v750, %v790
  %792 = vmatmul.f32.gmra.mxu0 %v49
  %v793 = vpop.f32.mrf.mxu0
  %v794 = vadd.f32 %v753, %v793
  %795 = vmatmul.f32.gmra.mxu0 %v53
  %v796 = vpop.f32.mrf.mxu0
  %v797 = vadd.f32 %v756, %v796
  %798 = vmatmul.f32.gmra.mxu0 %v57
  %v799 = vpop.f32.mrf.mxu0
  %v800 = vadd.f32 %v759, %v799
  %801 = vmatmul.f32.gmra.mxu0 %v61
  %v802 = vpop.f32.mrf.mxu0
  %v803 = vadd.f32 %v762, %v802
  %804 = vmatmul.f32.gmra.mxu0 %v65
  %v805 = vpop.f32.mrf.mxu0
  %v806 = vadd.f32 %v765, %v805
  %807 = vmatmul.f32.gmra.mxu0 %v69
  %v808 = vpop.f32.mrf.mxu0
  %v809 = vadd.f32 %v768, %v808
  %810 = vdwg.mxu0
  %811 = vmatpush.msra.mxu0 %v307
  %812 = vmatpush.msra.mxu0 %v304
  %813 = vmatpush.msra.mxu0 %v301
  %814 = vmatpush.msra.mxu0 %v298
  %815 = vmatpush.msra.mxu0 %v295
  %816 = vmatpush.msra.mxu0 %v292
  %817 = vmatpush.msra.mxu0 %v289
  %818 = vmatpush.msra.mxu0 %v286
  %819 = vmatpush.msra.mxu0 %v283
  %820 = vmatpush.msra.mxu0 %v280
  %821 = vmatpush.msra.mxu0 %v277
  %822 = vmatpush.msra.mxu0 %v274
  %823 = vmatpush.msra.mxu0 %v271
  %824 = vmatpush.msra.mxu0 %v268
  %825 = vmatpush.msra.mxu0 %v265
  %826 = vmatpush.msra.mxu0 %v262
  %827 = vmatmul.f32.gmra.mxu0 0.0
  %v828 = vpop.f32.mrf.mxu0
  %v829 = vadd.f32 0.0, %v828
  %830 = vdwg.mxu0
  %831 = vmatpush.msra.mxu0 %v308
  %832 = vmatpush.msra.mxu0 %v305
  %833 = vmatpush.msra.mxu0 %v302
  %834 = vmatpush.msra.mxu0 %v299
  %835 = vmatpush.msra.mxu0 %v296
  %836 = vmatpush.msra.mxu0 %v293
  %837 = vmatpush.msra.mxu0 %v290
  %838 = vmatpush.msra.mxu0 %v287
  %839 = vmatpush.msra.mxu0 %v284
  %840 = vmatpush.msra.mxu0 %v281
  %841 = vmatpush.msra.mxu0 %v278
  %842 = vmatpush.msra.mxu0 %v275
  %843 = vmatpush.msra.mxu0 %v272
  %844 = vmatpush.msra.mxu0 %v269
  %845 = vmatpush.msra.mxu0 %v266
  %846 = vmatpush.msra.mxu0 %v263
  %847 = vmatmul.f32.gmra.mxu0 0.0
  %v848 = vpop.f32.mrf.mxu0
  %v849 = vadd.f32 0.0, %v848
  %850 = vdwg.mxu0
  %851 = vmatpush.msra.mxu0 %v309
  %852 = vmatpush.msra.mxu0 %v306
  %853 = vmatpush.msra.mxu0 %v303
  %854 = vmatpush.msra.mxu0 %v300
  %855 = vmatpush.msra.mxu0 %v297
  %856 = vmatpush.msra.mxu0 %v294
  %857 = vmatpush.msra.mxu0 %v291
  %858 = vmatpush.msra.mxu0 %v288
  %859 = vmatpush.msra.mxu0 %v285
  %860 = vmatpush.msra.mxu0 %v282
  %861 = vmatpush.msra.mxu0 %v279
  %862 = vmatpush.msra.mxu0 %v276
  %863 = vmatpush.msra.mxu0 %v273
  %864 = vmatpush.msra.mxu0 %v270
  %865 = vmatpush.msra.mxu0 %v267
  %866 = vmatpush.msra.mxu0 %v264
  %867 = vmatmul.f32.gmra.mxu0 0.0
  %v868 = vpop.f32.mrf.mxu0
  %v869 = vadd.f32 0.0, %v868
  %870 = vdwg.mxu0
  %v871 = vadd.f32 %v460, %v829
  %v872 = vxor.u32 %v871, 2147483648
  %v873 = vmul.f32 %v872, 1.442695
  %v874 = vpow.pop %v873
  %v875 = vadd.f32 %v874, 1.0
  %v876 = vrcp.pop %v875
  %v877 = vmul.f32 %v875, %v876
  %v878 = vsub.f32 1.0, %v877
  %v879 = vmul.f32 %v876, %v878
  %v880 = vadd.f32 %v876, %v879
  %vm881 = vweird.f32 %v875
  %vm882 = vweird.f32 %v876
  %vm883 = vmor %vm881, %vm882
  %v884 = vsel %vm883, %v876, %v880
  %v885 = vand.u32 2147483647, %v875
  %vm886 = vcmp.eq.f32.partialorder %v885, 8.507059e+37
  %v887 = vand.u32 %v875, 2147483648
  %v888 = vor.u32 1.1754944e-38, %v887
  %v889 = vsel %vm886, %v888, %v884
  %v890 = vmul.f32 1.0, %v889
  %v891 = vadd.f32 %v624, %v849
  %v892 = vxor.u32 %v891, 2147483648
  %v893 = vmul.f32 %v892, 1.442695
  %v894 = vpow.pop %v893
  %v895 = vadd.f32 %v894, 1.0
  %v896 = vrcp.pop %v895
  %v897 = vmul.f32 %v895, %v896
  %v898 = vsub.f32 1.0, %v897
  %v899 = vmul.f32 %v896, %v898
  %v900 = vadd.f32 %v896, %v899
  %vm901 = vweird.f32 %v895
  %vm902 = vweird.f32 %v896
  %vm903 = vmor %vm901, %vm902
  %v904 = vsel %vm903, %v896, %v900
  %v905 = vand.u32 2147483647, %v895
  %vm906 = vcmp.eq.f32.partialorder %v905, 8.507059e+37
  %v907 = vand.u32 %v895, 2147483648
  %v908 = vor.u32 1.1754944e-38, %v907
  %v909 = vsel %vm906, %v908, %v904
  %v910 = vmul.f32 1.0, %v909
  %v912 = vperm.slane %v311, 0
  %v914 = vadd.f32 %v869, %v912
  %v915 = vmul.f32 %v890, %v914
  %v916 = vadd.f32 %v788, %v915
  %v917 = vtanh.pop %v916
  %v918 = vsub.f32 0.0, %v917
  %v919 = vmul.f32 %v910, %v918
  %v920 = vadd.f32 %v917, %v919
  %921 = vst [vmem:[#allocation2] sm:$0xff] %v920
  %922 = vmatpush.msra.mxu0 %v307
  %923 = vmatpush.msra.mxu0 %v304
  %924 = vmatpush.msra.mxu0 %v301
  %925 = vmatpush.msra.mxu0 %v298
  %926 = vmatpush.msra.mxu0 %v295
  %927 = vmatpush.msra.mxu0 %v292
  %928 = vmatpush.msra.mxu0 %v289
  %929 = vmatpush.msra.mxu0 %v286
  %930 = vmatpush.msra.mxu0 %v283
  %931 = vmatpush.msra.mxu0 %v280
  %932 = vmatpush.msra.mxu0 %v277
  %933 = vmatpush.msra.mxu0 %v274
  %934 = vmatpush.msra.mxu0 %v271
  %935 = vmatpush.msra.mxu0 %v268
  %936 = vmatpush.msra.mxu0 %v265
  %937 = vmatpush.msra.mxu0 %v262
  %938 = vmatmul.f32.gmra.mxu0 %v920
  %v939 = vpop.f32.mrf.mxu0
  %v940 = vadd.f32 0.0, %v939
  %941 = vdwg.mxu0
  %942 = vmatpush.msra.mxu0 %v308
  %943 = vmatpush.msra.mxu0 %v305
  %944 = vmatpush.msra.mxu0 %v302
  %945 = vmatpush.msra.mxu0 %v299
  %946 = vmatpush.msra.mxu0 %v296
  %947 = vmatpush.msra.mxu0 %v293
  %948 = vmatpush.msra.mxu0 %v290
  %949 = vmatpush.msra.mxu0 %v287
  %950 = vmatpush.msra.mxu0 %v284
  %951 = vmatpush.msra.mxu0 %v281
  %952 = vmatpush.msra.mxu0 %v278
  %953 = vmatpush.msra.mxu0 %v275
  %954 = vmatpush.msra.mxu0 %v272
  %955 = vmatpush.msra.mxu0 %v269
  %956 = vmatpush.msra.mxu0 %v266
  %957 = vmatpush.msra.mxu0 %v263
  %958 = vmatmul.f32.gmra.mxu0 %v920
  %v959 = vpop.f32.mrf.mxu0
  %v960 = vadd.f32 0.0, %v959
  %961 = vdwg.mxu0
  %962 = vmatpush.msra.mxu0 %v309
  %963 = vmatpush.msra.mxu0 %v306
  %964 = vmatpush.msra.mxu0 %v303
  %965 = vmatpush.msra.mxu0 %v300
  %966 = vmatpush.msra.mxu0 %v297
  %967 = vmatpush.msra.mxu0 %v294
  %968 = vmatpush.msra.mxu0 %v291
  %969 = vmatpush.msra.mxu0 %v288
  %970 = vmatpush.msra.mxu0 %v285
  %971 = vmatpush.msra.mxu0 %v282
  %972 = vmatpush.msra.mxu0 %v279
  %973 = vmatpush.msra.mxu0 %v276
  %974 = vmatpush.msra.mxu0 %v273
  %975 = vmatpush.msra.mxu0 %v270
  %976 = vmatpush.msra.mxu0 %v267
  %977 = vmatpush.msra.mxu0 %v264
  %978 = vmatmul.f32.gmra.mxu0 %v920
  %v979 = vpop.f32.mrf.mxu0
  %v980 = vadd.f32 0.0, %v979
  %981 = vdwg.mxu0
  %v982 = vadd.f32 %v463, %v940
  %v983 = vxor.u32 %v982, 2147483648
  %v984 = vmul.f32 %v983, 1.442695
  %v985 = vpow.pop %v984
  %v986 = vadd.f32 %v985, 1.0
  %v987 = vrcp.pop %v986
  %v988 = vmul.f32 %v986, %v987
  %v989 = vsub.f32 1.0, %v988
  %v990 = vmul.f32 %v987, %v989
  %v991 = vadd.f32 %v987, %v990
  %vm992 = vweird.f32 %v986
  %vm993 = vweird.f32 %v987
  %vm994 = vmor %vm992, %vm993
  %v995 = vsel %vm994, %v987, %v991
  %v996 = vand.u32 2147483647, %v986
  %vm997 = vcmp.eq.f32.partialorder %v996, 8.507059e+37
  %v998 = vand.u32 %v986, 2147483648
  %v999 = vor.u32 1.1754944e-38, %v998
  %v1000 = vsel %vm997, %v999, %v995
  %v1001 = vmul.f32 1.0, %v1000
  %v1002 = vadd.f32 %v627, %v960
  %v1003 = vxor.u32 %v1002, 2147483648
  %v1004 = vmul.f32 %v1003, 1.442695
  %v1005 = vpow.pop %v1004
  %v1006 = vadd.f32 %v1005, 1.0
  %v1007 = vrcp.pop %v1006
  %v1008 = vmul.f32 %v1006, %v1007
  %v1009 = vsub.f32 1.0, %v1008
  %v1010 = vmul.f32 %v1007, %v1009
  %v1011 = vadd.f32 %v1007, %v1010
  %vm1012 = vweird.f32 %v1006
  %vm1013 = vweird.f32 %v1007
  %vm1014 = vmor %vm1012, %vm1013
  %v1015 = vsel %vm1014, %v1007, %v1011
  %v1016 = vand.u32 2147483647, %v1006
  %vm1017 = vcmp.eq.f32.partialorder %v1016, 8.507059e+37
  %v1018 = vand.u32 %v1006, 2147483648
  %v1019 = vor.u32 1.1754944e-38, %v1018
  %v1020 = vsel %vm1017, %v1019, %v1015
  %v1021 = vmul.f32 1.0, %v1020
  %v1022 = vadd.f32 %v980, %v912
  %v1023 = vmul.f32 %v1001, %v1022
  %v1024 = vadd.f32 %v791, %v1023
  %v1025 = vtanh.pop %v1024
  %v1026 = vsub.f32 %v920, %v1025
  %v1027 = vmul.f32 %v1021, %v1026
  %v1028 = vadd.f32 %v1025, %v1027
  %1029 = vst [vmem:[#allocation2 + $0x8] sm:$0xff] %v1028
  %1030 = vmatpush.msra.mxu0 %v307
  %1031 = vmatpush.msra.mxu0 %v304
  %1032 = vmatpush.msra.mxu0 %v301
  %1033 = vmatpush.msra.mxu0 %v298
  %1034 = vmatpush.msra.mxu0 %v295
  %1035 = vmatpush.msra.mxu0 %v292
  %1036 = vmatpush.msra.mxu0 %v289
  %1037 = vmatpush.msra.mxu0 %v286
  %1038 = vmatpush.msra.mxu0 %v283
  %1039 = vmatpush.msra.mxu0 %v280
  %1040 = vmatpush.msra.mxu0 %v277
  %1041 = vmatpush.msra.mxu0 %v274
  %1042 = vmatpush.msra.mxu0 %v271
  %1043 = vmatpush.msra.mxu0 %v268
  %1044 = vmatpush.msra.mxu0 %v265
  %1045 = vmatpush.msra.mxu0 %v262
  %1046 = vmatmul.f32.gmra.mxu0 %v1028
  %v1047 = vpop.f32.mrf.mxu0
  %v1048 = vadd.f32 0.0, %v1047
  %1049 = vdwg.mxu0
  %1050 = vmatpush.msra.mxu0 %v308
  %1051 = vmatpush.msra.mxu0 %v305
  %1052 = vmatpush.msra.mxu0 %v302
  %1053 = vmatpush.msra.mxu0 %v299
  %1054 = vmatpush.msra.mxu0 %v296
  %1055 = vmatpush.msra.mxu0 %v293
  %1056 = vmatpush.msra.mxu0 %v290
  %1057 = vmatpush.msra.mxu0 %v287
  %1058 = vmatpush.msra.mxu0 %v284
  %1059 = vmatpush.msra.mxu0 %v281
  %1060 = vmatpush.msra.mxu0 %v278
  %1061 = vmatpush.msra.mxu0 %v275
  %1062 = vmatpush.msra.mxu0 %v272
  %1063 = vmatpush.msra.mxu0 %v269
  %1064 = vmatpush.msra.mxu0 %v266
  %1065 = vmatpush.msra.mxu0 %v263
  %1066 = vmatmul.f32.gmra.mxu0 %v1028
  %v1067 = vpop.f32.mrf.mxu0
  %v1068 = vadd.f32 0.0, %v1067
  %1069 = vdwg.mxu0
  %1070 = vmatpush.msra.mxu0 %v309
  %1071 = vmatpush.msra.mxu0 %v306
  %1072 = vmatpush.msra.mxu0 %v303
  %1073 = vmatpush.msra.mxu0 %v300
  %1074 = vmatpush.msra.mxu0 %v297
  %1075 = vmatpush.msra.mxu0 %v294
  %1076 = vmatpush.msra.mxu0 %v291
  %1077 = vmatpush.msra.mxu0 %v288
  %1078 = vmatpush.msra.mxu0 %v285
  %1079 = vmatpush.msra.mxu0 %v282
  %1080 = vmatpush.msra.mxu0 %v279
  %1081 = vmatpush.msra.mxu0 %v276
  %1082 = vmatpush.msra.mxu0 %v273
  %1083 = vmatpush.msra.mxu0 %v270
  %1084 = vmatpush.msra.mxu0 %v267
  %1085 = vmatpush.msra.mxu0 %v264
  %1086 = vmatmul.f32.gmra.mxu0 %v1028
  %v1087 = vpop.f32.mrf.mxu0
  %v1088 = vadd.f32 0.0, %v1087
  %1089 = vdwg.mxu0
  %v1090 = vadd.f32 %v466, %v1048
  %v1091 = vxor.u32 %v1090, 2147483648
  %v1092 = vmul.f32 %v1091, 1.442695
  %v1093 = vpow.pop %v1092
  %v1094 = vadd.f32 %v1093, 1.0
  %v1095 = vrcp.pop %v1094
  %v1096 = vmul.f32 %v1094, %v1095
  %v1097 = vsub.f32 1.0, %v1096
  %v1098 = vmul.f32 %v1095, %v1097
  %v1099 = vadd.f32 %v1095, %v1098
  %vm1100 = vweird.f32 %v1094
  %vm1101 = vweird.f32 %v1095
  %vm1102 = vmor %vm1100, %vm1101
  %v1103 = vsel %vm1102, %v1095, %v1099
  %v1104 = vand.u32 2147483647, %v1094
  %vm1105 = vcmp.eq.f32.partialorder %v1104, 8.507059e+37
  %v1106 = vand.u32 %v1094, 2147483648
  %v1107 = vor.u32 1.1754944e-38, %v1106
  %v1108 = vsel %vm1105, %v1107, %v1103
  %v1109 = vmul.f32 1.0, %v1108
  %v1110 = vadd.f32 %v630, %v1068
  %v1111 = vxor.u32 %v1110, 2147483648
  %v1112 = vmul.f32 %v1111, 1.442695
  %v1113 = vpow.pop %v1112
  %v1114 = vadd.f32 %v1113, 1.0
  %v1115 = vrcp.pop %v1114
  %v1116 = vmul.f32 %v1114, %v1115
  %v1117 = vsub.f32 1.0, %v1116
  %v1118 = vmul.f32 %v1115, %v1117
  %v1119 = vadd.f32 %v1115, %v1118
  %vm1120 = vweird.f32 %v1114
  %vm1121 = vweird.f32 %v1115
  %vm1122 = vmor %vm1120, %vm1121
  %v1123 = vsel %vm1122, %v1115, %v1119
  %v1124 = vand.u32 2147483647, %v1114
  %vm1125 = vcmp.eq.f32.partialorder %v1124, 8.507059e+37
  %v1126 = vand.u32 %v1114, 2147483648
  %v1127 = vor.u32 1.1754944e-38, %v1126
  %v1128 = vsel %vm1125, %v1127, %v1123
  %v1129 = vmul.f32 1.0, %v1128
  %v1130 = vadd.f32 %v1088, %v912
  %v1131 = vmul.f32 %v1109, %v1130
  %v1132 = vadd.f32 %v794, %v1131
  %v1133 = vtanh.pop %v1132
  %v1134 = vsub.f32 %v1028, %v1133
  %v1135 = vmul.f32 %v1129, %v1134
  %v1136 = vadd.f32 %v1133, %v1135
  %1137 = vst [vmem:[#allocation2 + $0x10] sm:$0xff] %v1136
  %1138 = vmatpush.msra.mxu0 %v307
  %1139 = vmatpush.msra.mxu0 %v304
  %1140 = vmatpush.msra.mxu0 %v301
  %1141 = vmatpush.msra.mxu0 %v298
  %1142 = vmatpush.msra.mxu0 %v295
  %1143 = vmatpush.msra.mxu0 %v292
  %1144 = vmatpush.msra.mxu0 %v289
  %1145 = vmatpush.msra.mxu0 %v286
  %1146 = vmatpush.msra.mxu0 %v283
  %1147 = vmatpush.msra.mxu0 %v280
  %1148 = vmatpush.msra.mxu0 %v277
  %1149 = vmatpush.msra.mxu0 %v274
  %1150 = vmatpush.msra.mxu0 %v271
  %1151 = vmatpush.msra.mxu0 %v268
  %1152 = vmatpush.msra.mxu0 %v265
  %1153 = vmatpush.msra.mxu0 %v262
  %1154 = vmatmul.f32.gmra.mxu0 %v1136
  %v1155 = vpop.f32.mrf.mxu0
  %v1156 = vadd.f32 0.0, %v1155
  %1157 = vdwg.mxu0
  %1158 = vmatpush.msra.mxu0 %v308
  %1159 = vmatpush.msra.mxu0 %v305
  %1160 = vmatpush.msra.mxu0 %v302
  %1161 = vmatpush.msra.mxu0 %v299
  %1162 = vmatpush.msra.mxu0 %v296
  %1163 = vmatpush.msra.mxu0 %v293
  %1164 = vmatpush.msra.mxu0 %v290
  %1165 = vmatpush.msra.mxu0 %v287
  %1166 = vmatpush.msra.mxu0 %v284
  %1167 = vmatpush.msra.mxu0 %v281
  %1168 = vmatpush.msra.mxu0 %v278
  %1169 = vmatpush.msra.mxu0 %v275
  %1170 = vmatpush.msra.mxu0 %v272
  %1171 = vmatpush.msra.mxu0 %v269
  %1172 = vmatpush.msra.mxu0 %v266
  %1173 = vmatpush.msra.mxu0 %v263
  %1174 = vmatmul.f32.gmra.mxu0 %v1136
  %v1175 = vpop.f32.mrf.mxu0
  %v1176 = vadd.f32 0.0, %v1175
  %1177 = vdwg.mxu0
  %1178 = vmatpush.msra.mxu0 %v309
  %1179 = vmatpush.msra.mxu0 %v306
  %1180 = vmatpush.msra.mxu0 %v303
  %1181 = vmatpush.msra.mxu0 %v300
  %1182 = vmatpush.msra.mxu0 %v297
  %1183 = vmatpush.msra.mxu0 %v294
  %1184 = vmatpush.msra.mxu0 %v291
  %1185 = vmatpush.msra.mxu0 %v288
  %1186 = vmatpush.msra.mxu0 %v285
  %1187 = vmatpush.msra.mxu0 %v282
  %1188 = vmatpush.msra.mxu0 %v279
  %1189 = vmatpush.msra.mxu0 %v276
  %1190 = vmatpush.msra.mxu0 %v273
  %1191 = vmatpush.msra.mxu0 %v270
  %1192 = vmatpush.msra.mxu0 %v267
  %1193 = vmatpush.msra.mxu0 %v264
  %1194 = vmatmul.f32.gmra.mxu0 %v1136
  %v1195 = vpop.f32.mrf.mxu0
  %v1196 = vadd.f32 0.0, %v1195
  %1197 = vdwg.mxu0
  %v1198 = vadd.f32 %v469, %v1156
  %v1199 = vxor.u32 %v1198, 2147483648
  %v1200 = vmul.f32 %v1199, 1.442695
  %v1201 = vpow.pop %v1200
  %v1202 = vadd.f32 %v1201, 1.0
  %v1203 = vrcp.pop %v1202
  %v1204 = vmul.f32 %v1202, %v1203
  %v1205 = vsub.f32 1.0, %v1204
  %v1206 = vmul.f32 %v1203, %v1205
  %v1207 = vadd.f32 %v1203, %v1206
  %vm1208 = vweird.f32 %v1202
  %vm1209 = vweird.f32 %v1203
  %vm1210 = vmor %vm1208, %vm1209
  %v1211 = vsel %vm1210, %v1203, %v1207
  %v1212 = vand.u32 2147483647, %v1202
  %vm1213 = vcmp.eq.f32.partialorder %v1212, 8.507059e+37
  %v1214 = vand.u32 %v1202, 2147483648
  %v1215 = vor.u32 1.1754944e-38, %v1214
  %v1216 = vsel %vm1213, %v1215, %v1211
  %v1217 = vmul.f32 1.0, %v1216
  %v1218 = vadd.f32 %v633, %v1176
  %v1219 = vxor.u32 %v1218, 2147483648
  %v1220 = vmul.f32 %v1219, 1.442695
  %v1221 = vpow.pop %v1220
  %v1222 = vadd.f32 %v1221, 1.0
  %v1223 = vrcp.pop %v1222
  %v1224 = vmul.f32 %v1222, %v1223
  %v1225 = vsub.f32 1.0, %v1224
  %v1226 = vmul.f32 %v1223, %v1225
  %v1227 = vadd.f32 %v1223, %v1226
  %vm1228 = vweird.f32 %v1222
  %vm1229 = vweird.f32 %v1223
  %vm1230 = vmor %vm1228, %vm1229
  %v1231 = vsel %vm1230, %v1223, %v1227
  %v1232 = vand.u32 2147483647, %v1222
  %vm1233 = vcmp.eq.f32.partialorder %v1232, 8.507059e+37
  %v1234 = vand.u32 %v1222, 2147483648
  %v1235 = vor.u32 1.1754944e-38, %v1234
  %v1236 = vsel %vm1233, %v1235, %v1231
  %v1237 = vmul.f32 1.0, %v1236
  %v1238 = vadd.f32 %v1196, %v912
  %v1239 = vmul.f32 %v1217, %v1238
  %v1240 = vadd.f32 %v797, %v1239
  %v1241 = vtanh.pop %v1240
  %v1242 = vsub.f32 %v1136, %v1241
  %v1243 = vmul.f32 %v1237, %v1242
  %v1244 = vadd.f32 %v1241, %v1243
  %1245 = vst [vmem:[#allocation2 + $0x18] sm:$0xff] %v1244
  %1246 = vmatpush.msra.mxu0 %v307
  %1247 = vmatpush.msra.mxu0 %v304
  %1248 = vmatpush.msra.mxu0 %v301
  %1249 = vmatpush.msra.mxu0 %v298
  %1250 = vmatpush.msra.mxu0 %v295
  %1251 = vmatpush.msra.mxu0 %v292
  %1252 = vmatpush.msra.mxu0 %v289
  %1253 = vmatpush.msra.mxu0 %v286
  %1254 = vmatpush.msra.mxu0 %v283
  %1255 = vmatpush.msra.mxu0 %v280
  %1256 = vmatpush.msra.mxu0 %v277
  %1257 = vmatpush.msra.mxu0 %v274
  %1258 = vmatpush.msra.mxu0 %v271
  %1259 = vmatpush.msra.mxu0 %v268
  %1260 = vmatpush.msra.mxu0 %v265
  %1261 = vmatpush.msra.mxu0 %v262
  %1262 = vmatmul.f32.gmra.mxu0 %v1244
  %v1263 = vpop.f32.mrf.mxu0
  %v1264 = vadd.f32 0.0, %v1263
  %1265 = vdwg.mxu0
  %1266 = vmatpush.msra.mxu0 %v308
  %1267 = vmatpush.msra.mxu0 %v305
  %1268 = vmatpush.msra.mxu0 %v302
  %1269 = vmatpush.msra.mxu0 %v299
  %1270 = vmatpush.msra.mxu0 %v296
  %1271 = vmatpush.msra.mxu0 %v293
  %1272 = vmatpush.msra.mxu0 %v290
  %1273 = vmatpush.msra.mxu0 %v287
  %1274 = vmatpush.msra.mxu0 %v284
  %1275 = vmatpush.msra.mxu0 %v281
  %1276 = vmatpush.msra.mxu0 %v278
  %1277 = vmatpush.msra.mxu0 %v275
  %1278 = vmatpush.msra.mxu0 %v272
  %1279 = vmatpush.msra.mxu0 %v269
  %1280 = vmatpush.msra.mxu0 %v266
  %1281 = vmatpush.msra.mxu0 %v263
  %1282 = vmatmul.f32.gmra.mxu0 %v1244
  %v1283 = vpop.f32.mrf.mxu0
  %v1284 = vadd.f32 0.0, %v1283
  %1285 = vdwg.mxu0
  %1286 = vmatpush.msra.mxu0 %v309
  %1287 = vmatpush.msra.mxu0 %v306
  %1288 = vmatpush.msra.mxu0 %v303
  %1289 = vmatpush.msra.mxu0 %v300
  %1290 = vmatpush.msra.mxu0 %v297
  %1291 = vmatpush.msra.mxu0 %v294
  %1292 = vmatpush.msra.mxu0 %v291
  %1293 = vmatpush.msra.mxu0 %v288
  %1294 = vmatpush.msra.mxu0 %v285
  %1295 = vmatpush.msra.mxu0 %v282
  %1296 = vmatpush.msra.mxu0 %v279
  %1297 = vmatpush.msra.mxu0 %v276
  %1298 = vmatpush.msra.mxu0 %v273
  %1299 = vmatpush.msra.mxu0 %v270
  %1300 = vmatpush.msra.mxu0 %v267
  %1301 = vmatpush.msra.mxu0 %v264
  %1302 = vmatmul.f32.gmra.mxu0 %v1244
  %v1303 = vpop.f32.mrf.mxu0
  %v1304 = vadd.f32 0.0, %v1303
  %1305 = vdwg.mxu0
  %v1306 = vadd.f32 %v472, %v1264
  %v1307 = vxor.u32 %v1306, 2147483648
  %v1308 = vmul.f32 %v1307, 1.442695
  %v1309 = vpow.pop %v1308
  %v1310 = vadd.f32 %v1309, 1.0
  %v1311 = vrcp.pop %v1310
  %v1312 = vmul.f32 %v1310, %v1311
  %v1313 = vsub.f32 1.0, %v1312
  %v1314 = vmul.f32 %v1311, %v1313
  %v1315 = vadd.f32 %v1311, %v1314
  %vm1316 = vweird.f32 %v1310
  %vm1317 = vweird.f32 %v1311
  %vm1318 = vmor %vm1316, %vm1317
  %v1319 = vsel %vm1318, %v1311, %v1315
  %v1320 = vand.u32 2147483647, %v1310
  %vm1321 = vcmp.eq.f32.partialorder %v1320, 8.507059e+37
  %v1322 = vand.u32 %v1310, 2147483648
  %v1323 = vor.u32 1.1754944e-38, %v1322
  %v1324 = vsel %vm1321, %v1323, %v1319
  %v1325 = vmul.f32 1.0, %v1324
  %v1326 = vadd.f32 %v636, %v1284
  %v1327 = vxor.u32 %v1326, 2147483648
  %v1328 = vmul.f32 %v1327, 1.442695
  %v1329 = vpow.pop %v1328
  %v1330 = vadd.f32 %v1329, 1.0
  %v1331 = vrcp.pop %v1330
  %v1332 = vmul.f32 %v1330, %v1331
  %v1333 = vsub.f32 1.0, %v1332
  %v1334 = vmul.f32 %v1331, %v1333
  %v1335 = vadd.f32 %v1331, %v1334
  %vm1336 = vweird.f32 %v1330
  %vm1337 = vweird.f32 %v1331
  %vm1338 = vmor %vm1336, %vm1337
  %v1339 = vsel %vm1338, %v1331, %v1335
  %v1340 = vand.u32 2147483647, %v1330
  %vm1341 = vcmp.eq.f32.partialorder %v1340, 8.507059e+37
  %v1342 = vand.u32 %v1330, 2147483648
  %v1343 = vor.u32 1.1754944e-38, %v1342
  %v1344 = vsel %vm1341, %v1343, %v1339
  %v1345 = vmul.f32 1.0, %v1344
  %v1346 = vadd.f32 %v1304, %v912
  %v1347 = vmul.f32 %v1325, %v1346
  %v1348 = vadd.f32 %v800, %v1347
  %v1349 = vtanh.pop %v1348
  %v1350 = vsub.f32 %v1244, %v1349
  %v1351 = vmul.f32 %v1345, %v1350
  %v1352 = vadd.f32 %v1349, %v1351
  %1353 = vst [vmem:[#allocation2 + $0x20] sm:$0xff] %v1352
  %1354 = vmatpush.msra.mxu0 %v307
  %1355 = vmatpush.msra.mxu0 %v304
  %1356 = vmatpush.msra.mxu0 %v301
  %1357 = vmatpush.msra.mxu0 %v298
  %1358 = vmatpush.msra.mxu0 %v295
  %1359 = vmatpush.msra.mxu0 %v292
  %1360 = vmatpush.msra.mxu0 %v289
  %1361 = vmatpush.msra.mxu0 %v286
  %1362 = vmatpush.msra.mxu0 %v283
  %1363 = vmatpush.msra.mxu0 %v280
  %1364 = vmatpush.msra.mxu0 %v277
  %1365 = vmatpush.msra.mxu0 %v274
  %1366 = vmatpush.msra.mxu0 %v271
  %1367 = vmatpush.msra.mxu0 %v268
  %1368 = vmatpush.msra.mxu0 %v265
  %1369 = vmatpush.msra.mxu0 %v262
  %1370 = vmatmul.f32.gmra.mxu0 %v1352
  %v1371 = vpop.f32.mrf.mxu0
  %v1372 = vadd.f32 0.0, %v1371
  %1373 = vdwg.mxu0
  %1374 = vmatpush.msra.mxu0 %v308
  %1375 = vmatpush.msra.mxu0 %v305
  %1376 = vmatpush.msra.mxu0 %v302
  %1377 = vmatpush.msra.mxu0 %v299
  %1378 = vmatpush.msra.mxu0 %v296
  %1379 = vmatpush.msra.mxu0 %v293
  %1380 = vmatpush.msra.mxu0 %v290
  %1381 = vmatpush.msra.mxu0 %v287
  %1382 = vmatpush.msra.mxu0 %v284
  %1383 = vmatpush.msra.mxu0 %v281
  %1384 = vmatpush.msra.mxu0 %v278
  %1385 = vmatpush.msra.mxu0 %v275
  %1386 = vmatpush.msra.mxu0 %v272
  %1387 = vmatpush.msra.mxu0 %v269
  %1388 = vmatpush.msra.mxu0 %v266
  %1389 = vmatpush.msra.mxu0 %v263
  %1390 = vmatmul.f32.gmra.mxu0 %v1352
  %v1391 = vpop.f32.mrf.mxu0
  %v1392 = vadd.f32 0.0, %v1391
  %1393 = vdwg.mxu0
  %1394 = vmatpush.msra.mxu0 %v309
  %1395 = vmatpush.msra.mxu0 %v306
  %1396 = vmatpush.msra.mxu0 %v303
  %1397 = vmatpush.msra.mxu0 %v300
  %1398 = vmatpush.msra.mxu0 %v297
  %1399 = vmatpush.msra.mxu0 %v294
  %1400 = vmatpush.msra.mxu0 %v291
  %1401 = vmatpush.msra.mxu0 %v288
  %1402 = vmatpush.msra.mxu0 %v285
  %1403 = vmatpush.msra.mxu0 %v282
  %1404 = vmatpush.msra.mxu0 %v279
  %1405 = vmatpush.msra.mxu0 %v276
  %1406 = vmatpush.msra.mxu0 %v273
  %1407 = vmatpush.msra.mxu0 %v270
  %1408 = vmatpush.msra.mxu0 %v267
  %1409 = vmatpush.msra.mxu0 %v264
  %1410 = vmatmul.f32.gmra.mxu0 %v1352
  %v1411 = vpop.f32.mrf.mxu0
  %v1412 = vadd.f32 0.0, %v1411
  %1413 = vdwg.mxu0
  %v1414 = vadd.f32 %v475, %v1372
  %v1415 = vxor.u32 %v1414, 2147483648
  %v1416 = vmul.f32 %v1415, 1.442695
  %v1417 = vpow.pop %v1416
  %v1418 = vadd.f32 %v1417, 1.0
  %v1419 = vrcp.pop %v1418
  %v1420 = vmul.f32 %v1418, %v1419
  %v1421 = vsub.f32 1.0, %v1420
  %v1422 = vmul.f32 %v1419, %v1421
  %v1423 = vadd.f32 %v1419, %v1422
  %vm1424 = vweird.f32 %v1418
  %vm1425 = vweird.f32 %v1419
  %vm1426 = vmor %vm1424, %vm1425
  %v1427 = vsel %vm1426, %v1419, %v1423
  %v1428 = vand.u32 2147483647, %v1418
  %vm1429 = vcmp.eq.f32.partialorder %v1428, 8.507059e+37
  %v1430 = vand.u32 %v1418, 2147483648
  %v1431 = vor.u32 1.1754944e-38, %v1430
  %v1432 = vsel %vm1429, %v1431, %v1427
  %v1433 = vmul.f32 1.0, %v1432
  %v1434 = vadd.f32 %v639, %v1392
  %v1435 = vxor.u32 %v1434, 2147483648
  %v1436 = vmul.f32 %v1435, 1.442695
  %v1437 = vpow.pop %v1436
  %v1438 = vadd.f32 %v1437, 1.0
  %v1439 = vrcp.pop %v1438
  %v1440 = vmul.f32 %v1438, %v1439
  %v1441 = vsub.f32 1.0, %v1440
  %v1442 = vmul.f32 %v1439, %v1441
  %v1443 = vadd.f32 %v1439, %v1442
  %vm1444 = vweird.f32 %v1438
  %vm1445 = vweird.f32 %v1439
  %vm1446 = vmor %vm1444, %vm1445
  %v1447 = vsel %vm1446, %v1439, %v1443
  %v1448 = vand.u32 2147483647, %v1438
  %vm1449 = vcmp.eq.f32.partialorder %v1448, 8.507059e+37
  %v1450 = vand.u32 %v1438, 2147483648
  %v1451 = vor.u32 1.1754944e-38, %v1450
  %v1452 = vsel %vm1449, %v1451, %v1447
  %v1453 = vmul.f32 1.0, %v1452
  %v1454 = vadd.f32 %v1412, %v912
  %v1455 = vmul.f32 %v1433, %v1454
  %v1456 = vadd.f32 %v803, %v1455
  %v1457 = vtanh.pop %v1456
  %v1458 = vsub.f32 %v1352, %v1457
  %v1459 = vmul.f32 %v1453, %v1458
  %v1460 = vadd.f32 %v1457, %v1459
  %1461 = vst [vmem:[#allocation2 + $0x28] sm:$0xff] %v1460
  %1462 = vmatpush.msra.mxu0 %v307
  %1463 = vmatpush.msra.mxu0 %v304
  %1464 = vmatpush.msra.mxu0 %v301
  %1465 = vmatpush.msra.mxu0 %v298
  %1466 = vmatpush.msra.mxu0 %v295
  %1467 = vmatpush.msra.mxu0 %v292
  %1468 = vmatpush.msra.mxu0 %v289
  %1469 = vmatpush.msra.mxu0 %v286
  %1470 = vmatpush.msra.mxu0 %v283
  %1471 = vmatpush.msra.mxu0 %v280
  %1472 = vmatpush.msra.mxu0 %v277
  %1473 = vmatpush.msra.mxu0 %v274
  %1474 = vmatpush.msra.mxu0 %v271
  %1475 = vmatpush.msra.mxu0 %v268
  %1476 = vmatpush.msra.mxu0 %v265
  %1477 = vmatpush.msra.mxu0 %v262
  %1478 = vmatmul.f32.gmra.mxu0 %v1460
  %v1479 = vpop.f32.mrf.mxu0
  %v1480 = vadd.f32 0.0, %v1479
  %1481 = vdwg.mxu0
  %1482 = vmatpush.msra.mxu0 %v308
  %1483 = vmatpush.msra.mxu0 %v305
  %1484 = vmatpush.msra.mxu0 %v302
  %1485 = vmatpush.msra.mxu0 %v299
  %1486 = vmatpush.msra.mxu0 %v296
  %1487 = vmatpush.msra.mxu0 %v293
  %1488 = vmatpush.msra.mxu0 %v290
  %1489 = vmatpush.msra.mxu0 %v287
  %1490 = vmatpush.msra.mxu0 %v284
  %1491 = vmatpush.msra.mxu0 %v281
  %1492 = vmatpush.msra.mxu0 %v278
  %1493 = vmatpush.msra.mxu0 %v275
  %1494 = vmatpush.msra.mxu0 %v272
  %1495 = vmatpush.msra.mxu0 %v269
  %1496 = vmatpush.msra.mxu0 %v266
  %1497 = vmatpush.msra.mxu0 %v263
  %1498 = vmatmul.f32.gmra.mxu0 %v1460
  %v1499 = vpop.f32.mrf.mxu0
  %v1500 = vadd.f32 0.0, %v1499
  %1501 = vdwg.mxu0
  %1502 = vmatpush.msra.mxu0 %v309
  %1503 = vmatpush.msra.mxu0 %v306
  %1504 = vmatpush.msra.mxu0 %v303
  %1505 = vmatpush.msra.mxu0 %v300
  %1506 = vmatpush.msra.mxu0 %v297
  %1507 = vmatpush.msra.mxu0 %v294
  %1508 = vmatpush.msra.mxu0 %v291
  %1509 = vmatpush.msra.mxu0 %v288
  %1510 = vmatpush.msra.mxu0 %v285
  %1511 = vmatpush.msra.mxu0 %v282
  %1512 = vmatpush.msra.mxu0 %v279
  %1513 = vmatpush.msra.mxu0 %v276
  %1514 = vmatpush.msra.mxu0 %v273
  %1515 = vmatpush.msra.mxu0 %v270
  %1516 = vmatpush.msra.mxu0 %v267
  %1517 = vmatpush.msra.mxu0 %v264
  %1518 = vmatmul.f32.gmra.mxu0 %v1460
  %v1519 = vpop.f32.mrf.mxu0
  %v1520 = vadd.f32 0.0, %v1519
  %1521 = vdwg.mxu0
  %v1522 = vadd.f32 %v478, %v1480
  %v1523 = vxor.u32 %v1522, 2147483648
  %v1524 = vmul.f32 %v1523, 1.442695
  %v1525 = vpow.pop %v1524
  %v1526 = vadd.f32 %v1525, 1.0
  %v1527 = vrcp.pop %v1526
  %v1528 = vmul.f32 %v1526, %v1527
  %v1529 = vsub.f32 1.0, %v1528
  %v1530 = vmul.f32 %v1527, %v1529
  %v1531 = vadd.f32 %v1527, %v1530
  %vm1532 = vweird.f32 %v1526
  %vm1533 = vweird.f32 %v1527
  %vm1534 = vmor %vm1532, %vm1533
  %v1535 = vsel %vm1534, %v1527, %v1531
  %v1536 = vand.u32 2147483647, %v1526
  %vm1537 = vcmp.eq.f32.partialorder %v1536, 8.507059e+37
  %v1538 = vand.u32 %v1526, 2147483648
  %v1539 = vor.u32 1.1754944e-38, %v1538
  %v1540 = vsel %vm1537, %v1539, %v1535
  %v1541 = vmul.f32 1.0, %v1540
  %v1542 = vadd.f32 %v642, %v1500
  %v1543 = vxor.u32 %v1542, 2147483648
  %v1544 = vmul.f32 %v1543, 1.442695
  %v1545 = vpow.pop %v1544
  %v1546 = vadd.f32 %v1545, 1.0
  %v1547 = vrcp.pop %v1546
  %v1548 = vmul.f32 %v1546, %v1547
  %v1549 = vsub.f32 1.0, %v1548
  %v1550 = vmul.f32 %v1547, %v1549
  %v1551 = vadd.f32 %v1547, %v1550
  %vm1552 = vweird.f32 %v1546
  %vm1553 = vweird.f32 %v1547
  %vm1554 = vmor %vm1552, %vm1553
  %v1555 = vsel %vm1554, %v1547, %v1551
  %v1556 = vand.u32 2147483647, %v1546
  %vm1557 = vcmp.eq.f32.partialorder %v1556, 8.507059e+37
  %v1558 = vand.u32 %v1546, 2147483648
  %v1559 = vor.u32 1.1754944e-38, %v1558
  %v1560 = vsel %vm1557, %v1559, %v1555
  %v1561 = vmul.f32 1.0, %v1560
  %v1562 = vadd.f32 %v1520, %v912
  %v1563 = vmul.f32 %v1541, %v1562
  %v1564 = vadd.f32 %v806, %v1563
  %v1565 = vtanh.pop %v1564
  %v1566 = vsub.f32 %v1460, %v1565
  %v1567 = vmul.f32 %v1561, %v1566
  %v1568 = vadd.f32 %v1565, %v1567
  %1569 = vst [vmem:[#allocation2 + $0x30] sm:$0xff] %v1568
  %1570 = vmatpush.msra.mxu0 %v307
  %1571 = vmatpush.msra.mxu0 %v304
  %1572 = vmatpush.msra.mxu0 %v301
  %1573 = vmatpush.msra.mxu0 %v298
  %1574 = vmatpush.msra.mxu0 %v295
  %1575 = vmatpush.msra.mxu0 %v292
  %1576 = vmatpush.msra.mxu0 %v289
  %1577 = vmatpush.msra.mxu0 %v286
  %1578 = vmatpush.msra.mxu0 %v283
  %1579 = vmatpush.msra.mxu0 %v280
  %1580 = vmatpush.msra.mxu0 %v277
  %1581 = vmatpush.msra.mxu0 %v274
  %1582 = vmatpush.msra.mxu0 %v271
  %1583 = vmatpush.msra.mxu0 %v268
  %1584 = vmatpush.msra.mxu0 %v265
  %1585 = vmatpush.msra.mxu0 %v262
  %1586 = vmatmul.f32.gmra.mxu0 %v1568
  %v1587 = vpop.f32.mrf.mxu0
  %v1588 = vadd.f32 0.0, %v1587
  %1589 = vdwg.mxu0
  %1590 = vmatpush.msra.mxu0 %v308
  %1591 = vmatpush.msra.mxu0 %v305
  %1592 = vmatpush.msra.mxu0 %v302
  %1593 = vmatpush.msra.mxu0 %v299
  %1594 = vmatpush.msra.mxu0 %v296
  %1595 = vmatpush.msra.mxu0 %v293
  %1596 = vmatpush.msra.mxu0 %v290
  %1597 = vmatpush.msra.mxu0 %v287
  %1598 = vmatpush.msra.mxu0 %v284
  %1599 = vmatpush.msra.mxu0 %v281
  %1600 = vmatpush.msra.mxu0 %v278
  %1601 = vmatpush.msra.mxu0 %v275
  %1602 = vmatpush.msra.mxu0 %v272
  %1603 = vmatpush.msra.mxu0 %v269
  %1604 = vmatpush.msra.mxu0 %v266
  %1605 = vmatpush.msra.mxu0 %v263
  %1606 = vmatmul.f32.gmra.mxu0 %v1568
  %v1607 = vpop.f32.mrf.mxu0
  %v1608 = vadd.f32 0.0, %v1607
  %1609 = vdwg.mxu0
  %1610 = vmatpush.msra.mxu0 %v309
  %1611 = vmatpush.msra.mxu0 %v306
  %1612 = vmatpush.msra.mxu0 %v303
  %1613 = vmatpush.msra.mxu0 %v300
  %1614 = vmatpush.msra.mxu0 %v297
  %1615 = vmatpush.msra.mxu0 %v294
  %1616 = vmatpush.msra.mxu0 %v291
  %1617 = vmatpush.msra.mxu0 %v288
  %1618 = vmatpush.msra.mxu0 %v285
  %1619 = vmatpush.msra.mxu0 %v282
  %1620 = vmatpush.msra.mxu0 %v279
  %1621 = vmatpush.msra.mxu0 %v276
  %1622 = vmatpush.msra.mxu0 %v273
  %1623 = vmatpush.msra.mxu0 %v270
  %1624 = vmatpush.msra.mxu0 %v267
  %1625 = vmatpush.msra.mxu0 %v264
  %1626 = vmatmul.f32.gmra.mxu0 %v1568
  %v1627 = vpop.f32.mrf.mxu0
  %v1628 = vadd.f32 0.0, %v1627
  %1629 = vdwg.mxu0
  %v1630 = vadd.f32 %v481, %v1588
  %v1631 = vxor.u32 %v1630, 2147483648
  %v1632 = vmul.f32 %v1631, 1.442695
  %v1633 = vpow.pop %v1632
  %v1634 = vadd.f32 %v1633, 1.0
  %v1635 = vrcp.pop %v1634
  %v1636 = vmul.f32 %v1634, %v1635
  %v1637 = vsub.f32 1.0, %v1636
  %v1638 = vmul.f32 %v1635, %v1637
  %v1639 = vadd.f32 %v1635, %v1638
  %vm1640 = vweird.f32 %v1634
  %vm1641 = vweird.f32 %v1635
  %vm1642 = vmor %vm1640, %vm1641
  %v1643 = vsel %vm1642, %v1635, %v1639
  %v1644 = vand.u32 2147483647, %v1634
  %vm1645 = vcmp.eq.f32.partialorder %v1644, 8.507059e+37
  %v1646 = vand.u32 %v1634, 2147483648
  %v1647 = vor.u32 1.1754944e-38, %v1646
  %v1648 = vsel %vm1645, %v1647, %v1643
  %v1649 = vmul.f32 1.0, %v1648
  %v1650 = vadd.f32 %v645, %v1608
  %v1651 = vxor.u32 %v1650, 2147483648
  %v1652 = vmul.f32 %v1651, 1.442695
  %v1653 = vpow.pop %v1652
  %v1654 = vadd.f32 %v1653, 1.0
  %v1655 = vrcp.pop %v1654
  %v1656 = vmul.f32 %v1654, %v1655
  %v1657 = vsub.f32 1.0, %v1656
  %v1658 = vmul.f32 %v1655, %v1657
  %v1659 = vadd.f32 %v1655, %v1658
  %vm1660 = vweird.f32 %v1654
  %vm1661 = vweird.f32 %v1655
  %vm1662 = vmor %vm1660, %vm1661
  %v1663 = vsel %vm1662, %v1655, %v1659
  %v1664 = vand.u32 2147483647, %v1654
  %vm1665 = vcmp.eq.f32.partialorder %v1664, 8.507059e+37
  %v1666 = vand.u32 %v1654, 2147483648
  %v1667 = vor.u32 1.1754944e-38, %v1666
  %v1668 = vsel %vm1665, %v1667, %v1663
  %v1669 = vmul.f32 1.0, %v1668
  %v1670 = vadd.f32 %v1628, %v912
  %v1671 = vmul.f32 %v1649, %v1670
  %v1672 = vadd.f32 %v809, %v1671
  %v1673 = vtanh.pop %v1672
  %v1674 = vsub.f32 %v1568, %v1673
  %v1675 = vmul.f32 %v1669, %v1674
  %v1676 = vadd.f32 %v1673, %v1675
  %1677 = vst [vmem:[#allocation2 + $0x38] sm:$0xff] %v1676
  %v1678 = vld [vmem:[#allocation2] sm:$0xff]
  %v1679 = vld [vmem:[#allocation2 + $0x8] sm:$0xff]
  %v1680 = vld [vmem:[#allocation2 + $0x10] sm:$0xff]
  %v1681 = vld [vmem:[#allocation2 + $0x18] sm:$0xff]
  %v1682 = vld [vmem:[#allocation2 + $0x20] sm:$0xff]
  %v1683 = vld [vmem:[#allocation2 + $0x28] sm:$0xff]
  %v1684 = vld [vmem:[#allocation2 + $0x30] sm:$0xff]
  %v1685 = vld [vmem:[#allocation2 + $0x38] sm:$0xff]
  %v1686 = vld [vmem:[%s5] sm:$0xff]
  %v1687 = vld [vmem:[%s5 + $0x8] sm:$0xff]
  %v1688 = vld [vmem:[%s5 + $0x10] sm:$0xff]
  %v1689 = vld [vmem:[%s5 + $0x18] sm:$0xff]
  %v1690 = vld [vmem:[%s5 + $0x20] sm:$0xff]
  %v1691 = vld [vmem:[%s5 + $0x28] sm:$0xff]
  %v1692 = vld [vmem:[%s5 + $0x30] sm:$0xff]
  %v1693 = vld [vmem:[%s5 + $0x38] sm:$0xff]
  %v1694 = vld [vmem:[%s5 + $0x40] sm:$0xff]
  %v1695 = vld [vmem:[%s5 + $0x48] sm:$0xff]
  %v1696 = vld [vmem:[%s5 + $0x50] sm:$0xff]
  %v1697 = vld [vmem:[%s5 + $0x58] sm:$0xff]
  %v1698 = vld [vmem:[%s5 + $0x60] sm:$0xff]
  %v1699 = vld [vmem:[%s5 + $0x68] sm:$0xff]
  %v1700 = vld [vmem:[%s5 + $0x70] sm:$0xff]
  %v1701 = vld [vmem:[%s5 + $0x78] sm:$0xff]
  %v1702 = vld [vmem:[%s5 + $0x80] sm:$0xff]
  %v1703 = vld [vmem:[%s5 + $0x88] sm:$0xff]
  %v1704 = vld [vmem:[%s5 + $0x90] sm:$0xff]
  %v1705 = vld [vmem:[%s5 + $0x98] sm:$0xff]
  %v1706 = vld [vmem:[%s5 + $0xa0] sm:$0xff]
  %v1707 = vld [vmem:[%s5 + $0xa8] sm:$0xff]
  %v1708 = vld [vmem:[%s5 + $0xb0] sm:$0xff]
  %v1709 = vld [vmem:[%s5 + $0xb8] sm:$0xff]
  %v1710 = vld [vmem:[%s5 + $0xc0] sm:$0xff]
  %v1711 = vld [vmem:[%s5 + $0xc8] sm:$0xff]
  %v1712 = vld [vmem:[%s5 + $0xd0] sm:$0xff]
  %v1713 = vld [vmem:[%s5 + $0xd8] sm:$0xff]
  %v1714 = vld [vmem:[%s5 + $0xe0] sm:$0xff]
  %v1715 = vld [vmem:[%s5 + $0xe8] sm:$0xff]
  %v1716 = vld [vmem:[%s5 + $0xf0] sm:$0xff]
  %v1717 = vld [vmem:[%s5 + $0xf8] sm:$0xff]
  %v1718 = vld [vmem:[%s5 + $0x100] sm:$0xff]
  %v1719 = vld [vmem:[%s5 + $0x108] sm:$0xff]
  %v1720 = vld [vmem:[%s5 + $0x110] sm:$0xff]
  %v1721 = vld [vmem:[%s5 + $0x118] sm:$0xff]
  %v1722 = vld [vmem:[%s5 + $0x120] sm:$0xff]
  %v1723 = vld [vmem:[%s5 + $0x128] sm:$0xff]
  %v1724 = vld [vmem:[%s5 + $0x130] sm:$0xff]
  %v1725 = vld [vmem:[%s5 + $0x138] sm:$0xff]
  %v1726 = vld [vmem:[%s5 + $0x140] sm:$0xff]
  %v1727 = vld [vmem:[%s5 + $0x148] sm:$0xff]
  %v1728 = vld [vmem:[%s5 + $0x150] sm:$0xff]
  %v1729 = vld [vmem:[%s5 + $0x158] sm:$0xff]
  %v1730 = vld [vmem:[%s5 + $0x160] sm:$0xff]
  %v1731 = vld [vmem:[%s5 + $0x168] sm:$0xff]
  %v1732 = vld [vmem:[%s5 + $0x170] sm:$0xff]
  %v1733 = vld [vmem:[%s5 + $0x178] sm:$0xff]
  %v1734 = vld [vmem:[%s6] sm:$0xff]
  %v1735 = vld [vmem:[%s6 + $0x8] sm:$0xff]
  %v1736 = vld [vmem:[%s6 + $0x10] sm:$0xff]
  %v1737 = vld [vmem:[%s6 + $0x18] sm:$0xff]
  %v1738 = vld [vmem:[%s6 + $0x20] sm:$0xff]
  %v1739 = vld [vmem:[%s6 + $0x28] sm:$0xff]
  %v1740 = vld [vmem:[%s6 + $0x30] sm:$0xff]
  %v1741 = vld [vmem:[%s6 + $0x38] sm:$0xff]
  %v1742 = vld [vmem:[%s6 + $0x40] sm:$0xff]
  %v1743 = vld [vmem:[%s6 + $0x48] sm:$0xff]
  %v1744 = vld [vmem:[%s6 + $0x50] sm:$0xff]
  %v1745 = vld [vmem:[%s6 + $0x58] sm:$0xff]
  %v1746 = vld [vmem:[%s6 + $0x60] sm:$0xff]
  %v1747 = vld [vmem:[%s6 + $0x68] sm:$0xff]
  %v1748 = vld [vmem:[%s6 + $0x70] sm:$0xff]
  %v1749 = vld [vmem:[%s6 + $0x78] sm:$0xff]
  %v1750 = vld [vmem:[%s6 + $0x80] sm:$0xff]
  %v1751 = vld [vmem:[%s6 + $0x88] sm:$0xff]
  %v1752 = vld [vmem:[%s6 + $0x90] sm:$0xff]
  %v1753 = vld [vmem:[%s6 + $0x98] sm:$0xff]
  %v1754 = vld [vmem:[%s6 + $0xa0] sm:$0xff]
  %v1755 = vld [vmem:[%s6 + $0xa8] sm:$0xff]
  %v1756 = vld [vmem:[%s6 + $0xb0] sm:$0xff]
  %v1757 = vld [vmem:[%s6 + $0xb8] sm:$0xff]
  %v1758 = vld [vmem:[%s6 + $0xc0] sm:$0xff]
  %v1759 = vld [vmem:[%s6 + $0xc8] sm:$0xff]
  %v1760 = vld [vmem:[%s6 + $0xd0] sm:$0xff]
  %v1761 = vld [vmem:[%s6 + $0xd8] sm:$0xff]
  %v1762 = vld [vmem:[%s6 + $0xe0] sm:$0xff]
  %v1763 = vld [vmem:[%s6 + $0xe8] sm:$0xff]
  %v1764 = vld [vmem:[%s6 + $0xf0] sm:$0xff]
  %v1765 = vld [vmem:[%s6 + $0xf8] sm:$0xff]
  %v1766 = vld [vmem:[%s6 + $0x100] sm:$0xff]
  %v1767 = vld [vmem:[%s6 + $0x108] sm:$0xff]
  %v1768 = vld [vmem:[%s6 + $0x110] sm:$0xff]
  %v1769 = vld [vmem:[%s6 + $0x118] sm:$0xff]
  %v1770 = vld [vmem:[%s6 + $0x120] sm:$0xff]
  %v1771 = vld [vmem:[%s6 + $0x128] sm:$0xff]
  %v1772 = vld [vmem:[%s6 + $0x130] sm:$0xff]
  %v1773 = vld [vmem:[%s6 + $0x138] sm:$0xff]
  %v1774 = vld [vmem:[%s6 + $0x140] sm:$0xff]
  %v1775 = vld [vmem:[%s6 + $0x148] sm:$0xff]
  %v1776 = vld [vmem:[%s6 + $0x150] sm:$0xff]
  %v1777 = vld [vmem:[%s6 + $0x158] sm:$0xff]
  %v1778 = vld [vmem:[%s6 + $0x160] sm:$0xff]
  %v1779 = vld [vmem:[%s6 + $0x168] sm:$0xff]
  %v1780 = vld [vmem:[%s6 + $0x170] sm:$0xff]
  %v1781 = vld [vmem:[%s6 + $0x178] sm:$0xff]
  %v1782 = vld [vmem:[%s7] sm:$0x7]
  %v1783 = vld [vmem:[%s8] sm:$0x1]
  %v1785 = vperm.slane %v1782, 0
  %v1786 = vperm.slane %v1782, 1
  %v1787 = vperm.slane %v1782, 2
  %1791 = vmatpush.msra.mxu0 %v1731
  %1792 = vmatpush.msra.mxu0 %v1728
  %1793 = vmatpush.msra.mxu0 %v1725
  %1794 = vmatpush.msra.mxu0 %v1722
  %1795 = vmatpush.msra.mxu0 %v1719
  %1796 = vmatpush.msra.mxu0 %v1716
  %1797 = vmatpush.msra.mxu0 %v1713
  %1798 = vmatpush.msra.mxu0 %v1710
  %1799 = vmatpush.msra.mxu0 %v1707
  %1800 = vmatpush.msra.mxu0 %v1704
  %1801 = vmatpush.msra.mxu0 %v1701
  %1802 = vmatpush.msra.mxu0 %v1698
  %1803 = vmatpush.msra.mxu0 %v1695
  %1804 = vmatpush.msra.mxu0 %v1692
  %1805 = vmatpush.msra.mxu0 %v1689
  %1806 = vmatpush.msra.mxu0 %v1686
  %1807 = vmatmul.f32.gmra.mxu0 %v1678
  %v1808 = vpop.f32.mrf.mxu0
  %v1809 = vadd.f32 %v1785, %v1808
  %1810 = vmatmul.f32.gmra.mxu0 %v1679
  %v1811 = vpop.f32.mrf.mxu0
  %v1812 = vadd.f32 %v1785, %v1811
  %1813 = vmatmul.f32.gmra.mxu0 %v1680
  %v1814 = vpop.f32.mrf.mxu0
  %v1815 = vadd.f32 %v1785, %v1814
  %1816 = vmatmul.f32.gmra.mxu0 %v1681
  %v1817 = vpop.f32.mrf.mxu0
  %v1818 = vadd.f32 %v1785, %v1817
  %1819 = vmatmul.f32.gmra.mxu0 %v1682
  %v1820 = vpop.f32.mrf.mxu0
  %v1821 = vadd.f32 %v1785, %v1820
  %1822 = vmatmul.f32.gmra.mxu0 %v1683
  %v1823 = vpop.f32.mrf.mxu0
  %v1824 = vadd.f32 %v1785, %v1823
  %1825 = vmatmul.f32.gmra.mxu0 %v1684
  %v1826 = vpop.f32.mrf.mxu0
  %v1827 = vadd.f32 %v1785, %v1826
  %1828 = vmatmul.f32.gmra.mxu0 %v1685
  %v1829 = vpop.f32.mrf.mxu0
  %v1830 = vadd.f32 %v1785, %v1829
  %1831 = vdwg.mxu0
  %1832 = vmatpush.msra.mxu0 %v1732
  %1833 = vmatpush.msra.mxu0 %v1729
  %1834 = vmatpush.msra.mxu0 %v1726
  %1835 = vmatpush.msra.mxu0 %v1723
  %1836 = vmatpush.msra.mxu0 %v1720
  %1837 = vmatpush.msra.mxu0 %v1717
  %1838 = vmatpush.msra.mxu0 %v1714
  %1839 = vmatpush.msra.mxu0 %v1711
  %1840 = vmatpush.msra.mxu0 %v1708
  %1841 = vmatpush.msra.mxu0 %v1705
  %1842 = vmatpush.msra.mxu0 %v1702
  %1843 = vmatpush.msra.mxu0 %v1699
  %1844 = vmatpush.msra.mxu0 %v1696
  %1845 = vmatpush.msra.mxu0 %v1693
  %1846 = vmatpush.msra.mxu0 %v1690
  %1847 = vmatpush.msra.mxu0 %v1687
  %1848 = vmatmul.f32.gmra.mxu0 %v1678
  %v1849 = vpop.f32.mrf.mxu0
  %v1850 = vadd.f32 %v1786, %v1849
  %1851 = vmatmul.f32.gmra.mxu0 %v1679
  %v1852 = vpop.f32.mrf.mxu0
  %v1853 = vadd.f32 %v1786, %v1852
  %1854 = vmatmul.f32.gmra.mxu0 %v1680
  %v1855 = vpop.f32.mrf.mxu0
  %v1856 = vadd.f32 %v1786, %v1855
  %1857 = vmatmul.f32.gmra.mxu0 %v1681
  %v1858 = vpop.f32.mrf.mxu0
  %v1859 = vadd.f32 %v1786, %v1858
  %1860 = vmatmul.f32.gmra.mxu0 %v1682
  %v1861 = vpop.f32.mrf.mxu0
  %v1862 = vadd.f32 %v1786, %v1861
  %1863 = vmatmul.f32.gmra.mxu0 %v1683
  %v1864 = vpop.f32.mrf.mxu0
  %v1865 = vadd.f32 %v1786, %v1864
  %1866 = vmatmul.f32.gmra.mxu0 %v1684
  %v1867 = vpop.f32.mrf.mxu0
  %v1868 = vadd.f32 %v1786, %v1867
  %1869 = vmatmul.f32.gmra.mxu0 %v1685
  %v1870 = vpop.f32.mrf.mxu0
  %v1871 = vadd.f32 %v1786, %v1870
  %1872 = vdwg.mxu0
  %1873 = vmatpush.msra.mxu0 %v1733
  %1874 = vmatpush.msra.mxu0 %v1730
  %1875 = vmatpush.msra.mxu0 %v1727
  %1876 = vmatpush.msra.mxu0 %v1724
  %1877 = vmatpush.msra.mxu0 %v1721
  %1878 = vmatpush.msra.mxu0 %v1718
  %1879 = vmatpush.msra.mxu0 %v1715
  %1880 = vmatpush.msra.mxu0 %v1712
  %1881 = vmatpush.msra.mxu0 %v1709
  %1882 = vmatpush.msra.mxu0 %v1706
  %1883 = vmatpush.msra.mxu0 %v1703
  %1884 = vmatpush.msra.mxu0 %v1700
  %1885 = vmatpush.msra.mxu0 %v1697
  %1886 = vmatpush.msra.mxu0 %v1694
  %1887 = vmatpush.msra.mxu0 %v1691
  %1888 = vmatpush.msra.mxu0 %v1688
  %1889 = vmatmul.f32.gmra.mxu0 %v1678
  %v1890 = vpop.f32.mrf.mxu0
  %v1891 = vadd.f32 %v1787, %v1890
  %1892 = vmatmul.f32.gmra.mxu0 %v1679
  %v1893 = vpop.f32.mrf.mxu0
  %v1894 = vadd.f32 %v1787, %v1893
  %1895 = vmatmul.f32.gmra.mxu0 %v1680
  %v1896 = vpop.f32.mrf.mxu0
  %v1897 = vadd.f32 %v1787, %v1896
  %1898 = vmatmul.f32.gmra.mxu0 %v1681
  %v1899 = vpop.f32.mrf.mxu0
  %v1900 = vadd.f32 %v1787, %v1899
  %1901 = vmatmul.f32.gmra.mxu0 %v1682
  %v1902 = vpop.f32.mrf.mxu0
  %v1903 = vadd.f32 %v1787, %v1902
  %1904 = vmatmul.f32.gmra.mxu0 %v1683
  %v1905 = vpop.f32.mrf.mxu0
  %v1906 = vadd.f32 %v1787, %v1905
  %1907 = vmatmul.f32.gmra.mxu0 %v1684
  %v1908 = vpop.f32.mrf.mxu0
  %v1909 = vadd.f32 %v1787, %v1908
  %1910 = vmatmul.f32.gmra.mxu0 %v1685
  %v1911 = vpop.f32.mrf.mxu0
  %v1912 = vadd.f32 %v1787, %v1911
  %1913 = vdwg.mxu0
  %1914 = vmatpush.msra.mxu0 %v1779
  %1915 = vmatpush.msra.mxu0 %v1776
  %1916 = vmatpush.msra.mxu0 %v1773
  %1917 = vmatpush.msra.mxu0 %v1770
  %1918 = vmatpush.msra.mxu0 %v1767
  %1919 = vmatpush.msra.mxu0 %v1764
  %1920 = vmatpush.msra.mxu0 %v1761
  %1921 = vmatpush.msra.mxu0 %v1758
  %1922 = vmatpush.msra.mxu0 %v1755
  %1923 = vmatpush.msra.mxu0 %v1752
  %1924 = vmatpush.msra.mxu0 %v1749
  %1925 = vmatpush.msra.mxu0 %v1746
  %1926 = vmatpush.msra.mxu0 %v1743
  %1927 = vmatpush.msra.mxu0 %v1740
  %1928 = vmatpush.msra.mxu0 %v1737
  %1929 = vmatpush.msra.mxu0 %v1734
  %1930 = vmatmul.f32.gmra.mxu0 0.0
  %v1931 = vpop.f32.mrf.mxu0
  %v1932 = vadd.f32 0.0, %v1931
  %1933 = vdwg.mxu0
  %1934 = vmatpush.msra.mxu0 %v1780
  %1935 = vmatpush.msra.mxu0 %v1777
  %1936 = vmatpush.msra.mxu0 %v1774
  %1937 = vmatpush.msra.mxu0 %v1771
  %1938 = vmatpush.msra.mxu0 %v1768
  %1939 = vmatpush.msra.mxu0 %v1765
  %1940 = vmatpush.msra.mxu0 %v1762
  %1941 = vmatpush.msra.mxu0 %v1759
  %1942 = vmatpush.msra.mxu0 %v1756
  %1943 = vmatpush.msra.mxu0 %v1753
  %1944 = vmatpush.msra.mxu0 %v1750
  %1945 = vmatpush.msra.mxu0 %v1747
  %1946 = vmatpush.msra.mxu0 %v1744
  %1947 = vmatpush.msra.mxu0 %v1741
  %1948 = vmatpush.msra.mxu0 %v1738
  %1949 = vmatpush.msra.mxu0 %v1735
  %1950 = vmatmul.f32.gmra.mxu0 0.0
  %v1951 = vpop.f32.mrf.mxu0
  %v1952 = vadd.f32 0.0, %v1951
  %1953 = vdwg.mxu0
  %1954 = vmatpush.msra.mxu0 %v1781
  %1955 = vmatpush.msra.mxu0 %v1778
  %1956 = vmatpush.msra.mxu0 %v1775
  %1957 = vmatpush.msra.mxu0 %v1772
  %1958 = vmatpush.msra.mxu0 %v1769
  %1959 = vmatpush.msra.mxu0 %v1766
  %1960 = vmatpush.msra.mxu0 %v1763
  %1961 = vmatpush.msra.mxu0 %v1760
  %1962 = vmatpush.msra.mxu0 %v1757
  %1963 = vmatpush.msra.mxu0 %v1754
  %1964 = vmatpush.msra.mxu0 %v1751
  %1965 = vmatpush.msra.mxu0 %v1748
  %1966 = vmatpush.msra.mxu0 %v1745
  %1967 = vmatpush.msra.mxu0 %v1742
  %1968 = vmatpush.msra.mxu0 %v1739
  %1969 = vmatpush.msra.mxu0 %v1736
  %1970 = vmatmul.f32.gmra.mxu0 0.0
  %v1971 = vpop.f32.mrf.mxu0
  %v1972 = vadd.f32 0.0, %v1971
  %1973 = vdwg.mxu0
  %v1974 = vadd.f32 %v1809, %v1932
  %v1975 = vxor.u32 %v1974, 2147483648
  %v1976 = vmul.f32 %v1975, 1.442695
  %v1977 = vpow.pop %v1976
  %v1978 = vadd.f32 %v1977, 1.0
  %v1979 = vrcp.pop %v1978
  %v1980 = vmul.f32 %v1978, %v1979
  %v1981 = vsub.f32 1.0, %v1980
  %v1982 = vmul.f32 %v1979, %v1981
  %v1983 = vadd.f32 %v1979, %v1982
  %vm1984 = vweird.f32 %v1978
  %vm1985 = vweird.f32 %v1979
  %vm1986 = vmor %vm1984, %vm1985
  %v1987 = vsel %vm1986, %v1979, %v1983
  %v1988 = vand.u32 2147483647, %v1978
  %vm1989 = vcmp.eq.f32.partialorder %v1988, 8.507059e+37
  %v1990 = vand.u32 %v1978, 2147483648
  %v1991 = vor.u32 1.1754944e-38, %v1990
  %v1992 = vsel %vm1989, %v1991, %v1987
  %v1993 = vmul.f32 1.0, %v1992
  %v1994 = vadd.f32 %v1850, %v1952
  %v1995 = vxor.u32 %v1994, 2147483648
  %v1996 = vmul.f32 %v1995, 1.442695
  %v1997 = vpow.pop %v1996
  %v1998 = vadd.f32 %v1997, 1.0
  %v1999 = vrcp.pop %v1998
  %v2000 = vmul.f32 %v1998, %v1999
  %v2001 = vsub.f32 1.0, %v2000
  %v2002 = vmul.f32 %v1999, %v2001
  %v2003 = vadd.f32 %v1999, %v2002
  %vm2004 = vweird.f32 %v1998
  %vm2005 = vweird.f32 %v1999
  %vm2006 = vmor %vm2004, %vm2005
  %v2007 = vsel %vm2006, %v1999, %v2003
  %v2008 = vand.u32 2147483647, %v1998
  %vm2009 = vcmp.eq.f32.partialorder %v2008, 8.507059e+37
  %v2010 = vand.u32 %v1998, 2147483648
  %v2011 = vor.u32 1.1754944e-38, %v2010
  %v2012 = vsel %vm2009, %v2011, %v2007
  %v2013 = vmul.f32 1.0, %v2012
  %v2015 = vperm.slane %v1783, 0
  %v2017 = vadd.f32 %v1972, %v2015
  %v2018 = vmul.f32 %v1993, %v2017
  %v2019 = vadd.f32 %v1891, %v2018
  %v2020 = vtanh.pop %v2019
  %v2021 = vsub.f32 0.0, %v2020
  %v2022 = vmul.f32 %v2013, %v2021
  %v2023 = vadd.f32 %v2020, %v2022
  %2024 = vmatpush.msra.mxu0 %v1779
  %2025 = vmatpush.msra.mxu0 %v1776
  %2026 = vmatpush.msra.mxu0 %v1773
  %2027 = vmatpush.msra.mxu0 %v1770
  %2028 = vmatpush.msra.mxu0 %v1767
  %2029 = vmatpush.msra.mxu0 %v1764
  %2030 = vmatpush.msra.mxu0 %v1761
  %2031 = vmatpush.msra.mxu0 %v1758
  %2032 = vmatpush.msra.mxu0 %v1755
  %2033 = vmatpush.msra.mxu0 %v1752
  %2034 = vmatpush.msra.mxu0 %v1749
  %2035 = vmatpush.msra.mxu0 %v1746
  %2036 = vmatpush.msra.mxu0 %v1743
  %2037 = vmatpush.msra.mxu0 %v1740
  %2038 = vmatpush.msra.mxu0 %v1737
  %2039 = vmatpush.msra.mxu0 %v1734
  %2040 = vmatmul.f32.gmra.mxu0 %v2023
  %v2041 = vpop.f32.mrf.mxu0
  %v2042 = vadd.f32 0.0, %v2041
  %2043 = vdwg.mxu0
  %2044 = vmatpush.msra.mxu0 %v1780
  %2045 = vmatpush.msra.mxu0 %v1777
  %2046 = vmatpush.msra.mxu0 %v1774
  %2047 = vmatpush.msra.mxu0 %v1771
  %2048 = vmatpush.msra.mxu0 %v1768
  %2049 = vmatpush.msra.mxu0 %v1765
  %2050 = vmatpush.msra.mxu0 %v1762
  %2051 = vmatpush.msra.mxu0 %v1759
  %2052 = vmatpush.msra.mxu0 %v1756
  %2053 = vmatpush.msra.mxu0 %v1753
  %2054 = vmatpush.msra.mxu0 %v1750
  %2055 = vmatpush.msra.mxu0 %v1747
  %2056 = vmatpush.msra.mxu0 %v1744
  %2057 = vmatpush.msra.mxu0 %v1741
  %2058 = vmatpush.msra.mxu0 %v1738
  %2059 = vmatpush.msra.mxu0 %v1735
  %2060 = vmatmul.f32.gmra.mxu0 %v2023
  %v2061 = vpop.f32.mrf.mxu0
  %v2062 = vadd.f32 0.0, %v2061
  %2063 = vdwg.mxu0
  %2064 = vmatpush.msra.mxu0 %v1781
  %2065 = vmatpush.msra.mxu0 %v1778
  %2066 = vmatpush.msra.mxu0 %v1775
  %2067 = vmatpush.msra.mxu0 %v1772
  %2068 = vmatpush.msra.mxu0 %v1769
  %2069 = vmatpush.msra.mxu0 %v1766
  %2070 = vmatpush.msra.mxu0 %v1763
  %2071 = vmatpush.msra.mxu0 %v1760
  %2072 = vmatpush.msra.mxu0 %v1757
  %2073 = vmatpush.msra.mxu0 %v1754
  %2074 = vmatpush.msra.mxu0 %v1751
  %2075 = vmatpush.msra.mxu0 %v1748
  %2076 = vmatpush.msra.mxu0 %v1745
  %2077 = vmatpush.msra.mxu0 %v1742
  %2078 = vmatpush.msra.mxu0 %v1739
  %2079 = vmatpush.msra.mxu0 %v1736
  %2080 = vmatmul.f32.gmra.mxu0 %v2023
  %v2081 = vpop.f32.mrf.mxu0
  %v2082 = vadd.f32 0.0, %v2081
  %2083 = vdwg.mxu0
  %v2084 = vadd.f32 %v1812, %v2042
  %v2085 = vxor.u32 %v2084, 2147483648
  %v2086 = vmul.f32 %v2085, 1.442695
  %v2087 = vpow.pop %v2086
  %v2088 = vadd.f32 %v2087, 1.0
  %v2089 = vrcp.pop %v2088
  %v2090 = vmul.f32 %v2088, %v2089
  %v2091 = vsub.f32 1.0, %v2090
  %v2092 = vmul.f32 %v2089, %v2091
  %v2093 = vadd.f32 %v2089, %v2092
  %vm2094 = vweird.f32 %v2088
  %vm2095 = vweird.f32 %v2089
  %vm2096 = vmor %vm2094, %vm2095
  %v2097 = vsel %vm2096, %v2089, %v2093
  %v2098 = vand.u32 2147483647, %v2088
  %vm2099 = vcmp.eq.f32.partialorder %v2098, 8.507059e+37
  %v2100 = vand.u32 %v2088, 2147483648
  %v2101 = vor.u32 1.1754944e-38, %v2100
  %v2102 = vsel %vm2099, %v2101, %v2097
  %v2103 = vmul.f32 1.0, %v2102
  %v2104 = vadd.f32 %v1853, %v2062
  %v2105 = vxor.u32 %v2104, 2147483648
  %v2106 = vmul.f32 %v2105, 1.442695
  %v2107 = vpow.pop %v2106
  %v2108 = vadd.f32 %v2107, 1.0
  %v2109 = vrcp.pop %v2108
  %v2110 = vmul.f32 %v2108, %v2109
  %v2111 = vsub.f32 1.0, %v2110
  %v2112 = vmul.f32 %v2109, %v2111
  %v2113 = vadd.f32 %v2109, %v2112
  %vm2114 = vweird.f32 %v2108
  %vm2115 = vweird.f32 %v2109
  %vm2116 = vmor %vm2114, %vm2115
  %v2117 = vsel %vm2116, %v2109, %v2113
  %v2118 = vand.u32 2147483647, %v2108
  %vm2119 = vcmp.eq.f32.partialorder %v2118, 8.507059e+37
  %v2120 = vand.u32 %v2108, 2147483648
  %v2121 = vor.u32 1.1754944e-38, %v2120
  %v2122 = vsel %vm2119, %v2121, %v2117
  %v2123 = vmul.f32 1.0, %v2122
  %v2124 = vadd.f32 %v2082, %v2015
  %v2125 = vmul.f32 %v2103, %v2124
  %v2126 = vadd.f32 %v1894, %v2125
  %v2127 = vtanh.pop %v2126
  %v2128 = vsub.f32 %v2023, %v2127
  %v2129 = vmul.f32 %v2123, %v2128
  %v2130 = vadd.f32 %v2127, %v2129
  %2131 = vmatpush.msra.mxu0 %v1779
  %2132 = vmatpush.msra.mxu0 %v1776
  %2133 = vmatpush.msra.mxu0 %v1773
  %2134 = vmatpush.msra.mxu0 %v1770
  %2135 = vmatpush.msra.mxu0 %v1767
  %2136 = vmatpush.msra.mxu0 %v1764
  %2137 = vmatpush.msra.mxu0 %v1761
  %2138 = vmatpush.msra.mxu0 %v1758
  %2139 = vmatpush.msra.mxu0 %v1755
  %2140 = vmatpush.msra.mxu0 %v1752
  %2141 = vmatpush.msra.mxu0 %v1749
  %2142 = vmatpush.msra.mxu0 %v1746
  %2143 = vmatpush.msra.mxu0 %v1743
  %2144 = vmatpush.msra.mxu0 %v1740
  %2145 = vmatpush.msra.mxu0 %v1737
  %2146 = vmatpush.msra.mxu0 %v1734
  %2147 = vmatmul.f32.gmra.mxu0 %v2130
  %v2148 = vpop.f32.mrf.mxu0
  %v2149 = vadd.f32 0.0, %v2148
  %2150 = vdwg.mxu0
  %2151 = vmatpush.msra.mxu0 %v1780
  %2152 = vmatpush.msra.mxu0 %v1777
  %2153 = vmatpush.msra.mxu0 %v1774
  %2154 = vmatpush.msra.mxu0 %v1771
  %2155 = vmatpush.msra.mxu0 %v1768
  %2156 = vmatpush.msra.mxu0 %v1765
  %2157 = vmatpush.msra.mxu0 %v1762
  %2158 = vmatpush.msra.mxu0 %v1759
  %2159 = vmatpush.msra.mxu0 %v1756
  %2160 = vmatpush.msra.mxu0 %v1753
  %2161 = vmatpush.msra.mxu0 %v1750
  %2162 = vmatpush.msra.mxu0 %v1747
  %2163 = vmatpush.msra.mxu0 %v1744
  %2164 = vmatpush.msra.mxu0 %v1741
  %2165 = vmatpush.msra.mxu0 %v1738
  %2166 = vmatpush.msra.mxu0 %v1735
  %2167 = vmatmul.f32.gmra.mxu0 %v2130
  %v2168 = vpop.f32.mrf.mxu0
  %v2169 = vadd.f32 0.0, %v2168
  %2170 = vdwg.mxu0
  %2171 = vmatpush.msra.mxu0 %v1781
  %2172 = vmatpush.msra.mxu0 %v1778
  %2173 = vmatpush.msra.mxu0 %v1775
  %2174 = vmatpush.msra.mxu0 %v1772
  %2175 = vmatpush.msra.mxu0 %v1769
  %2176 = vmatpush.msra.mxu0 %v1766
  %2177 = vmatpush.msra.mxu0 %v1763
  %2178 = vmatpush.msra.mxu0 %v1760
  %2179 = vmatpush.msra.mxu0 %v1757
  %2180 = vmatpush.msra.mxu0 %v1754
  %2181 = vmatpush.msra.mxu0 %v1751
  %2182 = vmatpush.msra.mxu0 %v1748
  %2183 = vmatpush.msra.mxu0 %v1745
  %2184 = vmatpush.msra.mxu0 %v1742
  %2185 = vmatpush.msra.mxu0 %v1739
  %2186 = vmatpush.msra.mxu0 %v1736
  %2187 = vmatmul.f32.gmra.mxu0 %v2130
  %v2188 = vpop.f32.mrf.mxu0
  %v2189 = vadd.f32 0.0, %v2188
  %2190 = vdwg.mxu0
  %v2191 = vadd.f32 %v1815, %v2149
  %v2192 = vxor.u32 %v2191, 2147483648
  %v2193 = vmul.f32 %v2192, 1.442695
  %v2194 = vpow.pop %v2193
  %v2195 = vadd.f32 %v2194, 1.0
  %v2196 = vrcp.pop %v2195
  %v2197 = vmul.f32 %v2195, %v2196
  %v2198 = vsub.f32 1.0, %v2197
  %v2199 = vmul.f32 %v2196, %v2198
  %v2200 = vadd.f32 %v2196, %v2199
  %vm2201 = vweird.f32 %v2195
  %vm2202 = vweird.f32 %v2196
  %vm2203 = vmor %vm2201, %vm2202
  %v2204 = vsel %vm2203, %v2196, %v2200
  %v2205 = vand.u32 2147483647, %v2195
  %vm2206 = vcmp.eq.f32.partialorder %v2205, 8.507059e+37
  %v2207 = vand.u32 %v2195, 2147483648
  %v2208 = vor.u32 1.1754944e-38, %v2207
  %v2209 = vsel %vm2206, %v2208, %v2204
  %v2210 = vmul.f32 1.0, %v2209
  %v2211 = vadd.f32 %v1856, %v2169
  %v2212 = vxor.u32 %v2211, 2147483648
  %v2213 = vmul.f32 %v2212, 1.442695
  %v2214 = vpow.pop %v2213
  %v2215 = vadd.f32 %v2214, 1.0
  %v2216 = vrcp.pop %v2215
  %v2217 = vmul.f32 %v2215, %v2216
  %v2218 = vsub.f32 1.0, %v2217
  %v2219 = vmul.f32 %v2216, %v2218
  %v2220 = vadd.f32 %v2216, %v2219
  %vm2221 = vweird.f32 %v2215
  %vm2222 = vweird.f32 %v2216
  %vm2223 = vmor %vm2221, %vm2222
  %v2224 = vsel %vm2223, %v2216, %v2220
  %v2225 = vand.u32 2147483647, %v2215
  %vm2226 = vcmp.eq.f32.partialorder %v2225, 8.507059e+37
  %v2227 = vand.u32 %v2215, 2147483648
  %v2228 = vor.u32 1.1754944e-38, %v2227
  %v2229 = vsel %vm2226, %v2228, %v2224
  %v2230 = vmul.f32 1.0, %v2229
  %v2231 = vadd.f32 %v2189, %v2015
  %v2232 = vmul.f32 %v2210, %v2231
  %v2233 = vadd.f32 %v1897, %v2232
  %v2234 = vtanh.pop %v2233
  %v2235 = vsub.f32 %v2130, %v2234
  %v2236 = vmul.f32 %v2230, %v2235
  %v2237 = vadd.f32 %v2234, %v2236
  %2238 = vmatpush.msra.mxu0 %v1779
  %2239 = vmatpush.msra.mxu0 %v1776
  %2240 = vmatpush.msra.mxu0 %v1773
  %2241 = vmatpush.msra.mxu0 %v1770
  %2242 = vmatpush.msra.mxu0 %v1767
  %2243 = vmatpush.msra.mxu0 %v1764
  %2244 = vmatpush.msra.mxu0 %v1761
  %2245 = vmatpush.msra.mxu0 %v1758
  %2246 = vmatpush.msra.mxu0 %v1755
  %2247 = vmatpush.msra.mxu0 %v1752
  %2248 = vmatpush.msra.mxu0 %v1749
  %2249 = vmatpush.msra.mxu0 %v1746
  %2250 = vmatpush.msra.mxu0 %v1743
  %2251 = vmatpush.msra.mxu0 %v1740
  %2252 = vmatpush.msra.mxu0 %v1737
  %2253 = vmatpush.msra.mxu0 %v1734
  %2254 = vmatmul.f32.gmra.mxu0 %v2237
  %v2255 = vpop.f32.mrf.mxu0
  %v2256 = vadd.f32 0.0, %v2255
  %2257 = vdwg.mxu0
  %2258 = vmatpush.msra.mxu0 %v1780
  %2259 = vmatpush.msra.mxu0 %v1777
  %2260 = vmatpush.msra.mxu0 %v1774
  %2261 = vmatpush.msra.mxu0 %v1771
  %2262 = vmatpush.msra.mxu0 %v1768
  %2263 = vmatpush.msra.mxu0 %v1765
  %2264 = vmatpush.msra.mxu0 %v1762
  %2265 = vmatpush.msra.mxu0 %v1759
  %2266 = vmatpush.msra.mxu0 %v1756
  %2267 = vmatpush.msra.mxu0 %v1753
  %2268 = vmatpush.msra.mxu0 %v1750
  %2269 = vmatpush.msra.mxu0 %v1747
  %2270 = vmatpush.msra.mxu0 %v1744
  %2271 = vmatpush.msra.mxu0 %v1741
  %2272 = vmatpush.msra.mxu0 %v1738
  %2273 = vmatpush.msra.mxu0 %v1735
  %2274 = vmatmul.f32.gmra.mxu0 %v2237
  %v2275 = vpop.f32.mrf.mxu0
  %v2276 = vadd.f32 0.0, %v2275
  %2277 = vdwg.mxu0
  %2278 = vmatpush.msra.mxu0 %v1781
  %2279 = vmatpush.msra.mxu0 %v1778
  %2280 = vmatpush.msra.mxu0 %v1775
  %2281 = vmatpush.msra.mxu0 %v1772
  %2282 = vmatpush.msra.mxu0 %v1769
  %2283 = vmatpush.msra.mxu0 %v1766
  %2284 = vmatpush.msra.mxu0 %v1763
  %2285 = vmatpush.msra.mxu0 %v1760
  %2286 = vmatpush.msra.mxu0 %v1757
  %2287 = vmatpush.msra.mxu0 %v1754
  %2288 = vmatpush.msra.mxu0 %v1751
  %2289 = vmatpush.msra.mxu0 %v1748
  %2290 = vmatpush.msra.mxu0 %v1745
  %2291 = vmatpush.msra.mxu0 %v1742
  %2292 = vmatpush.msra.mxu0 %v1739
  %2293 = vmatpush.msra.mxu0 %v1736
  %2294 = vmatmul.f32.gmra.mxu0 %v2237
  %v2295 = vpop.f32.mrf.mxu0
  %v2296 = vadd.f32 0.0, %v2295
  %2297 = vdwg.mxu0
  %v2298 = vadd.f32 %v1818, %v2256
  %v2299 = vxor.u32 %v2298, 2147483648
  %v2300 = vmul.f32 %v2299, 1.442695
  %v2301 = vpow.pop %v2300
  %v2302 = vadd.f32 %v2301, 1.0
  %v2303 = vrcp.pop %v2302
  %v2304 = vmul.f32 %v2302, %v2303
  %v2305 = vsub.f32 1.0, %v2304
  %v2306 = vmul.f32 %v2303, %v2305
  %v2307 = vadd.f32 %v2303, %v2306
  %vm2308 = vweird.f32 %v2302
  %vm2309 = vweird.f32 %v2303
  %vm2310 = vmor %vm2308, %vm2309
  %v2311 = vsel %vm2310, %v2303, %v2307
  %v2312 = vand.u32 2147483647, %v2302
  %vm2313 = vcmp.eq.f32.partialorder %v2312, 8.507059e+37
  %v2314 = vand.u32 %v2302, 2147483648
  %v2315 = vor.u32 1.1754944e-38, %v2314
  %v2316 = vsel %vm2313, %v2315, %v2311
  %v2317 = vmul.f32 1.0, %v2316
  %v2318 = vadd.f32 %v1859, %v2276
  %v2319 = vxor.u32 %v2318, 2147483648
  %v2320 = vmul.f32 %v2319, 1.442695
  %v2321 = vpow.pop %v2320
  %v2322 = vadd.f32 %v2321, 1.0
  %v2323 = vrcp.pop %v2322
  %v2324 = vmul.f32 %v2322, %v2323
  %v2325 = vsub.f32 1.0, %v2324
  %v2326 = vmul.f32 %v2323, %v2325
  %v2327 = vadd.f32 %v2323, %v2326
  %vm2328 = vweird.f32 %v2322
  %vm2329 = vweird.f32 %v2323
  %vm2330 = vmor %vm2328, %vm2329
  %v2331 = vsel %vm2330, %v2323, %v2327
  %v2332 = vand.u32 2147483647, %v2322
  %vm2333 = vcmp.eq.f32.partialorder %v2332, 8.507059e+37
  %v2334 = vand.u32 %v2322, 2147483648
  %v2335 = vor.u32 1.1754944e-38, %v2334
  %v2336 = vsel %vm2333, %v2335, %v2331
  %v2337 = vmul.f32 1.0, %v2336
  %v2338 = vadd.f32 %v2296, %v2015
  %v2339 = vmul.f32 %v2317, %v2338
  %v2340 = vadd.f32 %v1900, %v2339
  %v2341 = vtanh.pop %v2340
  %v2342 = vsub.f32 %v2237, %v2341
  %v2343 = vmul.f32 %v2337, %v2342
  %v2344 = vadd.f32 %v2341, %v2343
  %2345 = vmatpush.msra.mxu0 %v1779
  %2346 = vmatpush.msra.mxu0 %v1776
  %2347 = vmatpush.msra.mxu0 %v1773
  %2348 = vmatpush.msra.mxu0 %v1770
  %2349 = vmatpush.msra.mxu0 %v1767
  %2350 = vmatpush.msra.mxu0 %v1764
  %2351 = vmatpush.msra.mxu0 %v1761
  %2352 = vmatpush.msra.mxu0 %v1758
  %2353 = vmatpush.msra.mxu0 %v1755
  %2354 = vmatpush.msra.mxu0 %v1752
  %2355 = vmatpush.msra.mxu0 %v1749
  %2356 = vmatpush.msra.mxu0 %v1746
  %2357 = vmatpush.msra.mxu0 %v1743
  %2358 = vmatpush.msra.mxu0 %v1740
  %2359 = vmatpush.msra.mxu0 %v1737
  %2360 = vmatpush.msra.mxu0 %v1734
  %2361 = vmatmul.f32.gmra.mxu0 %v2344
  %v2362 = vpop.f32.mrf.mxu0
  %v2363 = vadd.f32 0.0, %v2362
  %2364 = vdwg.mxu0
  %2365 = vmatpush.msra.mxu0 %v1780
  %2366 = vmatpush.msra.mxu0 %v1777
  %2367 = vmatpush.msra.mxu0 %v1774
  %2368 = vmatpush.msra.mxu0 %v1771
  %2369 = vmatpush.msra.mxu0 %v1768
  %2370 = vmatpush.msra.mxu0 %v1765
  %2371 = vmatpush.msra.mxu0 %v1762
  %2372 = vmatpush.msra.mxu0 %v1759
  %2373 = vmatpush.msra.mxu0 %v1756
  %2374 = vmatpush.msra.mxu0 %v1753
  %2375 = vmatpush.msra.mxu0 %v1750
  %2376 = vmatpush.msra.mxu0 %v1747
  %2377 = vmatpush.msra.mxu0 %v1744
  %2378 = vmatpush.msra.mxu0 %v1741
  %2379 = vmatpush.msra.mxu0 %v1738
  %2380 = vmatpush.msra.mxu0 %v1735
  %2381 = vmatmul.f32.gmra.mxu0 %v2344
  %v2382 = vpop.f32.mrf.mxu0
  %v2383 = vadd.f32 0.0, %v2382
  %2384 = vdwg.mxu0
  %2385 = vmatpush.msra.mxu0 %v1781
  %2386 = vmatpush.msra.mxu0 %v1778
  %2387 = vmatpush.msra.mxu0 %v1775
  %2388 = vmatpush.msra.mxu0 %v1772
  %2389 = vmatpush.msra.mxu0 %v1769
  %2390 = vmatpush.msra.mxu0 %v1766
  %2391 = vmatpush.msra.mxu0 %v1763
  %2392 = vmatpush.msra.mxu0 %v1760
  %2393 = vmatpush.msra.mxu0 %v1757
  %2394 = vmatpush.msra.mxu0 %v1754
  %2395 = vmatpush.msra.mxu0 %v1751
  %2396 = vmatpush.msra.mxu0 %v1748
  %2397 = vmatpush.msra.mxu0 %v1745
  %2398 = vmatpush.msra.mxu0 %v1742
  %2399 = vmatpush.msra.mxu0 %v1739
  %2400 = vmatpush.msra.mxu0 %v1736
  %2401 = vmatmul.f32.gmra.mxu0 %v2344
  %v2402 = vpop.f32.mrf.mxu0
  %v2403 = vadd.f32 0.0, %v2402
  %2404 = vdwg.mxu0
  %v2405 = vadd.f32 %v1821, %v2363
  %v2406 = vxor.u32 %v2405, 2147483648
  %v2407 = vmul.f32 %v2406, 1.442695
  %v2408 = vpow.pop %v2407
  %v2409 = vadd.f32 %v2408, 1.0
  %v2410 = vrcp.pop %v2409
  %v2411 = vmul.f32 %v2409, %v2410
  %v2412 = vsub.f32 1.0, %v2411
  %v2413 = vmul.f32 %v2410, %v2412
  %v2414 = vadd.f32 %v2410, %v2413
  %vm2415 = vweird.f32 %v2409
  %vm2416 = vweird.f32 %v2410
  %vm2417 = vmor %vm2415, %vm2416
  %v2418 = vsel %vm2417, %v2410, %v2414
  %v2419 = vand.u32 2147483647, %v2409
  %vm2420 = vcmp.eq.f32.partialorder %v2419, 8.507059e+37
  %v2421 = vand.u32 %v2409, 2147483648
  %v2422 = vor.u32 1.1754944e-38, %v2421
  %v2423 = vsel %vm2420, %v2422, %v2418
  %v2424 = vmul.f32 1.0, %v2423
  %v2425 = vadd.f32 %v1862, %v2383
  %v2426 = vxor.u32 %v2425, 2147483648
  %v2427 = vmul.f32 %v2426, 1.442695
  %v2428 = vpow.pop %v2427
  %v2429 = vadd.f32 %v2428, 1.0
  %v2430 = vrcp.pop %v2429
  %v2431 = vmul.f32 %v2429, %v2430
  %v2432 = vsub.f32 1.0, %v2431
  %v2433 = vmul.f32 %v2430, %v2432
  %v2434 = vadd.f32 %v2430, %v2433
  %vm2435 = vweird.f32 %v2429
  %vm2436 = vweird.f32 %v2430
  %vm2437 = vmor %vm2435, %vm2436
  %v2438 = vsel %vm2437, %v2430, %v2434
  %v2439 = vand.u32 2147483647, %v2429
  %vm2440 = vcmp.eq.f32.partialorder %v2439, 8.507059e+37
  %v2441 = vand.u32 %v2429, 2147483648
  %v2442 = vor.u32 1.1754944e-38, %v2441
  %v2443 = vsel %vm2440, %v2442, %v2438
  %v2444 = vmul.f32 1.0, %v2443
  %v2445 = vadd.f32 %v2403, %v2015
  %v2446 = vmul.f32 %v2424, %v2445
  %v2447 = vadd.f32 %v1903, %v2446
  %v2448 = vtanh.pop %v2447
  %v2449 = vsub.f32 %v2344, %v2448
  %v2450 = vmul.f32 %v2444, %v2449
  %v2451 = vadd.f32 %v2448, %v2450
  %2452 = vmatpush.msra.mxu0 %v1779
  %2453 = vmatpush.msra.mxu0 %v1776
  %2454 = vmatpush.msra.mxu0 %v1773
  %2455 = vmatpush.msra.mxu0 %v1770
  %2456 = vmatpush.msra.mxu0 %v1767
  %2457 = vmatpush.msra.mxu0 %v1764
  %2458 = vmatpush.msra.mxu0 %v1761
  %2459 = vmatpush.msra.mxu0 %v1758
  %2460 = vmatpush.msra.mxu0 %v1755
  %2461 = vmatpush.msra.mxu0 %v1752
  %2462 = vmatpush.msra.mxu0 %v1749
  %2463 = vmatpush.msra.mxu0 %v1746
  %2464 = vmatpush.msra.mxu0 %v1743
  %2465 = vmatpush.msra.mxu0 %v1740
  %2466 = vmatpush.msra.mxu0 %v1737
  %2467 = vmatpush.msra.mxu0 %v1734
  %2468 = vmatmul.f32.gmra.mxu0 %v2451
  %v2469 = vpop.f32.mrf.mxu0
  %v2470 = vadd.f32 0.0, %v2469
  %2471 = vdwg.mxu0
  %2472 = vmatpush.msra.mxu0 %v1780
  %2473 = vmatpush.msra.mxu0 %v1777
  %2474 = vmatpush.msra.mxu0 %v1774
  %2475 = vmatpush.msra.mxu0 %v1771
  %2476 = vmatpush.msra.mxu0 %v1768
  %2477 = vmatpush.msra.mxu0 %v1765
  %2478 = vmatpush.msra.mxu0 %v1762
  %2479 = vmatpush.msra.mxu0 %v1759
  %2480 = vmatpush.msra.mxu0 %v1756
  %2481 = vmatpush.msra.mxu0 %v1753
  %2482 = vmatpush.msra.mxu0 %v1750
  %2483 = vmatpush.msra.mxu0 %v1747
  %2484 = vmatpush.msra.mxu0 %v1744
  %2485 = vmatpush.msra.mxu0 %v1741
  %2486 = vmatpush.msra.mxu0 %v1738
  %2487 = vmatpush.msra.mxu0 %v1735
  %2488 = vmatmul.f32.gmra.mxu0 %v2451
  %v2489 = vpop.f32.mrf.mxu0
  %v2490 = vadd.f32 0.0, %v2489
  %2491 = vdwg.mxu0
  %2492 = vmatpush.msra.mxu0 %v1781
  %2493 = vmatpush.msra.mxu0 %v1778
  %2494 = vmatpush.msra.mxu0 %v1775
  %2495 = vmatpush.msra.mxu0 %v1772
  %2496 = vmatpush.msra.mxu0 %v1769
  %2497 = vmatpush.msra.mxu0 %v1766
  %2498 = vmatpush.msra.mxu0 %v1763
  %2499 = vmatpush.msra.mxu0 %v1760
  %2500 = vmatpush.msra.mxu0 %v1757
  %2501 = vmatpush.msra.mxu0 %v1754
  %2502 = vmatpush.msra.mxu0 %v1751
  %2503 = vmatpush.msra.mxu0 %v1748
  %2504 = vmatpush.msra.mxu0 %v1745
  %2505 = vmatpush.msra.mxu0 %v1742
  %2506 = vmatpush.msra.mxu0 %v1739
  %2507 = vmatpush.msra.mxu0 %v1736
  %2508 = vmatmul.f32.gmra.mxu0 %v2451
  %v2509 = vpop.f32.mrf.mxu0
  %v2510 = vadd.f32 0.0, %v2509
  %2511 = vdwg.mxu0
  %v2512 = vadd.f32 %v1824, %v2470
  %v2513 = vxor.u32 %v2512, 2147483648
  %v2514 = vmul.f32 %v2513, 1.442695
  %v2515 = vpow.pop %v2514
  %v2516 = vadd.f32 %v2515, 1.0
  %v2517 = vrcp.pop %v2516
  %v2518 = vmul.f32 %v2516, %v2517
  %v2519 = vsub.f32 1.0, %v2518
  %v2520 = vmul.f32 %v2517, %v2519
  %v2521 = vadd.f32 %v2517, %v2520
  %vm2522 = vweird.f32 %v2516
  %vm2523 = vweird.f32 %v2517
  %vm2524 = vmor %vm2522, %vm2523
  %v2525 = vsel %vm2524, %v2517, %v2521
  %v2526 = vand.u32 2147483647, %v2516
  %vm2527 = vcmp.eq.f32.partialorder %v2526, 8.507059e+37
  %v2528 = vand.u32 %v2516, 2147483648
  %v2529 = vor.u32 1.1754944e-38, %v2528
  %v2530 = vsel %vm2527, %v2529, %v2525
  %v2531 = vmul.f32 1.0, %v2530
  %v2532 = vadd.f32 %v1865, %v2490
  %v2533 = vxor.u32 %v2532, 2147483648
  %v2534 = vmul.f32 %v2533, 1.442695
  %v2535 = vpow.pop %v2534
  %v2536 = vadd.f32 %v2535, 1.0
  %v2537 = vrcp.pop %v2536
  %v2538 = vmul.f32 %v2536, %v2537
  %v2539 = vsub.f32 1.0, %v2538
  %v2540 = vmul.f32 %v2537, %v2539
  %v2541 = vadd.f32 %v2537, %v2540
  %vm2542 = vweird.f32 %v2536
  %vm2543 = vweird.f32 %v2537
  %vm2544 = vmor %vm2542, %vm2543
  %v2545 = vsel %vm2544, %v2537, %v2541
  %v2546 = vand.u32 2147483647, %v2536
  %vm2547 = vcmp.eq.f32.partialorder %v2546, 8.507059e+37
  %v2548 = vand.u32 %v2536, 2147483648
  %v2549 = vor.u32 1.1754944e-38, %v2548
  %v2550 = vsel %vm2547, %v2549, %v2545
  %v2551 = vmul.f32 1.0, %v2550
  %v2552 = vadd.f32 %v2510, %v2015
  %v2553 = vmul.f32 %v2531, %v2552
  %v2554 = vadd.f32 %v1906, %v2553
  %v2555 = vtanh.pop %v2554
  %v2556 = vsub.f32 %v2451, %v2555
  %v2557 = vmul.f32 %v2551, %v2556
  %v2558 = vadd.f32 %v2555, %v2557
  %2559 = vmatpush.msra.mxu0 %v1779
  %2560 = vmatpush.msra.mxu0 %v1776
  %2561 = vmatpush.msra.mxu0 %v1773
  %2562 = vmatpush.msra.mxu0 %v1770
  %2563 = vmatpush.msra.mxu0 %v1767
  %2564 = vmatpush.msra.mxu0 %v1764
  %2565 = vmatpush.msra.mxu0 %v1761
  %2566 = vmatpush.msra.mxu0 %v1758
  %2567 = vmatpush.msra.mxu0 %v1755
  %2568 = vmatpush.msra.mxu0 %v1752
  %2569 = vmatpush.msra.mxu0 %v1749
  %2570 = vmatpush.msra.mxu0 %v1746
  %2571 = vmatpush.msra.mxu0 %v1743
  %2572 = vmatpush.msra.mxu0 %v1740
  %2573 = vmatpush.msra.mxu0 %v1737
  %2574 = vmatpush.msra.mxu0 %v1734
  %2575 = vmatmul.f32.gmra.mxu0 %v2558
  %v2576 = vpop.f32.mrf.mxu0
  %v2577 = vadd.f32 0.0, %v2576
  %2578 = vdwg.mxu0
  %2579 = vmatpush.msra.mxu0 %v1780
  %2580 = vmatpush.msra.mxu0 %v1777
  %2581 = vmatpush.msra.mxu0 %v1774
  %2582 = vmatpush.msra.mxu0 %v1771
  %2583 = vmatpush.msra.mxu0 %v1768
  %2584 = vmatpush.msra.mxu0 %v1765
  %2585 = vmatpush.msra.mxu0 %v1762
  %2586 = vmatpush.msra.mxu0 %v1759
  %2587 = vmatpush.msra.mxu0 %v1756
  %2588 = vmatpush.msra.mxu0 %v1753
  %2589 = vmatpush.msra.mxu0 %v1750
  %2590 = vmatpush.msra.mxu0 %v1747
  %2591 = vmatpush.msra.mxu0 %v1744
  %2592 = vmatpush.msra.mxu0 %v1741
  %2593 = vmatpush.msra.mxu0 %v1738
  %2594 = vmatpush.msra.mxu0 %v1735
  %2595 = vmatmul.f32.gmra.mxu0 %v2558
  %v2596 = vpop.f32.mrf.mxu0
  %v2597 = vadd.f32 0.0, %v2596
  %2598 = vdwg.mxu0
  %2599 = vmatpush.msra.mxu0 %v1781
  %2600 = vmatpush.msra.mxu0 %v1778
  %2601 = vmatpush.msra.mxu0 %v1775
  %2602 = vmatpush.msra.mxu0 %v1772
  %2603 = vmatpush.msra.mxu0 %v1769
  %2604 = vmatpush.msra.mxu0 %v1766
  %2605 = vmatpush.msra.mxu0 %v1763
  %2606 = vmatpush.msra.mxu0 %v1760
  %2607 = vmatpush.msra.mxu0 %v1757
  %2608 = vmatpush.msra.mxu0 %v1754
  %2609 = vmatpush.msra.mxu0 %v1751
  %2610 = vmatpush.msra.mxu0 %v1748
  %2611 = vmatpush.msra.mxu0 %v1745
  %2612 = vmatpush.msra.mxu0 %v1742
  %2613 = vmatpush.msra.mxu0 %v1739
  %2614 = vmatpush.msra.mxu0 %v1736
  %2615 = vmatmul.f32.gmra.mxu0 %v2558
  %v2616 = vpop.f32.mrf.mxu0
  %v2617 = vadd.f32 0.0, %v2616
  %2618 = vdwg.mxu0
  %v2619 = vadd.f32 %v1827, %v2577
  %v2620 = vxor.u32 %v2619, 2147483648
  %v2621 = vmul.f32 %v2620, 1.442695
  %v2622 = vpow.pop %v2621
  %v2623 = vadd.f32 %v2622, 1.0
  %v2624 = vrcp.pop %v2623
  %v2625 = vmul.f32 %v2623, %v2624
  %v2626 = vsub.f32 1.0, %v2625
  %v2627 = vmul.f32 %v2624, %v2626
  %v2628 = vadd.f32 %v2624, %v2627
  %vm2629 = vweird.f32 %v2623
  %vm2630 = vweird.f32 %v2624
  %vm2631 = vmor %vm2629, %vm2630
  %v2632 = vsel %vm2631, %v2624, %v2628
  %v2633 = vand.u32 2147483647, %v2623
  %vm2634 = vcmp.eq.f32.partialorder %v2633, 8.507059e+37
  %v2635 = vand.u32 %v2623, 2147483648
  %v2636 = vor.u32 1.1754944e-38, %v2635
  %v2637 = vsel %vm2634, %v2636, %v2632
  %v2638 = vmul.f32 1.0, %v2637
  %v2639 = vadd.f32 %v1868, %v2597
  %v2640 = vxor.u32 %v2639, 2147483648
  %v2641 = vmul.f32 %v2640, 1.442695
  %v2642 = vpow.pop %v2641
  %v2643 = vadd.f32 %v2642, 1.0
  %v2644 = vrcp.pop %v2643
  %v2645 = vmul.f32 %v2643, %v2644
  %v2646 = vsub.f32 1.0, %v2645
  %v2647 = vmul.f32 %v2644, %v2646
  %v2648 = vadd.f32 %v2644, %v2647
  %vm2649 = vweird.f32 %v2643
  %vm2650 = vweird.f32 %v2644
  %vm2651 = vmor %vm2649, %vm2650
  %v2652 = vsel %vm2651, %v2644, %v2648
  %v2653 = vand.u32 2147483647, %v2643
  %vm2654 = vcmp.eq.f32.partialorder %v2653, 8.507059e+37
  %v2655 = vand.u32 %v2643, 2147483648
  %v2656 = vor.u32 1.1754944e-38, %v2655
  %v2657 = vsel %vm2654, %v2656, %v2652
  %v2658 = vmul.f32 1.0, %v2657
  %v2659 = vadd.f32 %v2617, %v2015
  %v2660 = vmul.f32 %v2638, %v2659
  %v2661 = vadd.f32 %v1909, %v2660
  %v2662 = vtanh.pop %v2661
  %v2663 = vsub.f32 %v2558, %v2662
  %v2664 = vmul.f32 %v2658, %v2663
  %v2665 = vadd.f32 %v2662, %v2664
  %2666 = vmatpush.msra.mxu0 %v1779
  %2667 = vmatpush.msra.mxu0 %v1776
  %2668 = vmatpush.msra.mxu0 %v1773
  %2669 = vmatpush.msra.mxu0 %v1770
  %2670 = vmatpush.msra.mxu0 %v1767
  %2671 = vmatpush.msra.mxu0 %v1764
  %2672 = vmatpush.msra.mxu0 %v1761
  %2673 = vmatpush.msra.mxu0 %v1758
  %2674 = vmatpush.msra.mxu0 %v1755
  %2675 = vmatpush.msra.mxu0 %v1752
  %2676 = vmatpush.msra.mxu0 %v1749
  %2677 = vmatpush.msra.mxu0 %v1746
  %2678 = vmatpush.msra.mxu0 %v1743
  %2679 = vmatpush.msra.mxu0 %v1740
  %2680 = vmatpush.msra.mxu0 %v1737
  %2681 = vmatpush.msra.mxu0 %v1734
  %2682 = vmatmul.f32.gmra.mxu0 %v2665
  %v2683 = vpop.f32.mrf.mxu0
  %v2684 = vadd.f32 0.0, %v2683
  %2685 = vdwg.mxu0
  %2686 = vmatpush.msra.mxu0 %v1780
  %2687 = vmatpush.msra.mxu0 %v1777
  %2688 = vmatpush.msra.mxu0 %v1774
  %2689 = vmatpush.msra.mxu0 %v1771
  %2690 = vmatpush.msra.mxu0 %v1768
  %2691 = vmatpush.msra.mxu0 %v1765
  %2692 = vmatpush.msra.mxu0 %v1762
  %2693 = vmatpush.msra.mxu0 %v1759
  %2694 = vmatpush.msra.mxu0 %v1756
  %2695 = vmatpush.msra.mxu0 %v1753
  %2696 = vmatpush.msra.mxu0 %v1750
  %2697 = vmatpush.msra.mxu0 %v1747
  %2698 = vmatpush.msra.mxu0 %v1744
  %2699 = vmatpush.msra.mxu0 %v1741
  %2700 = vmatpush.msra.mxu0 %v1738
  %2701 = vmatpush.msra.mxu0 %v1735
  %2702 = vmatmul.f32.gmra.mxu0 %v2665
  %v2703 = vpop.f32.mrf.mxu0
  %v2704 = vadd.f32 0.0, %v2703
  %2705 = vdwg.mxu0
  %2706 = vmatpush.msra.mxu0 %v1781
  %2707 = vmatpush.msra.mxu0 %v1778
  %2708 = vmatpush.msra.mxu0 %v1775
  %2709 = vmatpush.msra.mxu0 %v1772
  %2710 = vmatpush.msra.mxu0 %v1769
  %2711 = vmatpush.msra.mxu0 %v1766
  %2712 = vmatpush.msra.mxu0 %v1763
  %2713 = vmatpush.msra.mxu0 %v1760
  %2714 = vmatpush.msra.mxu0 %v1757
  %2715 = vmatpush.msra.mxu0 %v1754
  %2716 = vmatpush.msra.mxu0 %v1751
  %2717 = vmatpush.msra.mxu0 %v1748
  %2718 = vmatpush.msra.mxu0 %v1745
  %2719 = vmatpush.msra.mxu0 %v1742
  %2720 = vmatpush.msra.mxu0 %v1739
  %2721 = vmatpush.msra.mxu0 %v1736
  %2722 = vmatmul.f32.gmra.mxu0 %v2665
  %v2723 = vpop.f32.mrf.mxu0
  %v2724 = vadd.f32 0.0, %v2723
  %2725 = vdwg.mxu0
  %v2726 = vadd.f32 %v1830, %v2684
  %v2727 = vxor.u32 %v2726, 2147483648
  %v2728 = vmul.f32 %v2727, 1.442695
  %v2729 = vpow.pop %v2728
  %v2730 = vadd.f32 %v2729, 1.0
  %v2731 = vrcp.pop %v2730
  %v2732 = vmul.f32 %v2730, %v2731
  %v2733 = vsub.f32 1.0, %v2732
  %v2734 = vmul.f32 %v2731, %v2733
  %v2735 = vadd.f32 %v2731, %v2734
  %vm2736 = vweird.f32 %v2730
  %vm2737 = vweird.f32 %v2731
  %vm2738 = vmor %vm2736, %vm2737
  %v2739 = vsel %vm2738, %v2731, %v2735
  %v2740 = vand.u32 2147483647, %v2730
  %vm2741 = vcmp.eq.f32.partialorder %v2740, 8.507059e+37
  %v2742 = vand.u32 %v2730, 2147483648
  %v2743 = vor.u32 1.1754944e-38, %v2742
  %v2744 = vsel %vm2741, %v2743, %v2739
  %v2745 = vmul.f32 1.0, %v2744
  %v2746 = vadd.f32 %v1871, %v2704
  %v2747 = vxor.u32 %v2746, 2147483648
  %v2748 = vmul.f32 %v2747, 1.442695
  %v2749 = vpow.pop %v2748
  %v2750 = vadd.f32 %v2749, 1.0
  %v2751 = vrcp.pop %v2750
  %v2752 = vmul.f32 %v2750, %v2751
  %v2753 = vsub.f32 1.0, %v2752
  %v2754 = vmul.f32 %v2751, %v2753
  %v2755 = vadd.f32 %v2751, %v2754
  %vm2756 = vweird.f32 %v2750
  %vm2757 = vweird.f32 %v2751
  %vm2758 = vmor %vm2756, %vm2757
  %v2759 = vsel %vm2758, %v2751, %v2755
  %v2760 = vand.u32 2147483647, %v2750
  %vm2761 = vcmp.eq.f32.partialorder %v2760, 8.507059e+37
  %v2762 = vand.u32 %v2750, 2147483648
  %v2763 = vor.u32 1.1754944e-38, %v2762
  %v2764 = vsel %vm2761, %v2763, %v2759
  %v2765 = vmul.f32 1.0, %v2764
  %v2766 = vadd.f32 %v2724, %v2015
  %v2767 = vmul.f32 %v2745, %v2766
  %v2768 = vadd.f32 %v1912, %v2767
  %v2769 = vtanh.pop %v2768
  %v2770 = vsub.f32 %v2665, %v2769
  %v2771 = vmul.f32 %v2765, %v2770
  %v2772 = vadd.f32 %v2769, %v2771
  %v2773 = vld [vmem:[%s9] sm:$0xff]
  %v2774 = vld [vmem:[%s9 + $0x8] sm:$0xff]
  %v2775 = vld [vmem:[%s9 + $0x10] sm:$0xff]
  %v2776 = vld [vmem:[%s9 + $0x18] sm:$0xff]
  %v2777 = vld [vmem:[%s9 + $0x20] sm:$0xff]
  %v2778 = vld [vmem:[%s9 + $0x28] sm:$0xff]
  %v2779 = vld [vmem:[%s9 + $0x30] sm:$0xff]
  %v2780 = vld [vmem:[%s9 + $0x38] sm:$0xff]
  %v2781 = vld [vmem:[%s9 + $0x40] sm:$0xff]
  %v2782 = vld [vmem:[%s9 + $0x48] sm:$0xff]
  %v2783 = vld [vmem:[%s9 + $0x50] sm:$0xff]
  %v2784 = vld [vmem:[%s9 + $0x58] sm:$0xff]
  %v2785 = vld [vmem:[%s9 + $0x60] sm:$0xff]
  %v2786 = vld [vmem:[%s9 + $0x68] sm:$0xff]
  %v2787 = vld [vmem:[%s9 + $0x70] sm:$0xff]
  %v2788 = vld [vmem:[%s9 + $0x78] sm:$0xff]
  %v2789 = vld [vmem:[%s10] sm:$0x1]
  %v2791 = vperm.slane %v2789, 0
  %2793 = vmatpush.msra.mxu0 %v2788
  %2794 = vmatpush.msra.mxu0 %v2787
  %2795 = vmatpush.msra.mxu0 %v2786
  %2796 = vmatpush.msra.mxu0 %v2785
  %2797 = vmatpush.msra.mxu0 %v2784
  %2798 = vmatpush.msra.mxu0 %v2783
  %2799 = vmatpush.msra.mxu0 %v2782
  %2800 = vmatpush.msra.mxu0 %v2781
  %2801 = vmatpush.msra.mxu0 %v2780
  %2802 = vmatpush.msra.mxu0 %v2779
  %2803 = vmatpush.msra.mxu0 %v2778
  %2804 = vmatpush.msra.mxu0 %v2777
  %2805 = vmatpush.msra.mxu0 %v2776
  %2806 = vmatpush.msra.mxu0 %v2775
  %2807 = vmatpush.msra.mxu0 %v2774
  %2808 = vmatpush.msra.mxu0 %v2773
  %2809 = vmatmul.f32.gmra.mxu0 %v2772
  %v2810 = vpop.f32.mrf.mxu0
  %v2811 = vadd.f32 %v2791, %v2810
  %2812 = vdwg.mxu0
  %2813 = vst [vmem:[%s11] sm:$0xff] %v2811
  // Predicated region
  $region46: #{rnn_gru_forward.1} parent=0 // pred_check
    _
  $region47: #{rnn_gru_forward.1} parent=0 // pred_check_branch
    %2815 = sbr.rel (0) target = $region49
  $region48: #{rnn_gru_forward.1} parent=0 // pred_region
    _
  $region49: #{rnn_gru_forward.1} parent=0 // pred_fallthru
    _
  // Predicated region
  $region50: #{rnn_gru_forward.1} parent=0 // pred_check
    _
  $region51: #{rnn_gru_forward.1} parent=0 // pred_check_branch
    %2817 = sbr.rel (0) target = $region53
  $region52: #{rnn_gru_forward.1} parent=0 // pred_region
    _
  $region53: #{rnn_gru_forward.1} parent=0 // pred_fallthru
    _

</llo_original>
